<compile_context>
chip_gen: v5e
topology: v5e:2x2
jax: 0.10.0
libtpu: 0.0.40
codegen_flags: <defaults>
</compile_context>

<pallas_src>
import jax
import jax.numpy as jnp
import numpy as np
from jax.experimental import pallas as pl
from jax.experimental.pallas import tpu as pltpu

LEAKY_SLOPE = 0.1
BN_EPS = 1e-5


# ---------------------------------------------------------------------------
# Helpers
# ---------------------------------------------------------------------------
def _pick_row_tile(nrows, ncols, target=512):
    """Largest divisor `th` of nrows with th*ncols <= target (at least 1)."""
    best = 1
    for th in range(1, nrows + 1):
        if nrows % th == 0 and th * ncols <= max(target, ncols):
            best = th
    return best


# ---------------------------------------------------------------------------
# Fused Conv3x3 + folded-BatchNorm + LeakyReLU kernel
# ---------------------------------------------------------------------------
def _make_conv_bn_lrelu_kernel(th, w_, cin, cout):
    def kernel(xp_ref, w_ref, scale_ref, bias_ref, o_ref, patch_ref):
        # xp_ref:    (1, H+2, W+2, Cin) bf16 - whole padded image (revisited across row tiles)
        # w_ref:     (9*Cin, Cout)      bf16 - conv weight with the 9 taps folded into K
        # scale_ref: (1, Cout)          f32  - gamma / sqrt(running_var + eps)
        # bias_ref:  (1, Cout)          f32  - beta - running_mean * scale
        # o_ref:     (1, th*W, Cout)          - this row tile, spatially flattened
        # patch_ref: (th, W, 9*Cin)     bf16  VMEM scratch (in-VMEM im2col, never touches HBM)
        r = pl.program_id(1)
        row0 = r * th
        for k in range(9):
            dy, dx = divmod(k, 3)
            patch_ref[:, :, k * cin:(k + 1) * cin] = xp_ref[
                0, pl.ds(row0 + dy, th), pl.ds(dx, w_), :]
        # Single MXU matmul with K = 9*Cin, f32 accumulation.
        patch = patch_ref[...].reshape(th * w_, 9 * cin)
        acc = jnp.dot(patch, w_ref[...], preferred_element_type=jnp.float32)
        # Folded BatchNorm affine + LeakyReLU(0.1) epilogue in f32 (VPU filler under MXU).
        y = acc * scale_ref[...] + bias_ref[...]
        y = jnp.maximum(y, LEAKY_SLOPE * y)
        o_ref[0] = y.astype(o_ref.dtype)

    return kernel


def conv_bn_lrelu(x_nhwc, w, scale, bias, out_dtype=jnp.bfloat16):
    """Conv2d(3x3, stride 1, SAME, no bias) + folded BN + LeakyReLU(0.1). NHWC in/out."""
    N, H, W, Cin = x_nhwc.shape
    Cout = w.shape[-1]
    assert W % 8 == 0, "W must be a multiple of 8 for the in-kernel spatial flatten"
    th = _pick_row_tile(H, W)                      # row-tile so th*W ~ a few hundred MXU rows

    # SAME padding; bf16 operands for the MXU (accumulation stays f32 in-kernel).
    xp = jnp.pad(x_nhwc.astype(jnp.bfloat16), ((0, 0), (1, 1), (1, 1), (0, 0)))
    w9 = w.reshape(9 * Cin, Cout).astype(jnp.bfloat16)   # (dy, dx, ci) folded into K

    out = pl.pallas_call(
        _make_conv_bn_lrelu_kernel(th, W, Cin, Cout),
        out_shape=jax.ShapeDtypeStruct((N, H * W, Cout), out_dtype),
        grid=(N, H // th),
        in_specs=[
            # Whole padded image per batch; block index ignores the row-tile axis so it is
            # DMA'd once per batch and revisited across row tiles (no 9x im2col in HBM).
            pl.BlockSpec((1, H + 2, W + 2, Cin), lambda b, r: (b, 0, 0, 0)),
            pl.BlockSpec((9 * Cin, Cout), lambda b, r: (0, 0)),
            pl.BlockSpec((1, Cout), lambda b, r: (0, 0)),
            pl.BlockSpec((1, Cout), lambda b, r: (0, 0)),
        ],
        out_specs=pl.BlockSpec((1, th * W, Cout), lambda b, r: (b, r, 0)),
        scratch_shapes=[pltpu.VMEM((th, W, 9 * Cin), jnp.bfloat16)],
        compiler_params=pltpu.CompilerParams(
            dimension_semantics=("parallel", "parallel")),
    )(xp, w9, scale, bias)
    return out.reshape(N, H, W, Cout)


# ---------------------------------------------------------------------------
# MaxPool2d(2, 2) kernel (no window gather in HBM)
# ---------------------------------------------------------------------------
def _maxpool_kernel(x_ref, o_ref):
    # x_ref: (1, 2*tp, W2, 2*C)  - even/odd columns of the same 2x2 window share a lane slab
    # o_ref: (1, tp,   W2,   C)
    tp, w2, c = o_ref.shape[1], o_ref.shape[2], o_ref.shape[3]
    v = x_ref[0].reshape(tp, 2, w2, 2 * c)      # split row pairs (major dims only: free)
    v = jnp.max(v, axis=1)                      # pool along H
    m = jnp.maximum(v[:, :, :c], v[:, :, c:])   # pool along W via lane halves
    o_ref[0] = m.astype(o_ref.dtype)


def maxpool2x2(x_nhwc, out_dtype=jnp.float32):
    N, H, W, C = x_nhwc.shape
    assert H % 2 == 0 and W % 2 == 0
    H2, W2 = H // 2, W // 2
    # Free reinterpretation of the contiguous NHWC buffer: fold the column pair into lanes.
    xr = x_nhwc.reshape(N, H, W2, 2 * C)
    tp = _pick_row_tile(H2, W2 * 2)
    return pl.pallas_call(
        _maxpool_kernel,
        out_shape=jax.ShapeDtypeStruct((N, H2, W2, C), out_dtype),
        grid=(N, H2 // tp),
        in_specs=[pl.BlockSpec((1, 2 * tp, W2, 2 * C), lambda b, r: (b, r, 0, 0))],
        out_specs=pl.BlockSpec((1, tp, W2, C), lambda b, r: (b, r, 0, 0)),
        compiler_params=pltpu.CompilerParams(
            dimension_semantics=("parallel", "parallel")),
    )(xr)


# ---------------------------------------------------------------------------
# EncoderNBlocks forward (NCHW in / NCHW out, like PyTorch)
# ---------------------------------------------------------------------------
def encoder_nblocks_forward(x_nchw, params):
    x = jnp.transpose(x_nchw, (0, 2, 3, 1))      # NCHW -> NHWC
    for (w, scale, bias) in params:
        x = conv_bn_lrelu(x, w, scale, bias)     # bf16 NHWC activations between layers
    x = maxpool2x2(x)                            # f32 NHWC
    return jnp.transpose(x, (0, 3, 1, 2))        # NHWC -> NCHW


# ---------------------------------------------------------------------------
# Deterministic parameter initialization (synthetic, no checkpoint loading)
# ---------------------------------------------------------------------------
def init_params(key, in_channels, out_channels, num_layers):
    params = []
    cin = in_channels
    for _ in range(num_layers):
        key, kw, kg, kb, km, kv = jax.random.split(key, 6)
        fan_in = cin * 9
        w = jax.random.normal(kw, (3, 3, cin, out_channels), jnp.float32) / np.sqrt(fan_in)
        gamma = 1.0 + 0.1 * jax.random.normal(kg, (out_channels,), jnp.float32)
        beta = 0.1 * jax.random.normal(kb, (out_channels,), jnp.float32)
        rmean = 0.1 * jax.random.normal(km, (out_channels,), jnp.float32)
        rvar = jnp.abs(jax.random.normal(kv, (out_channels,), jnp.float32)) + 0.5
        scale = gamma / jnp.sqrt(rvar + BN_EPS)
        bias = beta - rmean * scale
        params.append((w, scale.reshape(1, -1), bias.reshape(1, -1)))
        cin = out_channels
    return params


# ---------------------------------------------------------------------------
# Plain-JAX reference (mirrors the kernel's bf16 operand / f32 accumulate precision)
# ---------------------------------------------------------------------------
def reference_forward(x_nchw, params):
    x = jnp.transpose(x_nchw, (0, 2, 3, 1))
    for (w, scale, bias) in params:
        y = jax.lax.conv_general_dilated(
            x.astype(jnp.bfloat16), w.astype(jnp.bfloat16),
            window_strides=(1, 1), padding="SAME",
            dimension_numbers=("NHWC", "HWIO", "NHWC"),
            preferred_element_type=jnp.float32)
        y = y * scale.reshape(1, 1, 1, -1) + bias.reshape(1, 1, 1, -1)
        y = jnp.maximum(y, LEAKY_SLOPE * y)
        x = y.astype(jnp.bfloat16)
    x = x.astype(jnp.float32)
    x = jax.lax.reduce_window(x, -jnp.inf, jax.lax.max,
                              (1, 2, 2, 1), (1, 2, 2, 1), "VALID")
    return jnp.transpose(x, (0, 3, 1, 2))


if __name__ == "__main__":
    key = jax.random.PRNGKey(0)
    kx, kp = jax.random.split(key)

    N, Cin, H, W = 2, 4, 16, 16          # small NCHW input, PyTorch convention
    Cout, num_layers = 8, 2

    x = jax.random.normal(kx, (N, Cin, H, W), jnp.float32)
    params = init_params(kp, Cin, Cout, num_layers)

    out = jax.block_until_ready(encoder_nblocks_forward(x, params))
    ref = jax.block_until_ready(reference_forward(x, params))

    np.testing.assert_allclose(np.asarray(out), np.asarray(ref), rtol=1e-2, atol=1e-2)
    assert out.shape == (N, Cout, H // 2, W // 2)

    print("KERNEL_OK")
</pallas_src>

<mosaic_0001>
module attributes {stable_mosaic.version = 11 : i64} {
  func.func @kernel(%arg0: i32, %arg1: i32, %arg2: memref<1x18x18x4xbf16, #tpu.memory_space<vmem>>, %arg3: memref<36x8xbf16, #tpu.memory_space<vmem>>, %arg4: memref<1x8xf32, #tpu.memory_space<vmem>>, %arg5: memref<1x8xf32, #tpu.memory_space<vmem>>, %arg6: memref<1x256x8xbf16, #tpu.memory_space<vmem>>, %arg7: memref<16x16x36xbf16, #tpu.memory_space<vmem>>) attributes {dimension_semantics = [#tpu.dimension_semantics<parallel>, #tpu.dimension_semantics<parallel>], iteration_bounds = array<i64: 2, 1>, scalar_prefetch = 0 : i64, scratch_operands = 1 : i64, tpu.core_type = #tpu.core_type<tc>, window_params = [{transform_indices = @transform_0, window_bounds = array<i64: 1, 18, 18, 4>}, {pipeline_mode = #tpu.pipeline_mode<synchronous>, transform_indices = @transform_1, window_bounds = array<i64: 36, 8>}, {pipeline_mode = #tpu.pipeline_mode<synchronous>, transform_indices = @transform_2, window_bounds = array<i64: 1, 8>}, {pipeline_mode = #tpu.pipeline_mode<synchronous>, transform_indices = @transform_3, window_bounds = array<i64: 1, 8>}, {transform_indices = @transform_4, window_bounds = array<i64: 1, 256, 8>}]} {
    %c16_i32 = arith.constant 16 : i32
    %0 = arith.muli %arg1, %c16_i32 : i32
    %c0_i32 = arith.constant 0 : i32
    %1 = arith.addi %0, %c0_i32 : i32
    %c0 = arith.constant 0 : index
    %2 = arith.index_cast %1 : i32 to index
    %c0_0 = arith.constant 0 : index
    %c0_1 = arith.constant 0 : index
    %3 = vector.load %arg2[%c0, %2, %c0_0, %c0_1] : memref<1x18x18x4xbf16, #tpu.memory_space<vmem>>, vector<1x16x16x4xbf16>
    %4 = vector.shape_cast %3 : vector<1x16x16x4xbf16> to vector<16x16x4xbf16>
    %c0_2 = arith.constant 0 : index
    %c0_3 = arith.constant 0 : index
    %c0_4 = arith.constant 0 : index
    %5 = vector.load %arg7[%c0_2, %c0_3, %c0_4] : memref<16x16x36xbf16, #tpu.memory_space<vmem>>, vector<16x16x4xbf16>
    tpu.vector_store %arg7[%c0_2, %c0_3, %c0_4], %4 {strides = array<i32>} : memref<16x16x36xbf16, #tpu.memory_space<vmem>>, vector<16x16x4xbf16>,
    %c0_i32_5 = arith.constant 0 : i32
    %6 = arith.addi %0, %c0_i32_5 : i32
    %c0_6 = arith.constant 0 : index
    %7 = arith.index_cast %6 : i32 to index
    %c1 = arith.constant 1 : index
    %c0_7 = arith.constant 0 : index
    %8 = vector.load %arg2[%c0_6, %7, %c1, %c0_7] : memref<1x18x18x4xbf16, #tpu.memory_space<vmem>>, vector<1x16x16x4xbf16>
    %9 = vector.shape_cast %8 : vector<1x16x16x4xbf16> to vector<16x16x4xbf16>
    %c0_8 = arith.constant 0 : index
    %c0_9 = arith.constant 0 : index
    %c4 = arith.constant 4 : index
    %10 = vector.load %arg7[%c0_8, %c0_9, %c4] : memref<16x16x36xbf16, #tpu.memory_space<vmem>>, vector<16x16x4xbf16>
    tpu.vector_store %arg7[%c0_8, %c0_9, %c4], %9 {strides = array<i32>} : memref<16x16x36xbf16, #tpu.memory_space<vmem>>, vector<16x16x4xbf16>,
    %c0_i32_10 = arith.constant 0 : i32
    %11 = arith.addi %0, %c0_i32_10 : i32
    %c0_11 = arith.constant 0 : index
    %12 = arith.index_cast %11 : i32 to index
    %c2 = arith.constant 2 : index
    %c0_12 = arith.constant 0 : index
    %13 = vector.load %arg2[%c0_11, %12, %c2, %c0_12] : memref<1x18x18x4xbf16, #tpu.memory_space<vmem>>, vector<1x16x16x4xbf16>
    %14 = vector.shape_cast %13 : vector<1x16x16x4xbf16> to vector<16x16x4xbf16>
    %c0_13 = arith.constant 0 : index
    %c0_14 = arith.constant 0 : index
    %c8 = arith.constant 8 : index
    %15 = vector.load %arg7[%c0_13, %c0_14, %c8] : memref<16x16x36xbf16, #tpu.memory_space<vmem>>, vector<16x16x4xbf16>
    tpu.vector_store %arg7[%c0_13, %c0_14, %c8], %14 {strides = array<i32>} : memref<16x16x36xbf16, #tpu.memory_space<vmem>>, vector<16x16x4xbf16>,
    %c1_i32 = arith.constant 1 : i32
    %16 = arith.addi %0, %c1_i32 : i32
    %c0_15 = arith.constant 0 : index
    %17 = arith.index_cast %16 : i32 to index
    %c0_16 = arith.constant 0 : index
    %c0_17 = arith.constant 0 : index
    %18 = vector.load %arg2[%c0_15, %17, %c0_16, %c0_17] : memref<1x18x18x4xbf16, #tpu.memory_space<vmem>>, vector<1x16x16x4xbf16>
    %19 = vector.shape_cast %18 : vector<1x16x16x4xbf16> to vector<16x16x4xbf16>
    %c0_18 = arith.constant 0 : index
    %c0_19 = arith.constant 0 : index
    %c12 = arith.constant 12 : index
    %20 = vector.load %arg7[%c0_18, %c0_19, %c12] : memref<16x16x36xbf16, #tpu.memory_space<vmem>>, vector<16x16x4xbf16>
    tpu.vector_store %arg7[%c0_18, %c0_19, %c12], %19 {strides = array<i32>} : memref<16x16x36xbf16, #tpu.memory_space<vmem>>, vector<16x16x4xbf16>,
    %c1_i32_20 = arith.constant 1 : i32
    %21 = arith.addi %0, %c1_i32_20 : i32
    %c0_21 = arith.constant 0 : index
    %22 = arith.index_cast %21 : i32 to index
    %c1_22 = arith.constant 1 : index
    %c0_23 = arith.constant 0 : index
    %23 = vector.load %arg2[%c0_21, %22, %c1_22, %c0_23] : memref<1x18x18x4xbf16, #tpu.memory_space<vmem>>, vector<1x16x16x4xbf16>
    %24 = vector.shape_cast %23 : vector<1x16x16x4xbf16> to vector<16x16x4xbf16>
    %c0_24 = arith.constant 0 : index
    %c0_25 = arith.constant 0 : index
    %c16 = arith.constant 16 : index
    %25 = vector.load %arg7[%c0_24, %c0_25, %c16] : memref<16x16x36xbf16, #tpu.memory_space<vmem>>, vector<16x16x4xbf16>
    tpu.vector_store %arg7[%c0_24, %c0_25, %c16], %24 {strides = array<i32>} : memref<16x16x36xbf16, #tpu.memory_space<vmem>>, vector<16x16x4xbf16>,
    %c1_i32_26 = arith.constant 1 : i32
    %26 = arith.addi %0, %c1_i32_26 : i32
    %c0_27 = arith.constant 0 : index
    %27 = arith.index_cast %26 : i32 to index
    %c2_28 = arith.constant 2 : index
    %c0_29 = arith.constant 0 : index
    %28 = vector.load %arg2[%c0_27, %27, %c2_28, %c0_29] : memref<1x18x18x4xbf16, #tpu.memory_space<vmem>>, vector<1x16x16x4xbf16>
    %29 = vector.shape_cast %28 : vector<1x16x16x4xbf16> to vector<16x16x4xbf16>
    %c0_30 = arith.constant 0 : index
    %c0_31 = arith.constant 0 : index
    %c20 = arith.constant 20 : index
    %30 = vector.load %arg7[%c0_30, %c0_31, %c20] : memref<16x16x36xbf16, #tpu.memory_space<vmem>>, vector<16x16x4xbf16>
    tpu.vector_store %arg7[%c0_30, %c0_31, %c20], %29 {strides = array<i32>} : memref<16x16x36xbf16, #tpu.memory_space<vmem>>, vector<16x16x4xbf16>,
    %c2_i32 = arith.constant 2 : i32
    %31 = arith.addi %0, %c2_i32 : i32
    %c0_32 = arith.constant 0 : index
    %32 = arith.index_cast %31 : i32 to index
    %c0_33 = arith.constant 0 : index
    %c0_34 = arith.constant 0 : index
    %33 = vector.load %arg2[%c0_32, %32, %c0_33, %c0_34] : memref<1x18x18x4xbf16, #tpu.memory_space<vmem>>, vector<1x16x16x4xbf16>
    %34 = vector.shape_cast %33 : vector<1x16x16x4xbf16> to vector<16x16x4xbf16>
    %c0_35 = arith.constant 0 : index
    %c0_36 = arith.constant 0 : index
    %c24 = arith.constant 24 : index
    %35 = vector.load %arg7[%c0_35, %c0_36, %c24] : memref<16x16x36xbf16, #tpu.memory_space<vmem>>, vector<16x16x4xbf16>
    tpu.vector_store %arg7[%c0_35, %c0_36, %c24], %34 {strides = array<i32>} : memref<16x16x36xbf16, #tpu.memory_space<vmem>>, vector<16x16x4xbf16>,
    %c2_i32_37 = arith.constant 2 : i32
    %36 = arith.addi %0, %c2_i32_37 : i32
    %c0_38 = arith.constant 0 : index
    %37 = arith.index_cast %36 : i32 to index
    %c1_39 = arith.constant 1 : index
    %c0_40 = arith.constant 0 : index
    %38 = vector.load %arg2[%c0_38, %37, %c1_39, %c0_40] : memref<1x18x18x4xbf16, #tpu.memory_space<vmem>>, vector<1x16x16x4xbf16>
    %39 = vector.shape_cast %38 : vector<1x16x16x4xbf16> to vector<16x16x4xbf16>
    %c0_41 = arith.constant 0 : index
    %c0_42 = arith.constant 0 : index
    %c28 = arith.constant 28 : index
    %40 = vector.load %arg7[%c0_41, %c0_42, %c28] : memref<16x16x36xbf16, #tpu.memory_space<vmem>>, vector<16x16x4xbf16>
    tpu.vector_store %arg7[%c0_41, %c0_42, %c28], %39 {strides = array<i32>} : memref<16x16x36xbf16, #tpu.memory_space<vmem>>, vector<16x16x4xbf16>,
    %c2_i32_43 = arith.constant 2 : i32
    %41 = arith.addi %0, %c2_i32_43 : i32
    %c0_44 = arith.constant 0 : index
    %42 = arith.index_cast %41 : i32 to index
    %c2_45 = arith.constant 2 : index
    %c0_46 = arith.constant 0 : index
    %43 = vector.load %arg2[%c0_44, %42, %c2_45, %c0_46] : memref<1x18x18x4xbf16, #tpu.memory_space<vmem>>, vector<1x16x16x4xbf16>
    %44 = vector.shape_cast %43 : vector<1x16x16x4xbf16> to vector<16x16x4xbf16>
    %c0_47 = arith.constant 0 : index
    %c0_48 = arith.constant 0 : index
    %c32 = arith.constant 32 : index
    %45 = vector.load %arg7[%c0_47, %c0_48, %c32] : memref<16x16x36xbf16, #tpu.memory_space<vmem>>, vector<16x16x4xbf16>
    tpu.vector_store %arg7[%c0_47, %c0_48, %c32], %44 {strides = array<i32>} : memref<16x16x36xbf16, #tpu.memory_space<vmem>>, vector<16x16x4xbf16>,
    %c0_49 = arith.constant 0 : index
    %c0_50 = arith.constant 0 : index
    %c0_51 = arith.constant 0 : index
    %46 = vector.load %arg7[%c0_49, %c0_50, %c0_51] : memref<16x16x36xbf16, #tpu.memory_space<vmem>>, vector<16x16x36xbf16>
    %47 = vector.shape_cast %46 : vector<16x16x36xbf16> to vector<256x36xbf16>
    %c0_52 = arith.constant 0 : index
    %c0_53 = arith.constant 0 : index
    %48 = vector.load %arg3[%c0_52, %c0_53] : memref<36x8xbf16, #tpu.memory_space<vmem>>, vector<36x8xbf16>
    %cst = arith.constant dense<0.000000e+00> : vector<256x8xf32>
    %49 = tpu.matmul %47, %48, %cst {dimension_numbers = #tpu.dot_dimension_numbers<[1], [0], [0], [1], [0, 0, 1, 1], [], []>} : vector<256x36xbf16>, vector<36x8xbf16>, vector<256x8xf32> -> vector<256x8xf32>
    %c0_54 = arith.constant 0 : index
    %c0_55 = arith.constant 0 : index
    %50 = vector.load %arg4[%c0_54, %c0_55] : memref<1x8xf32, #tpu.memory_space<vmem>>, vector<1x8xf32>
    %51 = vector.broadcast %50 : vector<1x8xf32> to vector<256x8xf32>
    %52 = arith.mulf %49, %51 : vector<256x8xf32>
    %c0_56 = arith.constant 0 : index
    %c0_57 = arith.constant 0 : index
    %53 = vector.load %arg5[%c0_56, %c0_57] : memref<1x8xf32, #tpu.memory_space<vmem>>, vector<1x8xf32>
    %54 = vector.broadcast %53 : vector<1x8xf32> to vector<256x8xf32>
    %55 = arith.addf %52, %54 : vector<256x8xf32>
    %cst_58 = arith.constant 1.000000e-01 : f32
    %56 = vector.broadcast %cst_58 : f32 to vector<256x8xf32>
    %57 = arith.mulf %56, %55 : vector<256x8xf32>
    %58 = arith.maximumf %55, %57 : vector<256x8xf32>
    %59 = arith.truncf %58 : vector<256x8xf32> to vector<256x8xbf16>
    %c0_59 = arith.constant 0 : index
    %c0_60 = arith.constant 0 : index
    %c0_61 = arith.constant 0 : index
    %60 = vector.load %arg6[%c0_59, %c0_60, %c0_61] : memref<1x256x8xbf16, #tpu.memory_space<vmem>>, vector<1x256x8xbf16>
    %61 = vector.shape_cast %60 : vector<1x256x8xbf16> to vector<256x8xbf16>
    %62 = vector.shape_cast %59 : vector<256x8xbf16> to vector<1x256x8xbf16>
    tpu.vector_store %arg6[%c0_59, %c0_60, %c0_61], %62 {strides = array<i32>} : memref<1x256x8xbf16, #tpu.memory_space<vmem>>, vector<1x256x8xbf16>,
    return
  }
  func.func @transform_0(%arg0: i32, %arg1: i32) -> (i32, i32, i32, i32) {
    %c0_i32 = arith.constant 0 : i32
    %c0_i32_0 = arith.constant 0 : i32
    %c0_i32_1 = arith.constant 0 : i32
    %c0_i32_2 = arith.constant 0 : i32
    return %arg0, %c0_i32, %c0_i32_0, %c0_i32_1 : i32, i32, i32, i32
  }
  func.func @transform_1(%arg0: i32, %arg1: i32) -> (i32, i32) {
    %c0_i32 = arith.constant 0 : i32
    %c0_i32_0 = arith.constant 0 : i32
    %c0_i32_1 = arith.constant 0 : i32
    return %c0_i32, %c0_i32_0 : i32, i32
  }
  func.func @transform_2(%arg0: i32, %arg1: i32) -> (i32, i32) {
    %c0_i32 = arith.constant 0 : i32
    %c0_i32_0 = arith.constant 0 : i32
    %c0_i32_1 = arith.constant 0 : i32
    return %c0_i32, %c0_i32_0 : i32, i32
  }
  func.func @transform_3(%arg0: i32, %arg1: i32) -> (i32, i32) {
    %c0_i32 = arith.constant 0 : i32
    %c0_i32_0 = arith.constant 0 : i32
    %c0_i32_1 = arith.constant 0 : i32
    return %c0_i32, %c0_i32_0 : i32, i32
  }
  func.func @transform_4(%arg0: i32, %arg1: i32) -> (i32, i32, i32) {
    %c0_i32 = arith.constant 0 : i32
    %c0_i32_0 = arith.constant 0 : i32
    return %arg0, %arg1, %c0_i32 : i32, i32, i32
  }
}

</mosaic_0001>

<llo_original>
// kernel: tpu_custom_call.1
$region0: #{tpu_custom_call.1}
  #allocation0 [shape = 'u32[]', space=smem, size = 0x4, offset = 0x4, fixed_abs, tag = 'smem constant byte address 0x4 - core index']
  #allocation1 [shape = 'u32[72,128]{1,0:T(1,128)}', space=vmem, size = 0x9000, scoped, tag = 'internal scratch']
  #allocation2 [shape = 'bf16[16,16,36]{2,1,0:T(8,128)(2,1)}', space=vmem, size = 0x10000, scoped, tag = 'scratch operand']
  %s0 = inlined_call_operand.vmem [shape: bf16[2,18,18,4], index: 0, kind: input, shape index: {}]
  %s1 = inlined_call_operand.vmem [shape: bf16[36,8], index: 1, kind: input, shape index: {}]
  %s2 = inlined_call_operand.vmem [shape: f32[1,8], index: 2, kind: input, shape index: {}]
  %s3 = inlined_call_operand.vmem [shape: f32[1,8], index: 3, kind: input, shape index: {}]
  %s4 = inlined_call_operand.vmem [shape: bf16[2,256,8], index: 4, kind: output, shape index: {}]
  %s5 = sld [smem:[#allocation0]]
  $region49: #{tpu_custom_call.1} parent=0
    _
  %s7 = ssub.s32 1, %s5
  %s8 = scalar_select 0, %s7, %s5
  loop: start=0, step=1, limit=4
  $region2: #{tpu_custom_call.1} parent=0 // loop_pre_header
    _
  $region3: #{tpu_custom_call.1} parent=0 // loop_header
    %s10 = sphi 0, %s14
    %p11 = scmp.ge.s32.totalorder %s10, 4
    %s17 = sphi 0, %s29
    %s18 = sphi 0, %s25
    %s19 = sphi 0, %s17
    %s20 = sphi 0, %s18
    %s21 = sphi 0, %s19
    %s22 = sphi 0, %s20
    %s32 = sphi 0, %s34
    %s35 = sphi 0, %s32
    %s36 = sphi 0, %s35
    %s52 = sphi 0, %s36
    %s56 = sphi 0, %s56
    %s58 = sphi 0, %s56
    %s59 = sphi 0, %s58
    %s73 = sphi 0, %s59
    %s77 = sphi 0, %s77
    %s79 = sphi 0, %s77
    %s80 = sphi 0, %s79
    %s94 = sphi 0, %s80
    %s98 = sphi 0, %s98
    %s100 = sphi 0, %s98
    %s101 = sphi 0, %s100
    %s115 = sphi 0, %s101
    %s123 = sphi 0, %s125
    %s126 = sphi 0, %s123
    %s127 = sphi 0, %s126
    %s143 = sphi 0, %s127
  $region4: #{tpu_custom_call.1} parent=0 // loop_header_branch
    %13 = sbr.rel (%p11) target = $region8
  $region5: #{tpu_custom_call.1} parent=0 // loop_body
    %s15 = ssub.s32 %s10, 1
    %s16 = ssub.s32 %s10, 2
    %s23 = sadd.s32 1, %s18
    %p24 = scmp.ge.s32.totalorder %s23, 1
    %s25 = scalar_select %p24, 0, %s23
    %s26 = sadd.s32 1, %s17
    %s27 = scalar_select %p24, %s26, %s17
    %p28 = scmp.ge.s32.totalorder %s27, 2
    %s29 = scalar_select %p28, 0, %s27
    %s30 = ssub.s32 %s17, %s29
    %p31 = scmp.eq.s32.totalorder %s30, 0
    %s33 = sadd.s32 %s32, 1
    %s34 = scalar_select %p31, %s32, %s33
    %p37 = pneg %p31
    %p38 = scmp.eq.s32.totalorder %s10, 1
    %p39 = por %p37, %p38
    %p40 = scmp.ne.s32.totalorder %s32, %s35
    %p41 = scmp.eq.s32.totalorder %s10, 0
    %p42 = por %p40, %p41
    %p43 = scmp.ne.s32.totalorder %s32, %s35
    %p44 = scmp.eq.s32.totalorder %s15, 1
    %p45 = por %p43, %p44
    %p46 = scmp.ne.s32.totalorder %s35, %s36
    %p47 = scmp.eq.s32.totalorder %s15, 0
    %p48 = por %p46, %p47
    %p49 = scmp.ne.s32.totalorder %s35, %s36
    %p50 = scmp.eq.s32.totalorder %s16, 1
    %p51 = por %p49, %p50
    %p53 = scmp.ne.s32.totalorder %s36, %s52
    %p54 = scmp.eq.s32.totalorder %s16, 0
    %p55 = por %p53, %p54
    %s57 = sadd.s32 %s56, 1
    %p60 = scmp.eq.s32.totalorder %s10, 1
    %p61 = scmp.ne.s32.totalorder %s56, %s58
    %p62 = scmp.eq.s32.totalorder %s10, 0
    %p63 = por %p61, %p62
    %p64 = scmp.ne.s32.totalorder %s56, %s58
    %p65 = scmp.eq.s32.totalorder %s15, 1
    %p66 = por %p64, %p65
    %p67 = scmp.ne.s32.totalorder %s58, %s59
    %p68 = scmp.eq.s32.totalorder %s15, 0
    %p69 = por %p67, %p68
    %p70 = scmp.ne.s32.totalorder %s58, %s59
    %p71 = scmp.eq.s32.totalorder %s16, 1
    %p72 = por %p70, %p71
    %p74 = scmp.ne.s32.totalorder %s59, %s73
    %p75 = scmp.eq.s32.totalorder %s16, 0
    %p76 = por %p74, %p75
    %s78 = sadd.s32 %s77, 1
    %p81 = scmp.eq.s32.totalorder %s10, 1
    %p82 = scmp.ne.s32.totalorder %s77, %s79
    %p83 = scmp.eq.s32.totalorder %s10, 0
    %p84 = por %p82, %p83
    %p85 = scmp.ne.s32.totalorder %s77, %s79
    %p86 = scmp.eq.s32.totalorder %s15, 1
    %p87 = por %p85, %p86
    %p88 = scmp.ne.s32.totalorder %s79, %s80
    %p89 = scmp.eq.s32.totalorder %s15, 0
    %p90 = por %p88, %p89
    %p91 = scmp.ne.s32.totalorder %s79, %s80
    %p92 = scmp.eq.s32.totalorder %s16, 1
    %p93 = por %p91, %p92
    %p95 = scmp.ne.s32.totalorder %s80, %s94
    %p96 = scmp.eq.s32.totalorder %s16, 0
    %p97 = por %p95, %p96
    %s99 = sadd.s32 %s98, 1
    %p102 = scmp.eq.s32.totalorder %s10, 1
    %p103 = scmp.ne.s32.totalorder %s98, %s100
    %p104 = scmp.eq.s32.totalorder %s10, 0
    %p105 = por %p103, %p104
    %p106 = scmp.ne.s32.totalorder %s98, %s100
    %p107 = scmp.eq.s32.totalorder %s15, 1
    %p108 = por %p106, %p107
    %p109 = scmp.ne.s32.totalorder %s100, %s101
    %p110 = scmp.eq.s32.totalorder %s15, 0
    %p111 = por %p109, %p110
    %p112 = scmp.ne.s32.totalorder %s100, %s101
    %p113 = scmp.eq.s32.totalorder %s16, 1
    %p114 = por %p112, %p113
    %p116 = scmp.ne.s32.totalorder %s101, %s115
    %p117 = scmp.eq.s32.totalorder %s16, 0
    %p118 = por %p116, %p117
    %s119 = ssub.s32 %s17, %s29
    %s120 = ssub.s32 %s18, %s25
    %s121 = sor.u32 %s119, %s120
    %p122 = scmp.eq.s32.totalorder %s121, 0
    %s124 = sadd.s32 %s123, 1
    %s125 = scalar_select %p122, %s123, %s124
    %p128 = pneg %p122
    %p129 = scmp.eq.s32.totalorder %s10, 1
    %p130 = por %p128, %p129
    %p131 = scmp.ne.s32.totalorder %s123, %s126
    %p132 = scmp.eq.s32.totalorder %s10, 0
    %p133 = por %p131, %p132
    %p134 = scmp.ne.s32.totalorder %s123, %s126
    %p135 = scmp.eq.s32.totalorder %s15, 1
    %p136 = por %p134, %p135
    %p137 = scmp.ne.s32.totalorder %s126, %s127
    %p138 = scmp.eq.s32.totalorder %s15, 0
    %p139 = por %p137, %p138
    %p140 = scmp.ne.s32.totalorder %s126, %s127
    %p141 = scmp.eq.s32.totalorder %s16, 1
    %p142 = por %p140, %p141
    %p144 = scmp.ne.s32.totalorder %s127, %s143
    %p145 = scmp.eq.s32.totalorder %s16, 0
    %p146 = por %p144, %p145
    %p147 = scmp.le.s32.totalorder 1, %s10
    %p148 = scmp.lt.s32.totalorder %s10, 3
    %p149 = pnand %p147, %p148
    %p150 = pneg %p149
    // Predicated region
    $region9: #{tpu_custom_call.1} parent=5 // pred_check
      _
    $region10: #{tpu_custom_call.1} parent=5 // pred_check_branch
      %152 = sbr.rel (%p149) target = $region12
    $region11: #{tpu_custom_call.1} parent=5 // pred_region
      %s153 = ssub.s32 %s10, 1
      // Predicated region
      $region13: #{tpu_custom_call.1} parent=11 // pred_check
        %p154 = pneg %p69
      $region14: #{tpu_custom_call.1} parent=11 // pred_check_branch
        %156 = sbr.rel (%p154) target = $region16
      $region15: #{tpu_custom_call.1} parent=11 // pred_region
        _
      $region16: #{tpu_custom_call.1} parent=11 // pred_fallthru
        _
      // Predicated region
      $region17: #{tpu_custom_call.1} parent=11 // pred_check
        %p157 = pneg %p90
      $region18: #{tpu_custom_call.1} parent=11 // pred_check_branch
        %159 = sbr.rel (%p157) target = $region20
      $region19: #{tpu_custom_call.1} parent=11 // pred_region
        _
      $region20: #{tpu_custom_call.1} parent=11 // pred_fallthru
        _
      // Predicated region
      $region21: #{tpu_custom_call.1} parent=11 // pred_check
        %p160 = pneg %p111
      $region22: #{tpu_custom_call.1} parent=11 // pred_check_branch
        %162 = sbr.rel (%p160) target = $region24
      $region23: #{tpu_custom_call.1} parent=11 // pred_region
        _
      $region24: #{tpu_custom_call.1} parent=11 // pred_fallthru
        _
    $region12: #{tpu_custom_call.1} parent=5 // pred_fallthru
      _
    %p163 = scmp.lt.s32.totalorder %s10, 2
    // Predicated region
    $region25: #{tpu_custom_call.1} parent=5 // pred_check
      %p164 = pneg %p163
    $region26: #{tpu_custom_call.1} parent=5 // pred_check_branch
      %166 = sbr.rel (%p164) target = $region28
    $region27: #{tpu_custom_call.1} parent=5 // pred_region
      // Predicated region
      $region29: #{tpu_custom_call.1} parent=27 // pred_check
        %p167 = pneg %p42
      $region30: #{tpu_custom_call.1} parent=27 // pred_check_branch
        %169 = sbr.rel (%p167) target = $region32
      $region31: #{tpu_custom_call.1} parent=27 // pred_region
        %p170 = scmp.lt.s32.totalorder %s17, 1
        %s171 = scalar_select %p170, %s17, 1
        %s172 = smul.addr %s171, 54
        %s173 = smul.addr %s172, 4
        %s174 = scalar_lea.vmem %s0, %s173
      $region32: #{tpu_custom_call.1} parent=27 // pred_fallthru
        _
    $region28: #{tpu_custom_call.1} parent=5 // pred_fallthru
      _
    %p175 = scmp.le.s32.totalorder 1, %s10
    %p176 = scmp.lt.s32.totalorder %s10, 3
    %p177 = pnand %p175, %p176
    %p178 = pneg %p177
    // Predicated region
    $region33: #{tpu_custom_call.1} parent=5 // pred_check
      _
    $region34: #{tpu_custom_call.1} parent=5 // pred_check_branch
      %180 = sbr.rel (%p177) target = $region36
    $region35: #{tpu_custom_call.1} parent=5 // pred_region
      %s181 = ssub.s32 %s10, 1
      %p182 = scmp.lt.s32.totalorder %s19, 1
      %s183 = scalar_select %p182, %s19, 1
      %s184 = smul.addr %s183, 54
      %s185 = smul.addr %s184, 4
      %s186 = scalar_lea.vmem %s0, %s185
      %p187 = pneg %p48
      %p188 = pneg %p45
      %p189 = pneg %p69
      %p190 = pneg %p66
      %p191 = pneg %p90
      %p192 = pneg %p87
      %p193 = pneg %p111
      %p194 = pneg %p108
      %p195 = pneg %p139
      %p196 = pneg %p136
      %s197 = smul.u32 32, %s20
      %p198 = scmp.lt.s32.totalorder %s19, 1
      %s199 = scalar_select %p198, %s19, 1
      %p200 = scmp.lt.s32.totalorder %s197, 31
      %s201 = scalar_select %p200, %s197, 31
      %s202 = smul.addr %s199, 32
      %s203 = sadd.s32 %s201, %s202
      %s204 = smul.addr %s203, 4
      %s205 = scalar_lea.vmem %s4, %s204
      %p206 = scmp.lt.s32.totalorder %s19, 1
      %s207 = scalar_select %p206, %s19, 1
      %s208 = smul.addr %s207, 54
      %s209 = smul.addr %s208, 4
      %s210 = scalar_lea.vmem %s0, %s209
      %s211 = smul.u32 32, %s20
      %p212 = scmp.lt.s32.totalorder %s19, 1
      %s213 = scalar_select %p212, %s19, 1
      %p214 = scmp.lt.s32.totalorder %s211, 31
      %s215 = scalar_select %p214, %s211, 31
      %s216 = smul.addr %s213, 32
      %s217 = sadd.s32 %s215, %s216
      %s218 = smul.addr %s217, 4
      %s219 = scalar_lea.vmem %s4, %s218
      %s220 = smul.u32 32, %s20
      %s222 = smul.u32 %s20, 16
      %s223 = smul.u32 %s222, 3
      %s224 = smul.addr %s223, 4
      %s225 = scalar_lea.vmem %s210, %s224
      %v226 = vld [vmem:[%s225] sm:$0xf]
      %v227 = vld [vmem:[%s225 + $0x4] sm:$0xf]
      %v228 = vld [vmem:[%s225 + $0xc] sm:$0xf]
      %v229 = vld [vmem:[%s225 + $0x10] sm:$0xf]
      %v230 = vld [vmem:[%s225 + $0x18] sm:$0xf]
      %v231 = vld [vmem:[%s225 + $0x1c] sm:$0xf]
      %v232 = vld [vmem:[%s225 + $0x24] sm:$0xf]
      %v233 = vld [vmem:[%s225 + $0x28] sm:$0xf]
      %v234 = vld [vmem:[%s225 + $0x30] sm:$0xf]
      %v235 = vld [vmem:[%s225 + $0x34] sm:$0xf]
      %v236 = vld [vmem:[%s225 + $0x3c] sm:$0xf]
      %v237 = vld [vmem:[%s225 + $0x40] sm:$0xf]
      %v238 = vld [vmem:[%s225 + $0x48] sm:$0xf]
      %v239 = vld [vmem:[%s225 + $0x4c] sm:$0xf]
      %v240 = vld [vmem:[%s225 + $0x54] sm:$0xf]
      %v241 = vld [vmem:[%s225 + $0x58] sm:$0xf]
      %v242 = vld [vmem:[%s225 + $0x60] sm:$0xf]
      %v243 = vld [vmem:[%s225 + $0x64] sm:$0xf]
      %v244 = vld [vmem:[%s225 + $0x6c] sm:$0xf]
      %v245 = vld [vmem:[%s225 + $0x70] sm:$0xf]
      %v246 = vld [vmem:[%s225 + $0x78] sm:$0xf]
      %v247 = vld [vmem:[%s225 + $0x7c] sm:$0xf]
      %v248 = vld [vmem:[%s225 + $0x84] sm:$0xf]
      %v249 = vld [vmem:[%s225 + $0x88] sm:$0xf]
      %v250 = vld [vmem:[%s225 + $0x90] sm:$0xf]
      %v251 = vld [vmem:[%s225 + $0x94] sm:$0xf]
      %v252 = vld [vmem:[%s225 + $0x9c] sm:$0xf]
      %v253 = vld [vmem:[%s225 + $0xa0] sm:$0xf]
      %v254 = vld [vmem:[%s225 + $0xa8] sm:$0xf]
      %v255 = vld [vmem:[%s225 + $0xac] sm:$0xf]
      %v256 = vld [vmem:[%s225 + $0xb4] sm:$0xf]
      %v257 = vld [vmem:[%s225 + $0xb8] sm:$0xf]
      %vm258 = vcmask 27648
      %259 = vst.msk [vmem:[#allocation2] sm:$0xf] %vm258, %v226
      %260 = vst.msk [vmem:[#allocation2 + $0x4] sm:$0xf] %vm258, %v227
      %261 = vst.msk [vmem:[#allocation2 + $0x8] sm:$0xf] %vm258, %v228
      %262 = vst.msk [vmem:[#allocation2 + $0xc] sm:$0xf] %vm258, %v229
      %263 = vst.msk [vmem:[#allocation2 + $0x10] sm:$0xf] %vm258, %v230
      %264 = vst.msk [vmem:[#allocation2 + $0x14] sm:$0xf] %vm258, %v231
      %265 = vst.msk [vmem:[#allocation2 + $0x18] sm:$0xf] %vm258, %v232
      %266 = vst.msk [vmem:[#allocation2 + $0x1c] sm:$0xf] %vm258, %v233
      %267 = vst.msk [vmem:[#allocation2 + $0x20] sm:$0xf] %vm258, %v234
      %268 = vst.msk [vmem:[#allocation2 + $0x24] sm:$0xf] %vm258, %v235
      %269 = vst.msk [vmem:[#allocation2 + $0x28] sm:$0xf] %vm258, %v236
      %270 = vst.msk [vmem:[#allocation2 + $0x2c] sm:$0xf] %vm258, %v237
      %271 = vst.msk [vmem:[#allocation2 + $0x30] sm:$0xf] %vm258, %v238
      %272 = vst.msk [vmem:[#allocation2 + $0x34] sm:$0xf] %vm258, %v239
      %273 = vst.msk [vmem:[#allocation2 + $0x38] sm:$0xf] %vm258, %v240
      %274 = vst.msk [vmem:[#allocation2 + $0x3c] sm:$0xf] %vm258, %v241
      %275 = vst.msk [vmem:[#allocation2 + $0x40] sm:$0xf] %vm258, %v242
      %276 = vst.msk [vmem:[#allocation2 + $0x44] sm:$0xf] %vm258, %v243
      %277 = vst.msk [vmem:[#allocation2 + $0x48] sm:$0xf] %vm258, %v244
      %278 = vst.msk [vmem:[#allocation2 + $0x4c] sm:$0xf] %vm258, %v245
      %279 = vst.msk [vmem:[#allocation2 + $0x50] sm:$0xf] %vm258, %v246
      %280 = vst.msk [vmem:[#allocation2 + $0x54] sm:$0xf] %vm258, %v247
      %281 = vst.msk [vmem:[#allocation2 + $0x58] sm:$0xf] %vm258, %v248
      %282 = vst.msk [vmem:[#allocation2 + $0x5c] sm:$0xf] %vm258, %v249
      %283 = vst.msk [vmem:[#allocation2 + $0x60] sm:$0xf] %vm258, %v250
      %284 = vst.msk [vmem:[#allocation2 + $0x64] sm:$0xf] %vm258, %v251
      %285 = vst.msk [vmem:[#allocation2 + $0x68] sm:$0xf] %vm258, %v252
      %286 = vst.msk [vmem:[#allocation2 + $0x6c] sm:$0xf] %vm258, %v253
      %287 = vst.msk [vmem:[#allocation2 + $0x70] sm:$0xf] %vm258, %v254
      %288 = vst.msk [vmem:[#allocation2 + $0x74] sm:$0xf] %vm258, %v255
      %289 = vst.msk [vmem:[#allocation2 + $0x78] sm:$0xf] %vm258, %v256
      %290 = vst.msk [vmem:[#allocation2 + $0x7c] sm:$0xf] %vm258, %v257
      %v291 = vld [vmem:[%s225] sm:$0xf]
      %v292 = vld [vmem:[%s225 + $0x4] sm:$0xf]
      %v293 = vld [vmem:[%s225 + $0x8] sm:$0x1]
      %v294 = vld [vmem:[%s225 + $0xc] sm:$0xf]
      %v295 = vld [vmem:[%s225 + $0x10] sm:$0xf]
      %v296 = vld [vmem:[%s225 + $0x14] sm:$0x1]
      %v297 = vld [vmem:[%s225 + $0x18] sm:$0xf]
      %v298 = vld [vmem:[%s225 + $0x1c] sm:$0xf]
      %v299 = vld [vmem:[%s225 + $0x20] sm:$0x1]
      %v300 = vld [vmem:[%s225 + $0x24] sm:$0xf]
      %v301 = vld [vmem:[%s225 + $0x28] sm:$0xf]
      %v302 = vld [vmem:[%s225 + $0x2c] sm:$0x1]
      %v303 = vld [vmem:[%s225 + $0x30] sm:$0xf]
      %v304 = vld [vmem:[%s225 + $0x34] sm:$0xf]
      %v305 = vld [vmem:[%s225 + $0x38] sm:$0x1]
      %v306 = vld [vmem:[%s225 + $0x3c] sm:$0xf]
      %v307 = vld [vmem:[%s225 + $0x40] sm:$0xf]
      %v308 = vld [vmem:[%s225 + $0x44] sm:$0x1]
      %v309 = vld [vmem:[%s225 + $0x48] sm:$0xf]
      %v310 = vld [vmem:[%s225 + $0x4c] sm:$0xf]
      %v311 = vld [vmem:[%s225 + $0x50] sm:$0x1]
      %v312 = vld [vmem:[%s225 + $0x54] sm:$0xf]
      %v313 = vld [vmem:[%s225 + $0x58] sm:$0xf]
      %v314 = vld [vmem:[%s225 + $0x5c] sm:$0x1]
      %v315 = vld [vmem:[%s225 + $0x60] sm:$0xf]
      %v316 = vld [vmem:[%s225 + $0x64] sm:$0xf]
      %v317 = vld [vmem:[%s225 + $0x68] sm:$0x1]
      %v318 = vld [vmem:[%s225 + $0x6c] sm:$0xf]
      %v319 = vld [vmem:[%s225 + $0x70] sm:$0xf]
      %v320 = vld [vmem:[%s225 + $0x74] sm:$0x1]
      %v321 = vld [vmem:[%s225 + $0x78] sm:$0xf]
      %v322 = vld [vmem:[%s225 + $0x7c] sm:$0xf]
      %v323 = vld [vmem:[%s225 + $0x80] sm:$0x1]
      %v324 = vld [vmem:[%s225 + $0x84] sm:$0xf]
      %v325 = vld [vmem:[%s225 + $0x88] sm:$0xf]
      %v326 = vld [vmem:[%s225 + $0x8c] sm:$0x1]
      %v327 = vld [vmem:[%s225 + $0x90] sm:$0xf]
      %v328 = vld [vmem:[%s225 + $0x94] sm:$0xf]
      %v329 = vld [vmem:[%s225 + $0x98] sm:$0x1]
      %v330 = vld [vmem:[%s225 + $0x9c] sm:$0xf]
      %v331 = vld [vmem:[%s225 + $0xa0] sm:$0xf]
      %v332 = vld [vmem:[%s225 + $0xa4] sm:$0x1]
      %v333 = vld [vmem:[%s225 + $0xa8] sm:$0xf]
      %v334 = vld [vmem:[%s225 + $0xac] sm:$0xf]
      %v335 = vld [vmem:[%s225 + $0xb0] sm:$0x1]
      %v336 = vld [vmem:[%s225 + $0xb4] sm:$0xf]
      %v337 = vld [vmem:[%s225 + $0xb8] sm:$0xf]
      %v338 = vld [vmem:[%s225 + $0xbc] sm:$0x1]
      %vm339 = vsmask.f32 3328
      %vm340 = vsmask.f32 7440
      %vm341 = vmor %vm339, %vm340
      %v343 = vshrl.u32 %v291, 16
      %v345 = vrot.slane %v343, 4
      %v346 = vshll.u32 %v291, 16
      %v348 = vrot.slane %v346, 5
      %v349 = vor.u32 %v345, %v348
      %v350 = vrot.slane %v349, 4
      %v352 = vshll.u32 %v292, 16
      %v354 = vrot.slane %v352, 5
      %v355 = vsel %vm341, %v350, %v354
      %v356 = vshrl.u32 %v292, 16
      %v358 = vrot.slane %v356, 4
      %v359 = vor.u32 %v358, %v354
      %v360 = vrot.slane %v359, 4
      %v362 = vshll.u32 %v293, 16
      %v364 = vrot.slane %v362, 5
      %v365 = vsel %vm341, %v360, %v364
      %v367 = vshrl.u32 %v294, 16
      %v369 = vrot.slane %v367, 4
      %v370 = vshll.u32 %v294, 16
      %v372 = vrot.slane %v370, 5
      %v373 = vor.u32 %v369, %v372
      %v374 = vrot.slane %v373, 4
      %v376 = vshll.u32 %v295, 16
      %v378 = vrot.slane %v376, 5
      %v379 = vsel %vm341, %v374, %v378
      %v380 = vshrl.u32 %v295, 16
      %v382 = vrot.slane %v380, 4
      %v383 = vor.u32 %v382, %v378
      %v384 = vrot.slane %v383, 4
      %v386 = vshll.u32 %v296, 16
      %v388 = vrot.slane %v386, 5
      %v389 = vsel %vm341, %v384, %v388
      %v391 = vshrl.u32 %v297, 16
      %v393 = vrot.slane %v391, 4
      %v394 = vshll.u32 %v297, 16
      %v396 = vrot.slane %v394, 5
      %v397 = vor.u32 %v393, %v396
      %v398 = vrot.slane %v397, 4
      %v400 = vshll.u32 %v298, 16
      %v402 = vrot.slane %v400, 5
      %v403 = vsel %vm341, %v398, %v402
      %v404 = vshrl.u32 %v298, 16
      %v406 = vrot.slane %v404, 4
      %v407 = vor.u32 %v406, %v402
      %v408 = vrot.slane %v407, 4
      %v410 = vshll.u32 %v299, 16
      %v412 = vrot.slane %v410, 5
      %v413 = vsel %vm341, %v408, %v412
      %v415 = vshrl.u32 %v300, 16
      %v417 = vrot.slane %v415, 4
      %v418 = vshll.u32 %v300, 16
      %v420 = vrot.slane %v418, 5
      %v421 = vor.u32 %v417, %v420
      %v422 = vrot.slane %v421, 4
      %v424 = vshll.u32 %v301, 16
      %v426 = vrot.slane %v424, 5
      %v427 = vsel %vm341, %v422, %v426
      %v428 = vshrl.u32 %v301, 16
      %v430 = vrot.slane %v428, 4
      %v431 = vor.u32 %v430, %v426
      %v432 = vrot.slane %v431, 4
      %v434 = vshll.u32 %v302, 16
      %v436 = vrot.slane %v434, 5
      %v437 = vsel %vm341, %v432, %v436
      %v439 = vshrl.u32 %v303, 16
      %v441 = vrot.slane %v439, 4
      %v442 = vshll.u32 %v303, 16
      %v444 = vrot.slane %v442, 5
      %v445 = vor.u32 %v441, %v444
      %v446 = vrot.slane %v445, 4
      %v448 = vshll.u32 %v304, 16
      %v450 = vrot.slane %v448, 5
      %v451 = vsel %vm341, %v446, %v450
      %v452 = vshrl.u32 %v304, 16
      %v454 = vrot.slane %v452, 4
      %v455 = vor.u32 %v454, %v450
      %v456 = vrot.slane %v455, 4
      %v458 = vshll.u32 %v305, 16
      %v460 = vrot.slane %v458, 5
      %v461 = vsel %vm341, %v456, %v460
      %v463 = vshrl.u32 %v306, 16
      %v465 = vrot.slane %v463, 4
      %v466 = vshll.u32 %v306, 16
      %v468 = vrot.slane %v466, 5
      %v469 = vor.u32 %v465, %v468
      %v470 = vrot.slane %v469, 4
      %v472 = vshll.u32 %v307, 16
      %v474 = vrot.slane %v472, 5
      %v475 = vsel %vm341, %v470, %v474
      %v476 = vshrl.u32 %v307, 16
      %v478 = vrot.slane %v476, 4
      %v479 = vor.u32 %v478, %v474
      %v480 = vrot.slane %v479, 4
      %v482 = vshll.u32 %v308, 16
      %v484 = vrot.slane %v482, 5
      %v485 = vsel %vm341, %v480, %v484
      %v487 = vshrl.u32 %v309, 16
      %v489 = vrot.slane %v487, 4
      %v490 = vshll.u32 %v309, 16
      %v492 = vrot.slane %v490, 5
      %v493 = vor.u32 %v489, %v492
      %v494 = vrot.slane %v493, 4
      %v496 = vshll.u32 %v310, 16
      %v498 = vrot.slane %v496, 5
      %v499 = vsel %vm341, %v494, %v498
      %v500 = vshrl.u32 %v310, 16
      %v502 = vrot.slane %v500, 4
      %v503 = vor.u32 %v502, %v498
      %v504 = vrot.slane %v503, 4
      %v506 = vshll.u32 %v311, 16
      %v508 = vrot.slane %v506, 5
      %v509 = vsel %vm341, %v504, %v508
      %v511 = vshrl.u32 %v312, 16
      %v513 = vrot.slane %v511, 4
      %v514 = vshll.u32 %v312, 16
      %v516 = vrot.slane %v514, 5
      %v517 = vor.u32 %v513, %v516
      %v518 = vrot.slane %v517, 4
      %v520 = vshll.u32 %v313, 16
      %v522 = vrot.slane %v520, 5
      %v523 = vsel %vm341, %v518, %v522
      %v524 = vshrl.u32 %v313, 16
      %v526 = vrot.slane %v524, 4
      %v527 = vor.u32 %v526, %v522
      %v528 = vrot.slane %v527, 4
      %v530 = vshll.u32 %v314, 16
      %v532 = vrot.slane %v530, 5
      %v533 = vsel %vm341, %v528, %v532
      %v535 = vshrl.u32 %v315, 16
      %v537 = vrot.slane %v535, 4
      %v538 = vshll.u32 %v315, 16
      %v540 = vrot.slane %v538, 5
      %v541 = vor.u32 %v537, %v540
      %v542 = vrot.slane %v541, 4
      %v544 = vshll.u32 %v316, 16
      %v546 = vrot.slane %v544, 5
      %v547 = vsel %vm341, %v542, %v546
      %v548 = vshrl.u32 %v316, 16
      %v550 = vrot.slane %v548, 4
      %v551 = vor.u32 %v550, %v546
      %v552 = vrot.slane %v551, 4
      %v554 = vshll.u32 %v317, 16
      %v556 = vrot.slane %v554, 5
      %v557 = vsel %vm341, %v552, %v556
      %v559 = vshrl.u32 %v318, 16
      %v561 = vrot.slane %v559, 4
      %v562 = vshll.u32 %v318, 16
      %v564 = vrot.slane %v562, 5
      %v565 = vor.u32 %v561, %v564
      %v566 = vrot.slane %v565, 4
      %v568 = vshll.u32 %v319, 16
      %v570 = vrot.slane %v568, 5
      %v571 = vsel %vm341, %v566, %v570
      %v572 = vshrl.u32 %v319, 16
      %v574 = vrot.slane %v572, 4
      %v575 = vor.u32 %v574, %v570
      %v576 = vrot.slane %v575, 4
      %v578 = vshll.u32 %v320, 16
      %v580 = vrot.slane %v578, 5
      %v581 = vsel %vm341, %v576, %v580
      %v583 = vshrl.u32 %v321, 16
      %v585 = vrot.slane %v583, 4
      %v586 = vshll.u32 %v321, 16
      %v588 = vrot.slane %v586, 5
      %v589 = vor.u32 %v585, %v588
      %v590 = vrot.slane %v589, 4
      %v592 = vshll.u32 %v322, 16
      %v594 = vrot.slane %v592, 5
      %v595 = vsel %vm341, %v590, %v594
      %v596 = vshrl.u32 %v322, 16
      %v598 = vrot.slane %v596, 4
      %v599 = vor.u32 %v598, %v594
      %v600 = vrot.slane %v599, 4
      %v602 = vshll.u32 %v323, 16
      %v604 = vrot.slane %v602, 5
      %v605 = vsel %vm341, %v600, %v604
      %v607 = vshrl.u32 %v324, 16
      %v609 = vrot.slane %v607, 4
      %v610 = vshll.u32 %v324, 16
      %v612 = vrot.slane %v610, 5
      %v613 = vor.u32 %v609, %v612
      %v614 = vrot.slane %v613, 4
      %v616 = vshll.u32 %v325, 16
      %v618 = vrot.slane %v616, 5
      %v619 = vsel %vm341, %v614, %v618
      %v620 = vshrl.u32 %v325, 16
      %v622 = vrot.slane %v620, 4
      %v623 = vor.u32 %v622, %v618
      %v624 = vrot.slane %v623, 4
      %v626 = vshll.u32 %v326, 16
      %v628 = vrot.slane %v626, 5
      %v629 = vsel %vm341, %v624, %v628
      %v631 = vshrl.u32 %v327, 16
      %v633 = vrot.slane %v631, 4
      %v634 = vshll.u32 %v327, 16
      %v636 = vrot.slane %v634, 5
      %v637 = vor.u32 %v633, %v636
      %v638 = vrot.slane %v637, 4
      %v640 = vshll.u32 %v328, 16
      %v642 = vrot.slane %v640, 5
      %v643 = vsel %vm341, %v638, %v642
      %v644 = vshrl.u32 %v328, 16
      %v646 = vrot.slane %v644, 4
      %v647 = vor.u32 %v646, %v642
      %v648 = vrot.slane %v647, 4
      %v650 = vshll.u32 %v329, 16
      %v652 = vrot.slane %v650, 5
      %v653 = vsel %vm341, %v648, %v652
      %v655 = vshrl.u32 %v330, 16
      %v657 = vrot.slane %v655, 4
      %v658 = vshll.u32 %v330, 16
      %v660 = vrot.slane %v658, 5
      %v661 = vor.u32 %v657, %v660
      %v662 = vrot.slane %v661, 4
      %v664 = vshll.u32 %v331, 16
      %v666 = vrot.slane %v664, 5
      %v667 = vsel %vm341, %v662, %v666
      %v668 = vshrl.u32 %v331, 16
      %v670 = vrot.slane %v668, 4
      %v671 = vor.u32 %v670, %v666
      %v672 = vrot.slane %v671, 4
      %v674 = vshll.u32 %v332, 16
      %v676 = vrot.slane %v674, 5
      %v677 = vsel %vm341, %v672, %v676
      %v679 = vshrl.u32 %v333, 16
      %v681 = vrot.slane %v679, 4
      %v682 = vshll.u32 %v333, 16
      %v684 = vrot.slane %v682, 5
      %v685 = vor.u32 %v681, %v684
      %v686 = vrot.slane %v685, 4
      %v688 = vshll.u32 %v334, 16
      %v690 = vrot.slane %v688, 5
      %v691 = vsel %vm341, %v686, %v690
      %v692 = vshrl.u32 %v334, 16
      %v694 = vrot.slane %v692, 4
      %v695 = vor.u32 %v694, %v690
      %v696 = vrot.slane %v695, 4
      %v698 = vshll.u32 %v335, 16
      %v700 = vrot.slane %v698, 5
      %v701 = vsel %vm341, %v696, %v700
      %v703 = vshrl.u32 %v336, 16
      %v705 = vrot.slane %v703, 4
      %v706 = vshll.u32 %v336, 16
      %v708 = vrot.slane %v706, 5
      %v709 = vor.u32 %v705, %v708
      %v710 = vrot.slane %v709, 4
      %v712 = vshll.u32 %v337, 16
      %v714 = vrot.slane %v712, 5
      %v715 = vsel %vm341, %v710, %v714
      %v716 = vshrl.u32 %v337, 16
      %v718 = vrot.slane %v716, 4
      %v719 = vor.u32 %v718, %v714
      %v720 = vrot.slane %v719, 4
      %v722 = vshll.u32 %v338, 16
      %v724 = vrot.slane %v722, 5
      %v725 = vsel %vm341, %v720, %v724
      %726 = vrot.lane.b32.xlu0 %v355, 4
      %v727 = vpop.permute.xlu0 %726
      %728 = vrot.lane.b32.xlu0 %v365, 4
      %v729 = vpop.permute.xlu0 %728
      %730 = vrot.lane.b32.xlu0 %v379, 4
      %v731 = vpop.permute.xlu0 %730
      %732 = vrot.lane.b32.xlu0 %v389, 4
      %v733 = vpop.permute.xlu0 %732
      %734 = vrot.lane.b32.xlu0 %v403, 4
      %v735 = vpop.permute.xlu0 %734
      %736 = vrot.lane.b32.xlu0 %v413, 4
      %v737 = vpop.permute.xlu0 %736
      %738 = vrot.lane.b32.xlu0 %v427, 4
      %v739 = vpop.permute.xlu0 %738
      %740 = vrot.lane.b32.xlu0 %v437, 4
      %v741 = vpop.permute.xlu0 %740
      %742 = vrot.lane.b32.xlu0 %v451, 4
      %v743 = vpop.permute.xlu0 %742
      %744 = vrot.lane.b32.xlu0 %v461, 4
      %v745 = vpop.permute.xlu0 %744
      %746 = vrot.lane.b32.xlu0 %v475, 4
      %v747 = vpop.permute.xlu0 %746
      %748 = vrot.lane.b32.xlu0 %v485, 4
      %v749 = vpop.permute.xlu0 %748
      %750 = vrot.lane.b32.xlu0 %v499, 4
      %v751 = vpop.permute.xlu0 %750
      %752 = vrot.lane.b32.xlu0 %v509, 4
      %v753 = vpop.permute.xlu0 %752
      %754 = vrot.lane.b32.xlu0 %v523, 4
      %v755 = vpop.permute.xlu0 %754
      %756 = vrot.lane.b32.xlu0 %v533, 4
      %v757 = vpop.permute.xlu0 %756
      %758 = vrot.lane.b32.xlu0 %v547, 4
      %v759 = vpop.permute.xlu0 %758
      %760 = vrot.lane.b32.xlu0 %v557, 4
      %v761 = vpop.permute.xlu0 %760
      %762 = vrot.lane.b32.xlu0 %v571, 4
      %v763 = vpop.permute.xlu0 %762
      %764 = vrot.lane.b32.xlu0 %v581, 4
      %v765 = vpop.permute.xlu0 %764
      %766 = vrot.lane.b32.xlu0 %v595, 4
      %v767 = vpop.permute.xlu0 %766
      %768 = vrot.lane.b32.xlu0 %v605, 4
      %v769 = vpop.permute.xlu0 %768
      %770 = vrot.lane.b32.xlu0 %v619, 4
      %v771 = vpop.permute.xlu0 %770
      %772 = vrot.lane.b32.xlu0 %v629, 4
      %v773 = vpop.permute.xlu0 %772
      %774 = vrot.lane.b32.xlu0 %v643, 4
      %v775 = vpop.permute.xlu0 %774
      %776 = vrot.lane.b32.xlu0 %v653, 4
      %v777 = vpop.permute.xlu0 %776
      %778 = vrot.lane.b32.xlu0 %v667, 4
      %v779 = vpop.permute.xlu0 %778
      %780 = vrot.lane.b32.xlu0 %v677, 4
      %v781 = vpop.permute.xlu0 %780
      %782 = vrot.lane.b32.xlu0 %v691, 4
      %v783 = vpop.permute.xlu0 %782
      %784 = vrot.lane.b32.xlu0 %v701, 4
      %v785 = vpop.permute.xlu0 %784
      %786 = vrot.lane.b32.xlu0 %v715, 4
      %v787 = vpop.permute.xlu0 %786
      %788 = vrot.lane.b32.xlu0 %v725, 4
      %v789 = vpop.permute.xlu0 %788
      %vm822 = vcmask 60448
      %823 = vst.msk [vmem:[#allocation2] sm:$0xf] %vm822, %v727
      %824 = vst.msk [vmem:[#allocation2 + $0x4] sm:$0xf] %vm822, %v729
      %825 = vst.msk [vmem:[#allocation2 + $0x8] sm:$0xf] %vm822, %v731
      %826 = vst.msk [vmem:[#allocation2 + $0xc] sm:$0xf] %vm822, %v733
      %827 = vst.msk [vmem:[#allocation2 + $0x10] sm:$0xf] %vm822, %v735
      %828 = vst.msk [vmem:[#allocation2 + $0x14] sm:$0xf] %vm822, %v737
      %829 = vst.msk [vmem:[#allocation2 + $0x18] sm:$0xf] %vm822, %v739
      %830 = vst.msk [vmem:[#allocation2 + $0x1c] sm:$0xf] %vm822, %v741
      %831 = vst.msk [vmem:[#allocation2 + $0x20] sm:$0xf] %vm822, %v743
      %832 = vst.msk [vmem:[#allocation2 + $0x24] sm:$0xf] %vm822, %v745
      %833 = vst.msk [vmem:[#allocation2 + $0x28] sm:$0xf] %vm822, %v747
      %834 = vst.msk [vmem:[#allocation2 + $0x2c] sm:$0xf] %vm822, %v749
      %835 = vst.msk [vmem:[#allocation2 + $0x30] sm:$0xf] %vm822, %v751
      %836 = vst.msk [vmem:[#allocation2 + $0x34] sm:$0xf] %vm822, %v753
      %837 = vst.msk [vmem:[#allocation2 + $0x38] sm:$0xf] %vm822, %v755
      %838 = vst.msk [vmem:[#allocation2 + $0x3c] sm:$0xf] %vm822, %v757
      %839 = vst.msk [vmem:[#allocation2 + $0x40] sm:$0xf] %vm822, %v759
      %840 = vst.msk [vmem:[#allocation2 + $0x44] sm:$0xf] %vm822, %v761
      %841 = vst.msk [vmem:[#allocation2 + $0x48] sm:$0xf] %vm822, %v763
      %842 = vst.msk [vmem:[#allocation2 + $0x4c] sm:$0xf] %vm822, %v765
      %843 = vst.msk [vmem:[#allocation2 + $0x50] sm:$0xf] %vm822, %v767
      %844 = vst.msk [vmem:[#allocation2 + $0x54] sm:$0xf] %vm822, %v769
      %845 = vst.msk [vmem:[#allocation2 + $0x58] sm:$0xf] %vm822, %v771
      %846 = vst.msk [vmem:[#allocation2 + $0x5c] sm:$0xf] %vm822, %v773
      %847 = vst.msk [vmem:[#allocation2 + $0x60] sm:$0xf] %vm822, %v775
      %848 = vst.msk [vmem:[#allocation2 + $0x64] sm:$0xf] %vm822, %v777
      %849 = vst.msk [vmem:[#allocation2 + $0x68] sm:$0xf] %vm822, %v779
      %850 = vst.msk [vmem:[#allocation2 + $0x6c] sm:$0xf] %vm822, %v781
      %851 = vst.msk [vmem:[#allocation2 + $0x70] sm:$0xf] %vm822, %v783
      %852 = vst.msk [vmem:[#allocation2 + $0x74] sm:$0xf] %vm822, %v785
      %853 = vst.msk [vmem:[#allocation2 + $0x78] sm:$0xf] %vm822, %v787
      %854 = vst.msk [vmem:[#allocation2 + $0x7c] sm:$0xf] %vm822, %v789
      %v855 = vld [vmem:[%s225] sm:$0xe]
      %v856 = vld [vmem:[%s225 + $0x4] sm:$0xf]
      %v857 = vld [vmem:[%s225 + $0x8] sm:$0x1]
      %v858 = vld [vmem:[%s225 + $0xc] sm:$0xe]
      %v859 = vld [vmem:[%s225 + $0x10] sm:$0xf]
      %v860 = vld [vmem:[%s225 + $0x14] sm:$0x1]
      %v861 = vld [vmem:[%s225 + $0x18] sm:$0xe]
      %v862 = vld [vmem:[%s225 + $0x1c] sm:$0xf]
      %v863 = vld [vmem:[%s225 + $0x20] sm:$0x1]
      %v864 = vld [vmem:[%s225 + $0x24] sm:$0xe]
      %v865 = vld [vmem:[%s225 + $0x28] sm:$0xf]
      %v866 = vld [vmem:[%s225 + $0x2c] sm:$0x1]
      %v867 = vld [vmem:[%s225 + $0x30] sm:$0xe]
      %v868 = vld [vmem:[%s225 + $0x34] sm:$0xf]
      %v869 = vld [vmem:[%s225 + $0x38] sm:$0x1]
      %v870 = vld [vmem:[%s225 + $0x3c] sm:$0xe]
      %v871 = vld [vmem:[%s225 + $0x40] sm:$0xf]
      %v872 = vld [vmem:[%s225 + $0x44] sm:$0x1]
      %v873 = vld [vmem:[%s225 + $0x48] sm:$0xe]
      %v874 = vld [vmem:[%s225 + $0x4c] sm:$0xf]
      %v875 = vld [vmem:[%s225 + $0x50] sm:$0x1]
      %v876 = vld [vmem:[%s225 + $0x54] sm:$0xe]
      %v877 = vld [vmem:[%s225 + $0x58] sm:$0xf]
      %v878 = vld [vmem:[%s225 + $0x5c] sm:$0x1]
      %v879 = vld [vmem:[%s225 + $0x60] sm:$0xe]
      %v880 = vld [vmem:[%s225 + $0x64] sm:$0xf]
      %v881 = vld [vmem:[%s225 + $0x68] sm:$0x1]
      %v882 = vld [vmem:[%s225 + $0x6c] sm:$0xe]
      %v883 = vld [vmem:[%s225 + $0x70] sm:$0xf]
      %v884 = vld [vmem:[%s225 + $0x74] sm:$0x1]
      %v885 = vld [vmem:[%s225 + $0x78] sm:$0xe]
      %v886 = vld [vmem:[%s225 + $0x7c] sm:$0xf]
      %v887 = vld [vmem:[%s225 + $0x80] sm:$0x1]
      %v888 = vld [vmem:[%s225 + $0x84] sm:$0xe]
      %v889 = vld [vmem:[%s225 + $0x88] sm:$0xf]
      %v890 = vld [vmem:[%s225 + $0x8c] sm:$0x1]
      %v891 = vld [vmem:[%s225 + $0x90] sm:$0xe]
      %v892 = vld [vmem:[%s225 + $0x94] sm:$0xf]
      %v893 = vld [vmem:[%s225 + $0x98] sm:$0x1]
      %v894 = vld [vmem:[%s225 + $0x9c] sm:$0xe]
      %v895 = vld [vmem:[%s225 + $0xa0] sm:$0xf]
      %v896 = vld [vmem:[%s225 + $0xa4] sm:$0x1]
      %v897 = vld [vmem:[%s225 + $0xa8] sm:$0xe]
      %v898 = vld [vmem:[%s225 + $0xac] sm:$0xf]
      %v899 = vld [vmem:[%s225 + $0xb0] sm:$0x1]
      %v900 = vld [vmem:[%s225 + $0xb4] sm:$0xe]
      %v901 = vld [vmem:[%s225 + $0xb8] sm:$0xf]
      %v902 = vld [vmem:[%s225 + $0xbc] sm:$0x1]
      %vm951 = vcmask 1042432
      %vm952 = vcmask 1046532
      %vm953 = vmor %vm951, %vm952
      %v954 = vrot.slane %v855, 5
      %v955 = vrot.slane %v954, 4
      %v956 = vrot.slane %v856, 5
      %v957 = vsel %vm953, %v955, %v956
      %v958 = vrot.slane %v956, 4
      %v959 = vrot.slane %v857, 5
      %v960 = vsel %vm953, %v958, %v959
      %v961 = vrot.slane %v858, 5
      %v962 = vrot.slane %v961, 4
      %v963 = vrot.slane %v859, 5
      %v964 = vsel %vm953, %v962, %v963
      %v965 = vrot.slane %v963, 4
      %v966 = vrot.slane %v860, 5
      %v967 = vsel %vm953, %v965, %v966
      %v968 = vrot.slane %v861, 5
      %v969 = vrot.slane %v968, 4
      %v970 = vrot.slane %v862, 5
      %v971 = vsel %vm953, %v969, %v970
      %v972 = vrot.slane %v970, 4
      %v973 = vrot.slane %v863, 5
      %v974 = vsel %vm953, %v972, %v973
      %v975 = vrot.slane %v864, 5
      %v976 = vrot.slane %v975, 4
      %v977 = vrot.slane %v865, 5
      %v978 = vsel %vm953, %v976, %v977
      %v979 = vrot.slane %v977, 4
      %v980 = vrot.slane %v866, 5
      %v981 = vsel %vm953, %v979, %v980
      %v982 = vrot.slane %v867, 5
      %v983 = vrot.slane %v982, 4
      %v984 = vrot.slane %v868, 5
      %v985 = vsel %vm953, %v983, %v984
      %v986 = vrot.slane %v984, 4
      %v987 = vrot.slane %v869, 5
      %v988 = vsel %vm953, %v986, %v987
      %v989 = vrot.slane %v870, 5
      %v990 = vrot.slane %v989, 4
      %v991 = vrot.slane %v871, 5
      %v992 = vsel %vm953, %v990, %v991
      %v993 = vrot.slane %v991, 4
      %v994 = vrot.slane %v872, 5
      %v995 = vsel %vm953, %v993, %v994
      %v996 = vrot.slane %v873, 5
      %v997 = vrot.slane %v996, 4
      %v998 = vrot.slane %v874, 5
      %v999 = vsel %vm953, %v997, %v998
      %v1000 = vrot.slane %v998, 4
      %v1001 = vrot.slane %v875, 5
      %v1002 = vsel %vm953, %v1000, %v1001
      %v1003 = vrot.slane %v876, 5
      %v1004 = vrot.slane %v1003, 4
      %v1005 = vrot.slane %v877, 5
      %v1006 = vsel %vm953, %v1004, %v1005
      %v1007 = vrot.slane %v1005, 4
      %v1008 = vrot.slane %v878, 5
      %v1009 = vsel %vm953, %v1007, %v1008
      %v1010 = vrot.slane %v879, 5
      %v1011 = vrot.slane %v1010, 4
      %v1012 = vrot.slane %v880, 5
      %v1013 = vsel %vm953, %v1011, %v1012
      %v1014 = vrot.slane %v1012, 4
      %v1015 = vrot.slane %v881, 5
      %v1016 = vsel %vm953, %v1014, %v1015
      %v1017 = vrot.slane %v882, 5
      %v1018 = vrot.slane %v1017, 4
      %v1019 = vrot.slane %v883, 5
      %v1020 = vsel %vm953, %v1018, %v1019
      %v1021 = vrot.slane %v1019, 4
      %v1022 = vrot.slane %v884, 5
      %v1023 = vsel %vm953, %v1021, %v1022
      %v1024 = vrot.slane %v885, 5
      %v1025 = vrot.slane %v1024, 4
      %v1026 = vrot.slane %v886, 5
      %v1027 = vsel %vm953, %v1025, %v1026
      %v1028 = vrot.slane %v1026, 4
      %v1029 = vrot.slane %v887, 5
      %v1030 = vsel %vm953, %v1028, %v1029
      %v1031 = vrot.slane %v888, 5
      %v1032 = vrot.slane %v1031, 4
      %v1033 = vrot.slane %v889, 5
      %v1034 = vsel %vm953, %v1032, %v1033
      %v1035 = vrot.slane %v1033, 4
      %v1036 = vrot.slane %v890, 5
      %v1037 = vsel %vm953, %v1035, %v1036
      %v1038 = vrot.slane %v891, 5
      %v1039 = vrot.slane %v1038, 4
      %v1040 = vrot.slane %v892, 5
      %v1041 = vsel %vm953, %v1039, %v1040
      %v1042 = vrot.slane %v1040, 4
      %v1043 = vrot.slane %v893, 5
      %v1044 = vsel %vm953, %v1042, %v1043
      %v1045 = vrot.slane %v894, 5
      %v1046 = vrot.slane %v1045, 4
      %v1047 = vrot.slane %v895, 5
      %v1048 = vsel %vm953, %v1046, %v1047
      %v1049 = vrot.slane %v1047, 4
      %v1050 = vrot.slane %v896, 5
      %v1051 = vsel %vm953, %v1049, %v1050
      %v1052 = vrot.slane %v897, 5
      %v1053 = vrot.slane %v1052, 4
      %v1054 = vrot.slane %v898, 5
      %v1055 = vsel %vm953, %v1053, %v1054
      %v1056 = vrot.slane %v1054, 4
      %v1057 = vrot.slane %v899, 5
      %v1058 = vsel %vm953, %v1056, %v1057
      %v1059 = vrot.slane %v900, 5
      %v1060 = vrot.slane %v1059, 4
      %v1061 = vrot.slane %v901, 5
      %v1062 = vsel %vm953, %v1060, %v1061
      %v1063 = vrot.slane %v1061, 4
      %v1064 = vrot.slane %v902, 5
      %v1065 = vsel %vm953, %v1063, %v1064
      %1066 = vrot.lane.b32.xlu0 %v957, 8
      %v1067 = vpop.permute.xlu0 %1066
      %1068 = vrot.lane.b32.xlu0 %v960, 8
      %v1069 = vpop.permute.xlu0 %1068
      %1070 = vrot.lane.b32.xlu0 %v964, 8
      %v1071 = vpop.permute.xlu0 %1070
      %1072 = vrot.lane.b32.xlu0 %v967, 8
      %v1073 = vpop.permute.xlu0 %1072
      %1074 = vrot.lane.b32.xlu0 %v971, 8
      %v1075 = vpop.permute.xlu0 %1074
      %1076 = vrot.lane.b32.xlu0 %v974, 8
      %v1077 = vpop.permute.xlu0 %1076
      %1078 = vrot.lane.b32.xlu0 %v978, 8
      %v1079 = vpop.permute.xlu0 %1078
      %1080 = vrot.lane.b32.xlu0 %v981, 8
      %v1081 = vpop.permute.xlu0 %1080
      %1082 = vrot.lane.b32.xlu0 %v985, 8
      %v1083 = vpop.permute.xlu0 %1082
      %1084 = vrot.lane.b32.xlu0 %v988, 8
      %v1085 = vpop.permute.xlu0 %1084
      %1086 = vrot.lane.b32.xlu0 %v992, 8
      %v1087 = vpop.permute.xlu0 %1086
      %1088 = vrot.lane.b32.xlu0 %v995, 8
      %v1089 = vpop.permute.xlu0 %1088
      %1090 = vrot.lane.b32.xlu0 %v999, 8
      %v1091 = vpop.permute.xlu0 %1090
      %1092 = vrot.lane.b32.xlu0 %v1002, 8
      %v1093 = vpop.permute.xlu0 %1092
      %1094 = vrot.lane.b32.xlu0 %v1006, 8
      %v1095 = vpop.permute.xlu0 %1094
      %1096 = vrot.lane.b32.xlu0 %v1009, 8
      %v1097 = vpop.permute.xlu0 %1096
      %1098 = vrot.lane.b32.xlu0 %v1013, 8
      %v1099 = vpop.permute.xlu0 %1098
      %1100 = vrot.lane.b32.xlu0 %v1016, 8
      %v1101 = vpop.permute.xlu0 %1100
      %1102 = vrot.lane.b32.xlu0 %v1020, 8
      %v1103 = vpop.permute.xlu0 %1102
      %1104 = vrot.lane.b32.xlu0 %v1023, 8
      %v1105 = vpop.permute.xlu0 %1104
      %1106 = vrot.lane.b32.xlu0 %v1027, 8
      %v1107 = vpop.permute.xlu0 %1106
      %1108 = vrot.lane.b32.xlu0 %v1030, 8
      %v1109 = vpop.permute.xlu0 %1108
      %1110 = vrot.lane.b32.xlu0 %v1034, 8
      %v1111 = vpop.permute.xlu0 %1110
      %1112 = vrot.lane.b32.xlu0 %v1037, 8
      %v1113 = vpop.permute.xlu0 %1112
      %1114 = vrot.lane.b32.xlu0 %v1041, 8
      %v1115 = vpop.permute.xlu0 %1114
      %1116 = vrot.lane.b32.xlu0 %v1044, 8
      %v1117 = vpop.permute.xlu0 %1116
      %1118 = vrot.lane.b32.xlu0 %v1048, 8
      %v1119 = vpop.permute.xlu0 %1118
      %1120 = vrot.lane.b32.xlu0 %v1051, 8
      %v1121 = vpop.permute.xlu0 %1120
      %1122 = vrot.lane.b32.xlu0 %v1055, 8
      %v1123 = vpop.permute.xlu0 %1122
      %1124 = vrot.lane.b32.xlu0 %v1058, 8
      %v1125 = vpop.permute.xlu0 %1124
      %1126 = vrot.lane.b32.xlu0 %v1062, 8
      %v1127 = vpop.permute.xlu0 %1126
      %1128 = vrot.lane.b32.xlu0 %v1065, 8
      %v1129 = vpop.permute.xlu0 %1128
      %vm1162 = vcmask 93248
      %1163 = vst.msk [vmem:[#allocation2] sm:$0xf] %vm1162, %v1067
      %1164 = vst.msk [vmem:[#allocation2 + $0x4] sm:$0xf] %vm1162, %v1069
      %1165 = vst.msk [vmem:[#allocation2 + $0x8] sm:$0xf] %vm1162, %v1071
      %1166 = vst.msk [vmem:[#allocation2 + $0xc] sm:$0xf] %vm1162, %v1073
      %1167 = vst.msk [vmem:[#allocation2 + $0x10] sm:$0xf] %vm1162, %v1075
      %1168 = vst.msk [vmem:[#allocation2 + $0x14] sm:$0xf] %vm1162, %v1077
      %1169 = vst.msk [vmem:[#allocation2 + $0x18] sm:$0xf] %vm1162, %v1079
      %1170 = vst.msk [vmem:[#allocation2 + $0x1c] sm:$0xf] %vm1162, %v1081
      %1171 = vst.msk [vmem:[#allocation2 + $0x20] sm:$0xf] %vm1162, %v1083
      %1172 = vst.msk [vmem:[#allocation2 + $0x24] sm:$0xf] %vm1162, %v1085
      %1173 = vst.msk [vmem:[#allocation2 + $0x28] sm:$0xf] %vm1162, %v1087
      %1174 = vst.msk [vmem:[#allocation2 + $0x2c] sm:$0xf] %vm1162, %v1089
      %1175 = vst.msk [vmem:[#allocation2 + $0x30] sm:$0xf] %vm1162, %v1091
      %1176 = vst.msk [vmem:[#allocation2 + $0x34] sm:$0xf] %vm1162, %v1093
      %1177 = vst.msk [vmem:[#allocation2 + $0x38] sm:$0xf] %vm1162, %v1095
      %1178 = vst.msk [vmem:[#allocation2 + $0x3c] sm:$0xf] %vm1162, %v1097
      %1179 = vst.msk [vmem:[#allocation2 + $0x40] sm:$0xf] %vm1162, %v1099
      %1180 = vst.msk [vmem:[#allocation2 + $0x44] sm:$0xf] %vm1162, %v1101
      %1181 = vst.msk [vmem:[#allocation2 + $0x48] sm:$0xf] %vm1162, %v1103
      %1182 = vst.msk [vmem:[#allocation2 + $0x4c] sm:$0xf] %vm1162, %v1105
      %1183 = vst.msk [vmem:[#allocation2 + $0x50] sm:$0xf] %vm1162, %v1107
      %1184 = vst.msk [vmem:[#allocation2 + $0x54] sm:$0xf] %vm1162, %v1109
      %1185 = vst.msk [vmem:[#allocation2 + $0x58] sm:$0xf] %vm1162, %v1111
      %1186 = vst.msk [vmem:[#allocation2 + $0x5c] sm:$0xf] %vm1162, %v1113
      %1187 = vst.msk [vmem:[#allocation2 + $0x60] sm:$0xf] %vm1162, %v1115
      %1188 = vst.msk [vmem:[#allocation2 + $0x64] sm:$0xf] %vm1162, %v1117
      %1189 = vst.msk [vmem:[#allocation2 + $0x68] sm:$0xf] %vm1162, %v1119
      %1190 = vst.msk [vmem:[#allocation2 + $0x6c] sm:$0xf] %vm1162, %v1121
      %1191 = vst.msk [vmem:[#allocation2 + $0x70] sm:$0xf] %vm1162, %v1123
      %1192 = vst.msk [vmem:[#allocation2 + $0x74] sm:$0xf] %vm1162, %v1125
      %1193 = vst.msk [vmem:[#allocation2 + $0x78] sm:$0xf] %vm1162, %v1127
      %1194 = vst.msk [vmem:[#allocation2 + $0x7c] sm:$0xf] %vm1162, %v1129
      %s1195 = sadd.s32 %s222, 1
      %s1196 = smul.u32 %s1195, 3
      %s1197 = smul.addr %s1196, 4
      %s1198 = scalar_lea.vmem %s210, %s1197
      %v1199 = vld [vmem:[%s1198] sm:$0xf]
      %v1200 = vld [vmem:[%s1198 + $0x4] sm:$0xf]
      %v1201 = vld [vmem:[%s1198 + $0xc] sm:$0xf]
      %v1202 = vld [vmem:[%s1198 + $0x10] sm:$0xf]
      %v1203 = vld [vmem:[%s1198 + $0x18] sm:$0xf]
      %v1204 = vld [vmem:[%s1198 + $0x1c] sm:$0xf]
      %v1205 = vld [vmem:[%s1198 + $0x24] sm:$0xf]
      %v1206 = vld [vmem:[%s1198 + $0x28] sm:$0xf]
      %v1207 = vld [vmem:[%s1198 + $0x30] sm:$0xf]
      %v1208 = vld [vmem:[%s1198 + $0x34] sm:$0xf]
      %v1209 = vld [vmem:[%s1198 + $0x3c] sm:$0xf]
      %v1210 = vld [vmem:[%s1198 + $0x40] sm:$0xf]
      %v1211 = vld [vmem:[%s1198 + $0x48] sm:$0xf]
      %v1212 = vld [vmem:[%s1198 + $0x4c] sm:$0xf]
      %v1213 = vld [vmem:[%s1198 + $0x54] sm:$0xf]
      %v1214 = vld [vmem:[%s1198 + $0x58] sm:$0xf]
      %v1215 = vld [vmem:[%s1198 + $0x60] sm:$0xf]
      %v1216 = vld [vmem:[%s1198 + $0x64] sm:$0xf]
      %v1217 = vld [vmem:[%s1198 + $0x6c] sm:$0xf]
      %v1218 = vld [vmem:[%s1198 + $0x70] sm:$0xf]
      %v1219 = vld [vmem:[%s1198 + $0x78] sm:$0xf]
      %v1220 = vld [vmem:[%s1198 + $0x7c] sm:$0xf]
      %v1221 = vld [vmem:[%s1198 + $0x84] sm:$0xf]
      %v1222 = vld [vmem:[%s1198 + $0x88] sm:$0xf]
      %v1223 = vld [vmem:[%s1198 + $0x90] sm:$0xf]
      %v1224 = vld [vmem:[%s1198 + $0x94] sm:$0xf]
      %v1225 = vld [vmem:[%s1198 + $0x9c] sm:$0xf]
      %v1226 = vld [vmem:[%s1198 + $0xa0] sm:$0xf]
      %v1227 = vld [vmem:[%s1198 + $0xa8] sm:$0xf]
      %v1228 = vld [vmem:[%s1198 + $0xac] sm:$0xf]
      %v1229 = vld [vmem:[%s1198 + $0xb4] sm:$0xf]
      %v1230 = vld [vmem:[%s1198 + $0xb8] sm:$0xf]
      %1263 = vrot.lane.b32.xlu0 %v1199, 12
      %v1264 = vpop.permute.xlu0 %1263
      %1265 = vrot.lane.b32.xlu0 %v1200, 12
      %v1266 = vpop.permute.xlu0 %1265
      %1267 = vrot.lane.b32.xlu0 %v1201, 12
      %v1268 = vpop.permute.xlu0 %1267
      %1269 = vrot.lane.b32.xlu0 %v1202, 12
      %v1270 = vpop.permute.xlu0 %1269
      %1271 = vrot.lane.b32.xlu0 %v1203, 12
      %v1272 = vpop.permute.xlu0 %1271
      %1273 = vrot.lane.b32.xlu0 %v1204, 12
      %v1274 = vpop.permute.xlu0 %1273
      %1275 = vrot.lane.b32.xlu0 %v1205, 12
      %v1276 = vpop.permute.xlu0 %1275
      %1277 = vrot.lane.b32.xlu0 %v1206, 12
      %v1278 = vpop.permute.xlu0 %1277
      %1279 = vrot.lane.b32.xlu0 %v1207, 12
      %v1280 = vpop.permute.xlu0 %1279
      %1281 = vrot.lane.b32.xlu0 %v1208, 12
      %v1282 = vpop.permute.xlu0 %1281
      %1283 = vrot.lane.b32.xlu0 %v1209, 12
      %v1284 = vpop.permute.xlu0 %1283
      %1285 = vrot.lane.b32.xlu0 %v1210, 12
      %v1286 = vpop.permute.xlu0 %1285
      %1287 = vrot.lane.b32.xlu0 %v1211, 12
      %v1288 = vpop.permute.xlu0 %1287
      %1289 = vrot.lane.b32.xlu0 %v1212, 12
      %v1290 = vpop.permute.xlu0 %1289
      %1291 = vrot.lane.b32.xlu0 %v1213, 12
      %v1292 = vpop.permute.xlu0 %1291
      %1293 = vrot.lane.b32.xlu0 %v1214, 12
      %v1294 = vpop.permute.xlu0 %1293
      %1295 = vrot.lane.b32.xlu0 %v1215, 12
      %v1296 = vpop.permute.xlu0 %1295
      %1297 = vrot.lane.b32.xlu0 %v1216, 12
      %v1298 = vpop.permute.xlu0 %1297
      %1299 = vrot.lane.b32.xlu0 %v1217, 12
      %v1300 = vpop.permute.xlu0 %1299
      %1301 = vrot.lane.b32.xlu0 %v1218, 12
      %v1302 = vpop.permute.xlu0 %1301
      %1303 = vrot.lane.b32.xlu0 %v1219, 12
      %v1304 = vpop.permute.xlu0 %1303
      %1305 = vrot.lane.b32.xlu0 %v1220, 12
      %v1306 = vpop.permute.xlu0 %1305
      %1307 = vrot.lane.b32.xlu0 %v1221, 12
      %v1308 = vpop.permute.xlu0 %1307
      %1309 = vrot.lane.b32.xlu0 %v1222, 12
      %v1310 = vpop.permute.xlu0 %1309
      %1311 = vrot.lane.b32.xlu0 %v1223, 12
      %v1312 = vpop.permute.xlu0 %1311
      %1313 = vrot.lane.b32.xlu0 %v1224, 12
      %v1314 = vpop.permute.xlu0 %1313
      %1315 = vrot.lane.b32.xlu0 %v1225, 12
      %v1316 = vpop.permute.xlu0 %1315
      %1317 = vrot.lane.b32.xlu0 %v1226, 12
      %v1318 = vpop.permute.xlu0 %1317
      %1319 = vrot.lane.b32.xlu0 %v1227, 12
      %v1320 = vpop.permute.xlu0 %1319
      %1321 = vrot.lane.b32.xlu0 %v1228, 12
      %v1322 = vpop.permute.xlu0 %1321
      %1323 = vrot.lane.b32.xlu0 %v1229, 12
      %v1324 = vpop.permute.xlu0 %1323
      %1325 = vrot.lane.b32.xlu0 %v1230, 12
      %v1326 = vpop.permute.xlu0 %1325
      %vm1359 = vcmask 126048
      %1360 = vst.msk [vmem:[#allocation2] sm:$0xf] %vm1359, %v1264
      %1361 = vst.msk [vmem:[#allocation2 + $0x4] sm:$0xf] %vm1359, %v1266
      %1362 = vst.msk [vmem:[#allocation2 + $0x8] sm:$0xf] %vm1359, %v1268
      %1363 = vst.msk [vmem:[#allocation2 + $0xc] sm:$0xf] %vm1359, %v1270
      %1364 = vst.msk [vmem:[#allocation2 + $0x10] sm:$0xf] %vm1359, %v1272
      %1365 = vst.msk [vmem:[#allocation2 + $0x14] sm:$0xf] %vm1359, %v1274
      %1366 = vst.msk [vmem:[#allocation2 + $0x18] sm:$0xf] %vm1359, %v1276
      %1367 = vst.msk [vmem:[#allocation2 + $0x1c] sm:$0xf] %vm1359, %v1278
      %1368 = vst.msk [vmem:[#allocation2 + $0x20] sm:$0xf] %vm1359, %v1280
      %1369 = vst.msk [vmem:[#allocation2 + $0x24] sm:$0xf] %vm1359, %v1282
      %1370 = vst.msk [vmem:[#allocation2 + $0x28] sm:$0xf] %vm1359, %v1284
      %1371 = vst.msk [vmem:[#allocation2 + $0x2c] sm:$0xf] %vm1359, %v1286
      %1372 = vst.msk [vmem:[#allocation2 + $0x30] sm:$0xf] %vm1359, %v1288
      %1373 = vst.msk [vmem:[#allocation2 + $0x34] sm:$0xf] %vm1359, %v1290
      %1374 = vst.msk [vmem:[#allocation2 + $0x38] sm:$0xf] %vm1359, %v1292
      %1375 = vst.msk [vmem:[#allocation2 + $0x3c] sm:$0xf] %vm1359, %v1294
      %1376 = vst.msk [vmem:[#allocation2 + $0x40] sm:$0xf] %vm1359, %v1296
      %1377 = vst.msk [vmem:[#allocation2 + $0x44] sm:$0xf] %vm1359, %v1298
      %1378 = vst.msk [vmem:[#allocation2 + $0x48] sm:$0xf] %vm1359, %v1300
      %1379 = vst.msk [vmem:[#allocation2 + $0x4c] sm:$0xf] %vm1359, %v1302
      %1380 = vst.msk [vmem:[#allocation2 + $0x50] sm:$0xf] %vm1359, %v1304
      %1381 = vst.msk [vmem:[#allocation2 + $0x54] sm:$0xf] %vm1359, %v1306
      %1382 = vst.msk [vmem:[#allocation2 + $0x58] sm:$0xf] %vm1359, %v1308
      %1383 = vst.msk [vmem:[#allocation2 + $0x5c] sm:$0xf] %vm1359, %v1310
      %1384 = vst.msk [vmem:[#allocation2 + $0x60] sm:$0xf] %vm1359, %v1312
      %1385 = vst.msk [vmem:[#allocation2 + $0x64] sm:$0xf] %vm1359, %v1314
      %1386 = vst.msk [vmem:[#allocation2 + $0x68] sm:$0xf] %vm1359, %v1316
      %1387 = vst.msk [vmem:[#allocation2 + $0x6c] sm:$0xf] %vm1359, %v1318
      %1388 = vst.msk [vmem:[#allocation2 + $0x70] sm:$0xf] %vm1359, %v1320
      %1389 = vst.msk [vmem:[#allocation2 + $0x74] sm:$0xf] %vm1359, %v1322
      %1390 = vst.msk [vmem:[#allocation2 + $0x78] sm:$0xf] %vm1359, %v1324
      %1391 = vst.msk [vmem:[#allocation2 + $0x7c] sm:$0xf] %vm1359, %v1326
      %v1392 = vld [vmem:[%s1198] sm:$0xf]
      %v1393 = vld [vmem:[%s1198 + $0x4] sm:$0xf]
      %v1394 = vld [vmem:[%s1198 + $0x8] sm:$0x1]
      %v1395 = vld [vmem:[%s1198 + $0xc] sm:$0xf]
      %v1396 = vld [vmem:[%s1198 + $0x10] sm:$0xf]
      %v1397 = vld [vmem:[%s1198 + $0x14] sm:$0x1]
      %v1398 = vld [vmem:[%s1198 + $0x18] sm:$0xf]
      %v1399 = vld [vmem:[%s1198 + $0x1c] sm:$0xf]
      %v1400 = vld [vmem:[%s1198 + $0x20] sm:$0x1]
      %v1401 = vld [vmem:[%s1198 + $0x24] sm:$0xf]
      %v1402 = vld [vmem:[%s1198 + $0x28] sm:$0xf]
      %v1403 = vld [vmem:[%s1198 + $0x2c] sm:$0x1]
      %v1404 = vld [vmem:[%s1198 + $0x30] sm:$0xf]
      %v1405 = vld [vmem:[%s1198 + $0x34] sm:$0xf]
      %v1406 = vld [vmem:[%s1198 + $0x38] sm:$0x1]
      %v1407 = vld [vmem:[%s1198 + $0x3c] sm:$0xf]
      %v1408 = vld [vmem:[%s1198 + $0x40] sm:$0xf]
      %v1409 = vld [vmem:[%s1198 + $0x44] sm:$0x1]
      %v1410 = vld [vmem:[%s1198 + $0x48] sm:$0xf]
      %v1411 = vld [vmem:[%s1198 + $0x4c] sm:$0xf]
      %v1412 = vld [vmem:[%s1198 + $0x50] sm:$0x1]
      %v1413 = vld [vmem:[%s1198 + $0x54] sm:$0xf]
      %v1414 = vld [vmem:[%s1198 + $0x58] sm:$0xf]
      %v1415 = vld [vmem:[%s1198 + $0x5c] sm:$0x1]
      %v1416 = vld [vmem:[%s1198 + $0x60] sm:$0xf]
      %v1417 = vld [vmem:[%s1198 + $0x64] sm:$0xf]
      %v1418 = vld [vmem:[%s1198 + $0x68] sm:$0x1]
      %v1419 = vld [vmem:[%s1198 + $0x6c] sm:$0xf]
      %v1420 = vld [vmem:[%s1198 + $0x70] sm:$0xf]
      %v1421 = vld [vmem:[%s1198 + $0x74] sm:$0x1]
      %v1422 = vld [vmem:[%s1198 + $0x78] sm:$0xf]
      %v1423 = vld [vmem:[%s1198 + $0x7c] sm:$0xf]
      %v1424 = vld [vmem:[%s1198 + $0x80] sm:$0x1]
      %v1425 = vld [vmem:[%s1198 + $0x84] sm:$0xf]
      %v1426 = vld [vmem:[%s1198 + $0x88] sm:$0xf]
      %v1427 = vld [vmem:[%s1198 + $0x8c] sm:$0x1]
      %v1428 = vld [vmem:[%s1198 + $0x90] sm:$0xf]
      %v1429 = vld [vmem:[%s1198 + $0x94] sm:$0xf]
      %v1430 = vld [vmem:[%s1198 + $0x98] sm:$0x1]
      %v1431 = vld [vmem:[%s1198 + $0x9c] sm:$0xf]
      %v1432 = vld [vmem:[%s1198 + $0xa0] sm:$0xf]
      %v1433 = vld [vmem:[%s1198 + $0xa4] sm:$0x1]
      %v1434 = vld [vmem:[%s1198 + $0xa8] sm:$0xf]
      %v1435 = vld [vmem:[%s1198 + $0xac] sm:$0xf]
      %v1436 = vld [vmem:[%s1198 + $0xb0] sm:$0x1]
      %v1437 = vld [vmem:[%s1198 + $0xb4] sm:$0xf]
      %v1438 = vld [vmem:[%s1198 + $0xb8] sm:$0xf]
      %v1439 = vld [vmem:[%s1198 + $0xbc] sm:$0x1]
      %v1441 = vshrl.u32 %v1392, 16
      %v1443 = vrot.slane %v1441, 4
      %v1444 = vshll.u32 %v1392, 16
      %v1446 = vrot.slane %v1444, 5
      %v1447 = vor.u32 %v1443, %v1446
      %v1448 = vrot.slane %v1447, 4
      %v1450 = vshll.u32 %v1393, 16
      %v1452 = vrot.slane %v1450, 5
      %v1453 = vsel %vm341, %v1448, %v1452
      %v1454 = vshrl.u32 %v1393, 16
      %v1456 = vrot.slane %v1454, 4
      %v1457 = vor.u32 %v1456, %v1452
      %v1458 = vrot.slane %v1457, 4
      %v1460 = vshll.u32 %v1394, 16
      %v1462 = vrot.slane %v1460, 5
      %v1463 = vsel %vm341, %v1458, %v1462
      %v1465 = vshrl.u32 %v1395, 16
      %v1467 = vrot.slane %v1465, 4
      %v1468 = vshll.u32 %v1395, 16
      %v1470 = vrot.slane %v1468, 5
      %v1471 = vor.u32 %v1467, %v1470
      %v1472 = vrot.slane %v1471, 4
      %v1474 = vshll.u32 %v1396, 16
      %v1476 = vrot.slane %v1474, 5
      %v1477 = vsel %vm341, %v1472, %v1476
      %v1478 = vshrl.u32 %v1396, 16
      %v1480 = vrot.slane %v1478, 4
      %v1481 = vor.u32 %v1480, %v1476
      %v1482 = vrot.slane %v1481, 4
      %v1484 = vshll.u32 %v1397, 16
      %v1486 = vrot.slane %v1484, 5
      %v1487 = vsel %vm341, %v1482, %v1486
      %v1489 = vshrl.u32 %v1398, 16
      %v1491 = vrot.slane %v1489, 4
      %v1492 = vshll.u32 %v1398, 16
      %v1494 = vrot.slane %v1492, 5
      %v1495 = vor.u32 %v1491, %v1494
      %v1496 = vrot.slane %v1495, 4
      %v1498 = vshll.u32 %v1399, 16
      %v1500 = vrot.slane %v1498, 5
      %v1501 = vsel %vm341, %v1496, %v1500
      %v1502 = vshrl.u32 %v1399, 16
      %v1504 = vrot.slane %v1502, 4
      %v1505 = vor.u32 %v1504, %v1500
      %v1506 = vrot.slane %v1505, 4
      %v1508 = vshll.u32 %v1400, 16
      %v1510 = vrot.slane %v1508, 5
      %v1511 = vsel %vm341, %v1506, %v1510
      %v1513 = vshrl.u32 %v1401, 16
      %v1515 = vrot.slane %v1513, 4
      %v1516 = vshll.u32 %v1401, 16
      %v1518 = vrot.slane %v1516, 5
      %v1519 = vor.u32 %v1515, %v1518
      %v1520 = vrot.slane %v1519, 4
      %v1522 = vshll.u32 %v1402, 16
      %v1524 = vrot.slane %v1522, 5
      %v1525 = vsel %vm341, %v1520, %v1524
      %v1526 = vshrl.u32 %v1402, 16
      %v1528 = vrot.slane %v1526, 4
      %v1529 = vor.u32 %v1528, %v1524
      %v1530 = vrot.slane %v1529, 4
      %v1532 = vshll.u32 %v1403, 16
      %v1534 = vrot.slane %v1532, 5
      %v1535 = vsel %vm341, %v1530, %v1534
      %v1537 = vshrl.u32 %v1404, 16
      %v1539 = vrot.slane %v1537, 4
      %v1540 = vshll.u32 %v1404, 16
      %v1542 = vrot.slane %v1540, 5
      %v1543 = vor.u32 %v1539, %v1542
      %v1544 = vrot.slane %v1543, 4
      %v1546 = vshll.u32 %v1405, 16
      %v1548 = vrot.slane %v1546, 5
      %v1549 = vsel %vm341, %v1544, %v1548
      %v1550 = vshrl.u32 %v1405, 16
      %v1552 = vrot.slane %v1550, 4
      %v1553 = vor.u32 %v1552, %v1548
      %v1554 = vrot.slane %v1553, 4
      %v1556 = vshll.u32 %v1406, 16
      %v1558 = vrot.slane %v1556, 5
      %v1559 = vsel %vm341, %v1554, %v1558
      %v1561 = vshrl.u32 %v1407, 16
      %v1563 = vrot.slane %v1561, 4
      %v1564 = vshll.u32 %v1407, 16
      %v1566 = vrot.slane %v1564, 5
      %v1567 = vor.u32 %v1563, %v1566
      %v1568 = vrot.slane %v1567, 4
      %v1570 = vshll.u32 %v1408, 16
      %v1572 = vrot.slane %v1570, 5
      %v1573 = vsel %vm341, %v1568, %v1572
      %v1574 = vshrl.u32 %v1408, 16
      %v1576 = vrot.slane %v1574, 4
      %v1577 = vor.u32 %v1576, %v1572
      %v1578 = vrot.slane %v1577, 4
      %v1580 = vshll.u32 %v1409, 16
      %v1582 = vrot.slane %v1580, 5
      %v1583 = vsel %vm341, %v1578, %v1582
      %v1585 = vshrl.u32 %v1410, 16
      %v1587 = vrot.slane %v1585, 4
      %v1588 = vshll.u32 %v1410, 16
      %v1590 = vrot.slane %v1588, 5
      %v1591 = vor.u32 %v1587, %v1590
      %v1592 = vrot.slane %v1591, 4
      %v1594 = vshll.u32 %v1411, 16
      %v1596 = vrot.slane %v1594, 5
      %v1597 = vsel %vm341, %v1592, %v1596
      %v1598 = vshrl.u32 %v1411, 16
      %v1600 = vrot.slane %v1598, 4
      %v1601 = vor.u32 %v1600, %v1596
      %v1602 = vrot.slane %v1601, 4
      %v1604 = vshll.u32 %v1412, 16
      %v1606 = vrot.slane %v1604, 5
      %v1607 = vsel %vm341, %v1602, %v1606
      %v1609 = vshrl.u32 %v1413, 16
      %v1611 = vrot.slane %v1609, 4
      %v1612 = vshll.u32 %v1413, 16
      %v1614 = vrot.slane %v1612, 5
      %v1615 = vor.u32 %v1611, %v1614
      %v1616 = vrot.slane %v1615, 4
      %v1618 = vshll.u32 %v1414, 16
      %v1620 = vrot.slane %v1618, 5
      %v1621 = vsel %vm341, %v1616, %v1620
      %v1622 = vshrl.u32 %v1414, 16
      %v1624 = vrot.slane %v1622, 4
      %v1625 = vor.u32 %v1624, %v1620
      %v1626 = vrot.slane %v1625, 4
      %v1628 = vshll.u32 %v1415, 16
      %v1630 = vrot.slane %v1628, 5
      %v1631 = vsel %vm341, %v1626, %v1630
      %v1633 = vshrl.u32 %v1416, 16
      %v1635 = vrot.slane %v1633, 4
      %v1636 = vshll.u32 %v1416, 16
      %v1638 = vrot.slane %v1636, 5
      %v1639 = vor.u32 %v1635, %v1638
      %v1640 = vrot.slane %v1639, 4
      %v1642 = vshll.u32 %v1417, 16
      %v1644 = vrot.slane %v1642, 5
      %v1645 = vsel %vm341, %v1640, %v1644
      %v1646 = vshrl.u32 %v1417, 16
      %v1648 = vrot.slane %v1646, 4
      %v1649 = vor.u32 %v1648, %v1644
      %v1650 = vrot.slane %v1649, 4
      %v1652 = vshll.u32 %v1418, 16
      %v1654 = vrot.slane %v1652, 5
      %v1655 = vsel %vm341, %v1650, %v1654
      %v1657 = vshrl.u32 %v1419, 16
      %v1659 = vrot.slane %v1657, 4
      %v1660 = vshll.u32 %v1419, 16
      %v1662 = vrot.slane %v1660, 5
      %v1663 = vor.u32 %v1659, %v1662
      %v1664 = vrot.slane %v1663, 4
      %v1666 = vshll.u32 %v1420, 16
      %v1668 = vrot.slane %v1666, 5
      %v1669 = vsel %vm341, %v1664, %v1668
      %v1670 = vshrl.u32 %v1420, 16
      %v1672 = vrot.slane %v1670, 4
      %v1673 = vor.u32 %v1672, %v1668
      %v1674 = vrot.slane %v1673, 4
      %v1676 = vshll.u32 %v1421, 16
      %v1678 = vrot.slane %v1676, 5
      %v1679 = vsel %vm341, %v1674, %v1678
      %v1681 = vshrl.u32 %v1422, 16
      %v1683 = vrot.slane %v1681, 4
      %v1684 = vshll.u32 %v1422, 16
      %v1686 = vrot.slane %v1684, 5
      %v1687 = vor.u32 %v1683, %v1686
      %v1688 = vrot.slane %v1687, 4
      %v1690 = vshll.u32 %v1423, 16
      %v1692 = vrot.slane %v1690, 5
      %v1693 = vsel %vm341, %v1688, %v1692
      %v1694 = vshrl.u32 %v1423, 16
      %v1696 = vrot.slane %v1694, 4
      %v1697 = vor.u32 %v1696, %v1692
      %v1698 = vrot.slane %v1697, 4
      %v1700 = vshll.u32 %v1424, 16
      %v1702 = vrot.slane %v1700, 5
      %v1703 = vsel %vm341, %v1698, %v1702
      %v1705 = vshrl.u32 %v1425, 16
      %v1707 = vrot.slane %v1705, 4
      %v1708 = vshll.u32 %v1425, 16
      %v1710 = vrot.slane %v1708, 5
      %v1711 = vor.u32 %v1707, %v1710
      %v1712 = vrot.slane %v1711, 4
      %v1714 = vshll.u32 %v1426, 16
      %v1716 = vrot.slane %v1714, 5
      %v1717 = vsel %vm341, %v1712, %v1716
      %v1718 = vshrl.u32 %v1426, 16
      %v1720 = vrot.slane %v1718, 4
      %v1721 = vor.u32 %v1720, %v1716
      %v1722 = vrot.slane %v1721, 4
      %v1724 = vshll.u32 %v1427, 16
      %v1726 = vrot.slane %v1724, 5
      %v1727 = vsel %vm341, %v1722, %v1726
      %v1729 = vshrl.u32 %v1428, 16
      %v1731 = vrot.slane %v1729, 4
      %v1732 = vshll.u32 %v1428, 16
      %v1734 = vrot.slane %v1732, 5
      %v1735 = vor.u32 %v1731, %v1734
      %v1736 = vrot.slane %v1735, 4
      %v1738 = vshll.u32 %v1429, 16
      %v1740 = vrot.slane %v1738, 5
      %v1741 = vsel %vm341, %v1736, %v1740
      %v1742 = vshrl.u32 %v1429, 16
      %v1744 = vrot.slane %v1742, 4
      %v1745 = vor.u32 %v1744, %v1740
      %v1746 = vrot.slane %v1745, 4
      %v1748 = vshll.u32 %v1430, 16
      %v1750 = vrot.slane %v1748, 5
      %v1751 = vsel %vm341, %v1746, %v1750
      %v1753 = vshrl.u32 %v1431, 16
      %v1755 = vrot.slane %v1753, 4
      %v1756 = vshll.u32 %v1431, 16
      %v1758 = vrot.slane %v1756, 5
      %v1759 = vor.u32 %v1755, %v1758
      %v1760 = vrot.slane %v1759, 4
      %v1762 = vshll.u32 %v1432, 16
      %v1764 = vrot.slane %v1762, 5
      %v1765 = vsel %vm341, %v1760, %v1764
      %v1766 = vshrl.u32 %v1432, 16
      %v1768 = vrot.slane %v1766, 4
      %v1769 = vor.u32 %v1768, %v1764
      %v1770 = vrot.slane %v1769, 4
      %v1772 = vshll.u32 %v1433, 16
      %v1774 = vrot.slane %v1772, 5
      %v1775 = vsel %vm341, %v1770, %v1774
      %v1777 = vshrl.u32 %v1434, 16
      %v1779 = vrot.slane %v1777, 4
      %v1780 = vshll.u32 %v1434, 16
      %v1782 = vrot.slane %v1780, 5
      %v1783 = vor.u32 %v1779, %v1782
      %v1784 = vrot.slane %v1783, 4
      %v1786 = vshll.u32 %v1435, 16
      %v1788 = vrot.slane %v1786, 5
      %v1789 = vsel %vm341, %v1784, %v1788
      %v1790 = vshrl.u32 %v1435, 16
      %v1792 = vrot.slane %v1790, 4
      %v1793 = vor.u32 %v1792, %v1788
      %v1794 = vrot.slane %v1793, 4
      %v1796 = vshll.u32 %v1436, 16
      %v1798 = vrot.slane %v1796, 5
      %v1799 = vsel %vm341, %v1794, %v1798
      %v1801 = vshrl.u32 %v1437, 16
      %v1803 = vrot.slane %v1801, 4
      %v1804 = vshll.u32 %v1437, 16
      %v1806 = vrot.slane %v1804, 5
      %v1807 = vor.u32 %v1803, %v1806
      %v1808 = vrot.slane %v1807, 4
      %v1810 = vshll.u32 %v1438, 16
      %v1812 = vrot.slane %v1810, 5
      %v1813 = vsel %vm341, %v1808, %v1812
      %v1814 = vshrl.u32 %v1438, 16
      %v1816 = vrot.slane %v1814, 4
      %v1817 = vor.u32 %v1816, %v1812
      %v1818 = vrot.slane %v1817, 4
      %v1820 = vshll.u32 %v1439, 16
      %v1822 = vrot.slane %v1820, 5
      %v1823 = vsel %vm341, %v1818, %v1822
      %1824 = vrot.lane.b32.xlu0 %v1453, 16
      %v1825 = vpop.permute.xlu0 %1824
      %1826 = vrot.lane.b32.xlu0 %v1463, 16
      %v1827 = vpop.permute.xlu0 %1826
      %1828 = vrot.lane.b32.xlu0 %v1477, 16
      %v1829 = vpop.permute.xlu0 %1828
      %1830 = vrot.lane.b32.xlu0 %v1487, 16
      %v1831 = vpop.permute.xlu0 %1830
      %1832 = vrot.lane.b32.xlu0 %v1501, 16
      %v1833 = vpop.permute.xlu0 %1832
      %1834 = vrot.lane.b32.xlu0 %v1511, 16
      %v1835 = vpop.permute.xlu0 %1834
      %1836 = vrot.lane.b32.xlu0 %v1525, 16
      %v1837 = vpop.permute.xlu0 %1836
      %1838 = vrot.lane.b32.xlu0 %v1535, 16
      %v1839 = vpop.permute.xlu0 %1838
      %1840 = vrot.lane.b32.xlu0 %v1549, 16
      %v1841 = vpop.permute.xlu0 %1840
      %1842 = vrot.lane.b32.xlu0 %v1559, 16
      %v1843 = vpop.permute.xlu0 %1842
      %1844 = vrot.lane.b32.xlu0 %v1573, 16
      %v1845 = vpop.permute.xlu0 %1844
      %1846 = vrot.lane.b32.xlu0 %v1583, 16
      %v1847 = vpop.permute.xlu0 %1846
      %1848 = vrot.lane.b32.xlu0 %v1597, 16
      %v1849 = vpop.permute.xlu0 %1848
      %1850 = vrot.lane.b32.xlu0 %v1607, 16
      %v1851 = vpop.permute.xlu0 %1850
      %1852 = vrot.lane.b32.xlu0 %v1621, 16
      %v1853 = vpop.permute.xlu0 %1852
      %1854 = vrot.lane.b32.xlu0 %v1631, 16
      %v1855 = vpop.permute.xlu0 %1854
      %1856 = vrot.lane.b32.xlu0 %v1645, 16
      %v1857 = vpop.permute.xlu0 %1856
      %1858 = vrot.lane.b32.xlu0 %v1655, 16
      %v1859 = vpop.permute.xlu0 %1858
      %1860 = vrot.lane.b32.xlu0 %v1669, 16
      %v1861 = vpop.permute.xlu0 %1860
      %1862 = vrot.lane.b32.xlu0 %v1679, 16
      %v1863 = vpop.permute.xlu0 %1862
      %1864 = vrot.lane.b32.xlu0 %v1693, 16
      %v1865 = vpop.permute.xlu0 %1864
      %1866 = vrot.lane.b32.xlu0 %v1703, 16
      %v1867 = vpop.permute.xlu0 %1866
      %1868 = vrot.lane.b32.xlu0 %v1717, 16
      %v1869 = vpop.permute.xlu0 %1868
      %1870 = vrot.lane.b32.xlu0 %v1727, 16
      %v1871 = vpop.permute.xlu0 %1870
      %1872 = vrot.lane.b32.xlu0 %v1741, 16
      %v1873 = vpop.permute.xlu0 %1872
      %1874 = vrot.lane.b32.xlu0 %v1751, 16
      %v1875 = vpop.permute.xlu0 %1874
      %1876 = vrot.lane.b32.xlu0 %v1765, 16
      %v1877 = vpop.permute.xlu0 %1876
      %1878 = vrot.lane.b32.xlu0 %v1775, 16
      %v1879 = vpop.permute.xlu0 %1878
      %1880 = vrot.lane.b32.xlu0 %v1789, 16
      %v1881 = vpop.permute.xlu0 %1880
      %1882 = vrot.lane.b32.xlu0 %v1799, 16
      %v1883 = vpop.permute.xlu0 %1882
      %1884 = vrot.lane.b32.xlu0 %v1813, 16
      %v1885 = vpop.permute.xlu0 %1884
      %1886 = vrot.lane.b32.xlu0 %v1823, 16
      %v1887 = vpop.permute.xlu0 %1886
      %vm1920 = vcmask 158848
      %1921 = vst.msk [vmem:[#allocation2] sm:$0xf] %vm1920, %v1825
      %1922 = vst.msk [vmem:[#allocation2 + $0x4] sm:$0xf] %vm1920, %v1827
      %1923 = vst.msk [vmem:[#allocation2 + $0x8] sm:$0xf] %vm1920, %v1829
      %1924 = vst.msk [vmem:[#allocation2 + $0xc] sm:$0xf] %vm1920, %v1831
      %1925 = vst.msk [vmem:[#allocation2 + $0x10] sm:$0xf] %vm1920, %v1833
      %1926 = vst.msk [vmem:[#allocation2 + $0x14] sm:$0xf] %vm1920, %v1835
      %1927 = vst.msk [vmem:[#allocation2 + $0x18] sm:$0xf] %vm1920, %v1837
      %1928 = vst.msk [vmem:[#allocation2 + $0x1c] sm:$0xf] %vm1920, %v1839
      %1929 = vst.msk [vmem:[#allocation2 + $0x20] sm:$0xf] %vm1920, %v1841
      %1930 = vst.msk [vmem:[#allocation2 + $0x24] sm:$0xf] %vm1920, %v1843
      %1931 = vst.msk [vmem:[#allocation2 + $0x28] sm:$0xf] %vm1920, %v1845
      %1932 = vst.msk [vmem:[#allocation2 + $0x2c] sm:$0xf] %vm1920, %v1847
      %1933 = vst.msk [vmem:[#allocation2 + $0x30] sm:$0xf] %vm1920, %v1849
      %1934 = vst.msk [vmem:[#allocation2 + $0x34] sm:$0xf] %vm1920, %v1851
      %1935 = vst.msk [vmem:[#allocation2 + $0x38] sm:$0xf] %vm1920, %v1853
      %1936 = vst.msk [vmem:[#allocation2 + $0x3c] sm:$0xf] %vm1920, %v1855
      %1937 = vst.msk [vmem:[#allocation2 + $0x40] sm:$0xf] %vm1920, %v1857
      %1938 = vst.msk [vmem:[#allocation2 + $0x44] sm:$0xf] %vm1920, %v1859
      %1939 = vst.msk [vmem:[#allocation2 + $0x48] sm:$0xf] %vm1920, %v1861
      %1940 = vst.msk [vmem:[#allocation2 + $0x4c] sm:$0xf] %vm1920, %v1863
      %1941 = vst.msk [vmem:[#allocation2 + $0x50] sm:$0xf] %vm1920, %v1865
      %1942 = vst.msk [vmem:[#allocation2 + $0x54] sm:$0xf] %vm1920, %v1867
      %1943 = vst.msk [vmem:[#allocation2 + $0x58] sm:$0xf] %vm1920, %v1869
      %1944 = vst.msk [vmem:[#allocation2 + $0x5c] sm:$0xf] %vm1920, %v1871
      %1945 = vst.msk [vmem:[#allocation2 + $0x60] sm:$0xf] %vm1920, %v1873
      %1946 = vst.msk [vmem:[#allocation2 + $0x64] sm:$0xf] %vm1920, %v1875
      %1947 = vst.msk [vmem:[#allocation2 + $0x68] sm:$0xf] %vm1920, %v1877
      %1948 = vst.msk [vmem:[#allocation2 + $0x6c] sm:$0xf] %vm1920, %v1879
      %1949 = vst.msk [vmem:[#allocation2 + $0x70] sm:$0xf] %vm1920, %v1881
      %1950 = vst.msk [vmem:[#allocation2 + $0x74] sm:$0xf] %vm1920, %v1883
      %1951 = vst.msk [vmem:[#allocation2 + $0x78] sm:$0xf] %vm1920, %v1885
      %1952 = vst.msk [vmem:[#allocation2 + $0x7c] sm:$0xf] %vm1920, %v1887
      %v1953 = vld [vmem:[%s1198] sm:$0xe]
      %v1954 = vld [vmem:[%s1198 + $0x4] sm:$0xf]
      %v1955 = vld [vmem:[%s1198 + $0x8] sm:$0x1]
      %v1956 = vld [vmem:[%s1198 + $0xc] sm:$0xe]
      %v1957 = vld [vmem:[%s1198 + $0x10] sm:$0xf]
      %v1958 = vld [vmem:[%s1198 + $0x14] sm:$0x1]
      %v1959 = vld [vmem:[%s1198 + $0x18] sm:$0xe]
      %v1960 = vld [vmem:[%s1198 + $0x1c] sm:$0xf]
      %v1961 = vld [vmem:[%s1198 + $0x20] sm:$0x1]
      %v1962 = vld [vmem:[%s1198 + $0x24] sm:$0xe]
      %v1963 = vld [vmem:[%s1198 + $0x28] sm:$0xf]
      %v1964 = vld [vmem:[%s1198 + $0x2c] sm:$0x1]
      %v1965 = vld [vmem:[%s1198 + $0x30] sm:$0xe]
      %v1966 = vld [vmem:[%s1198 + $0x34] sm:$0xf]
      %v1967 = vld [vmem:[%s1198 + $0x38] sm:$0x1]
      %v1968 = vld [vmem:[%s1198 + $0x3c] sm:$0xe]
      %v1969 = vld [vmem:[%s1198 + $0x40] sm:$0xf]
      %v1970 = vld [vmem:[%s1198 + $0x44] sm:$0x1]
      %v1971 = vld [vmem:[%s1198 + $0x48] sm:$0xe]
      %v1972 = vld [vmem:[%s1198 + $0x4c] sm:$0xf]
      %v1973 = vld [vmem:[%s1198 + $0x50] sm:$0x1]
      %v1974 = vld [vmem:[%s1198 + $0x54] sm:$0xe]
      %v1975 = vld [vmem:[%s1198 + $0x58] sm:$0xf]
      %v1976 = vld [vmem:[%s1198 + $0x5c] sm:$0x1]
      %v1977 = vld [vmem:[%s1198 + $0x60] sm:$0xe]
      %v1978 = vld [vmem:[%s1198 + $0x64] sm:$0xf]
      %v1979 = vld [vmem:[%s1198 + $0x68] sm:$0x1]
      %v1980 = vld [vmem:[%s1198 + $0x6c] sm:$0xe]
      %v1981 = vld [vmem:[%s1198 + $0x70] sm:$0xf]
      %v1982 = vld [vmem:[%s1198 + $0x74] sm:$0x1]
      %v1983 = vld [vmem:[%s1198 + $0x78] sm:$0xe]
      %v1984 = vld [vmem:[%s1198 + $0x7c] sm:$0xf]
      %v1985 = vld [vmem:[%s1198 + $0x80] sm:$0x1]
      %v1986 = vld [vmem:[%s1198 + $0x84] sm:$0xe]
      %v1987 = vld [vmem:[%s1198 + $0x88] sm:$0xf]
      %v1988 = vld [vmem:[%s1198 + $0x8c] sm:$0x1]
      %v1989 = vld [vmem:[%s1198 + $0x90] sm:$0xe]
      %v1990 = vld [vmem:[%s1198 + $0x94] sm:$0xf]
      %v1991 = vld [vmem:[%s1198 + $0x98] sm:$0x1]
      %v1992 = vld [vmem:[%s1198 + $0x9c] sm:$0xe]
      %v1993 = vld [vmem:[%s1198 + $0xa0] sm:$0xf]
      %v1994 = vld [vmem:[%s1198 + $0xa4] sm:$0x1]
      %v1995 = vld [vmem:[%s1198 + $0xa8] sm:$0xe]
      %v1996 = vld [vmem:[%s1198 + $0xac] sm:$0xf]
      %v1997 = vld [vmem:[%s1198 + $0xb0] sm:$0x1]
      %v1998 = vld [vmem:[%s1198 + $0xb4] sm:$0xe]
      %v1999 = vld [vmem:[%s1198 + $0xb8] sm:$0xf]
      %v2000 = vld [vmem:[%s1198 + $0xbc] sm:$0x1]
      %v2049 = vrot.slane %v1953, 5
      %v2050 = vrot.slane %v2049, 4
      %v2051 = vrot.slane %v1954, 5
      %v2052 = vsel %vm953, %v2050, %v2051
      %v2053 = vrot.slane %v2051, 4
      %v2054 = vrot.slane %v1955, 5
      %v2055 = vsel %vm953, %v2053, %v2054
      %v2056 = vrot.slane %v1956, 5
      %v2057 = vrot.slane %v2056, 4
      %v2058 = vrot.slane %v1957, 5
      %v2059 = vsel %vm953, %v2057, %v2058
      %v2060 = vrot.slane %v2058, 4
      %v2061 = vrot.slane %v1958, 5
      %v2062 = vsel %vm953, %v2060, %v2061
      %v2063 = vrot.slane %v1959, 5
      %v2064 = vrot.slane %v2063, 4
      %v2065 = vrot.slane %v1960, 5
      %v2066 = vsel %vm953, %v2064, %v2065
      %v2067 = vrot.slane %v2065, 4
      %v2068 = vrot.slane %v1961, 5
      %v2069 = vsel %vm953, %v2067, %v2068
      %v2070 = vrot.slane %v1962, 5
      %v2071 = vrot.slane %v2070, 4
      %v2072 = vrot.slane %v1963, 5
      %v2073 = vsel %vm953, %v2071, %v2072
      %v2074 = vrot.slane %v2072, 4
      %v2075 = vrot.slane %v1964, 5
      %v2076 = vsel %vm953, %v2074, %v2075
      %v2077 = vrot.slane %v1965, 5
      %v2078 = vrot.slane %v2077, 4
      %v2079 = vrot.slane %v1966, 5
      %v2080 = vsel %vm953, %v2078, %v2079
      %v2081 = vrot.slane %v2079, 4
      %v2082 = vrot.slane %v1967, 5
      %v2083 = vsel %vm953, %v2081, %v2082
      %v2084 = vrot.slane %v1968, 5
      %v2085 = vrot.slane %v2084, 4
      %v2086 = vrot.slane %v1969, 5
      %v2087 = vsel %vm953, %v2085, %v2086
      %v2088 = vrot.slane %v2086, 4
      %v2089 = vrot.slane %v1970, 5
      %v2090 = vsel %vm953, %v2088, %v2089
      %v2091 = vrot.slane %v1971, 5
      %v2092 = vrot.slane %v2091, 4
      %v2093 = vrot.slane %v1972, 5
      %v2094 = vsel %vm953, %v2092, %v2093
      %v2095 = vrot.slane %v2093, 4
      %v2096 = vrot.slane %v1973, 5
      %v2097 = vsel %vm953, %v2095, %v2096
      %v2098 = vrot.slane %v1974, 5
      %v2099 = vrot.slane %v2098, 4
      %v2100 = vrot.slane %v1975, 5
      %v2101 = vsel %vm953, %v2099, %v2100
      %v2102 = vrot.slane %v2100, 4
      %v2103 = vrot.slane %v1976, 5
      %v2104 = vsel %vm953, %v2102, %v2103
      %v2105 = vrot.slane %v1977, 5
      %v2106 = vrot.slane %v2105, 4
      %v2107 = vrot.slane %v1978, 5
      %v2108 = vsel %vm953, %v2106, %v2107
      %v2109 = vrot.slane %v2107, 4
      %v2110 = vrot.slane %v1979, 5
      %v2111 = vsel %vm953, %v2109, %v2110
      %v2112 = vrot.slane %v1980, 5
      %v2113 = vrot.slane %v2112, 4
      %v2114 = vrot.slane %v1981, 5
      %v2115 = vsel %vm953, %v2113, %v2114
      %v2116 = vrot.slane %v2114, 4
      %v2117 = vrot.slane %v1982, 5
      %v2118 = vsel %vm953, %v2116, %v2117
      %v2119 = vrot.slane %v1983, 5
      %v2120 = vrot.slane %v2119, 4
      %v2121 = vrot.slane %v1984, 5
      %v2122 = vsel %vm953, %v2120, %v2121
      %v2123 = vrot.slane %v2121, 4
      %v2124 = vrot.slane %v1985, 5
      %v2125 = vsel %vm953, %v2123, %v2124
      %v2126 = vrot.slane %v1986, 5
      %v2127 = vrot.slane %v2126, 4
      %v2128 = vrot.slane %v1987, 5
      %v2129 = vsel %vm953, %v2127, %v2128
      %v2130 = vrot.slane %v2128, 4
      %v2131 = vrot.slane %v1988, 5
      %v2132 = vsel %vm953, %v2130, %v2131
      %v2133 = vrot.slane %v1989, 5
      %v2134 = vrot.slane %v2133, 4
      %v2135 = vrot.slane %v1990, 5
      %v2136 = vsel %vm953, %v2134, %v2135
      %v2137 = vrot.slane %v2135, 4
      %v2138 = vrot.slane %v1991, 5
      %v2139 = vsel %vm953, %v2137, %v2138
      %v2140 = vrot.slane %v1992, 5
      %v2141 = vrot.slane %v2140, 4
      %v2142 = vrot.slane %v1993, 5
      %v2143 = vsel %vm953, %v2141, %v2142
      %v2144 = vrot.slane %v2142, 4
      %v2145 = vrot.slane %v1994, 5
      %v2146 = vsel %vm953, %v2144, %v2145
      %v2147 = vrot.slane %v1995, 5
      %v2148 = vrot.slane %v2147, 4
      %v2149 = vrot.slane %v1996, 5
      %v2150 = vsel %vm953, %v2148, %v2149
      %v2151 = vrot.slane %v2149, 4
      %v2152 = vrot.slane %v1997, 5
      %v2153 = vsel %vm953, %v2151, %v2152
      %v2154 = vrot.slane %v1998, 5
      %v2155 = vrot.slane %v2154, 4
      %v2156 = vrot.slane %v1999, 5
      %v2157 = vsel %vm953, %v2155, %v2156
      %v2158 = vrot.slane %v2156, 4
      %v2159 = vrot.slane %v2000, 5
      %v2160 = vsel %vm953, %v2158, %v2159
      %2161 = vrot.lane.b32.xlu0 %v2052, 20
      %v2162 = vpop.permute.xlu0 %2161
      %2163 = vrot.lane.b32.xlu0 %v2055, 20
      %v2164 = vpop.permute.xlu0 %2163
      %2165 = vrot.lane.b32.xlu0 %v2059, 20
      %v2166 = vpop.permute.xlu0 %2165
      %2167 = vrot.lane.b32.xlu0 %v2062, 20
      %v2168 = vpop.permute.xlu0 %2167
      %2169 = vrot.lane.b32.xlu0 %v2066, 20
      %v2170 = vpop.permute.xlu0 %2169
      %2171 = vrot.lane.b32.xlu0 %v2069, 20
      %v2172 = vpop.permute.xlu0 %2171
      %2173 = vrot.lane.b32.xlu0 %v2073, 20
      %v2174 = vpop.permute.xlu0 %2173
      %2175 = vrot.lane.b32.xlu0 %v2076, 20
      %v2176 = vpop.permute.xlu0 %2175
      %2177 = vrot.lane.b32.xlu0 %v2080, 20
      %v2178 = vpop.permute.xlu0 %2177
      %2179 = vrot.lane.b32.xlu0 %v2083, 20
      %v2180 = vpop.permute.xlu0 %2179
      %2181 = vrot.lane.b32.xlu0 %v2087, 20
      %v2182 = vpop.permute.xlu0 %2181
      %2183 = vrot.lane.b32.xlu0 %v2090, 20
      %v2184 = vpop.permute.xlu0 %2183
      %2185 = vrot.lane.b32.xlu0 %v2094, 20
      %v2186 = vpop.permute.xlu0 %2185
      %2187 = vrot.lane.b32.xlu0 %v2097, 20
      %v2188 = vpop.permute.xlu0 %2187
      %2189 = vrot.lane.b32.xlu0 %v2101, 20
      %v2190 = vpop.permute.xlu0 %2189
      %2191 = vrot.lane.b32.xlu0 %v2104, 20
      %v2192 = vpop.permute.xlu0 %2191
      %2193 = vrot.lane.b32.xlu0 %v2108, 20
      %v2194 = vpop.permute.xlu0 %2193
      %2195 = vrot.lane.b32.xlu0 %v2111, 20
      %v2196 = vpop.permute.xlu0 %2195
      %2197 = vrot.lane.b32.xlu0 %v2115, 20
      %v2198 = vpop.permute.xlu0 %2197
      %2199 = vrot.lane.b32.xlu0 %v2118, 20
      %v2200 = vpop.permute.xlu0 %2199
      %2201 = vrot.lane.b32.xlu0 %v2122, 20
      %v2202 = vpop.permute.xlu0 %2201
      %2203 = vrot.lane.b32.xlu0 %v2125, 20
      %v2204 = vpop.permute.xlu0 %2203
      %2205 = vrot.lane.b32.xlu0 %v2129, 20
      %v2206 = vpop.permute.xlu0 %2205
      %2207 = vrot.lane.b32.xlu0 %v2132, 20
      %v2208 = vpop.permute.xlu0 %2207
      %2209 = vrot.lane.b32.xlu0 %v2136, 20
      %v2210 = vpop.permute.xlu0 %2209
      %2211 = vrot.lane.b32.xlu0 %v2139, 20
      %v2212 = vpop.permute.xlu0 %2211
      %2213 = vrot.lane.b32.xlu0 %v2143, 20
      %v2214 = vpop.permute.xlu0 %2213
      %2215 = vrot.lane.b32.xlu0 %v2146, 20
      %v2216 = vpop.permute.xlu0 %2215
      %2217 = vrot.lane.b32.xlu0 %v2150, 20
      %v2218 = vpop.permute.xlu0 %2217
      %2219 = vrot.lane.b32.xlu0 %v2153, 20
      %v2220 = vpop.permute.xlu0 %2219
      %2221 = vrot.lane.b32.xlu0 %v2157, 20
      %v2222 = vpop.permute.xlu0 %2221
      %2223 = vrot.lane.b32.xlu0 %v2160, 20
      %v2224 = vpop.permute.xlu0 %2223
      %vm2257 = vcmask 191648
      %2258 = vst.msk [vmem:[#allocation2] sm:$0xf] %vm2257, %v2162
      %2259 = vst.msk [vmem:[#allocation2 + $0x4] sm:$0xf] %vm2257, %v2164
      %2260 = vst.msk [vmem:[#allocation2 + $0x8] sm:$0xf] %vm2257, %v2166
      %2261 = vst.msk [vmem:[#allocation2 + $0xc] sm:$0xf] %vm2257, %v2168
      %2262 = vst.msk [vmem:[#allocation2 + $0x10] sm:$0xf] %vm2257, %v2170
      %2263 = vst.msk [vmem:[#allocation2 + $0x14] sm:$0xf] %vm2257, %v2172
      %2264 = vst.msk [vmem:[#allocation2 + $0x18] sm:$0xf] %vm2257, %v2174
      %2265 = vst.msk [vmem:[#allocation2 + $0x1c] sm:$0xf] %vm2257, %v2176
      %2266 = vst.msk [vmem:[#allocation2 + $0x20] sm:$0xf] %vm2257, %v2178
      %2267 = vst.msk [vmem:[#allocation2 + $0x24] sm:$0xf] %vm2257, %v2180
      %2268 = vst.msk [vmem:[#allocation2 + $0x28] sm:$0xf] %vm2257, %v2182
      %2269 = vst.msk [vmem:[#allocation2 + $0x2c] sm:$0xf] %vm2257, %v2184
      %2270 = vst.msk [vmem:[#allocation2 + $0x30] sm:$0xf] %vm2257, %v2186
      %2271 = vst.msk [vmem:[#allocation2 + $0x34] sm:$0xf] %vm2257, %v2188
      %2272 = vst.msk [vmem:[#allocation2 + $0x38] sm:$0xf] %vm2257, %v2190
      %2273 = vst.msk [vmem:[#allocation2 + $0x3c] sm:$0xf] %vm2257, %v2192
      %2274 = vst.msk [vmem:[#allocation2 + $0x40] sm:$0xf] %vm2257, %v2194
      %2275 = vst.msk [vmem:[#allocation2 + $0x44] sm:$0xf] %vm2257, %v2196
      %2276 = vst.msk [vmem:[#allocation2 + $0x48] sm:$0xf] %vm2257, %v2198
      %2277 = vst.msk [vmem:[#allocation2 + $0x4c] sm:$0xf] %vm2257, %v2200
      %2278 = vst.msk [vmem:[#allocation2 + $0x50] sm:$0xf] %vm2257, %v2202
      %2279 = vst.msk [vmem:[#allocation2 + $0x54] sm:$0xf] %vm2257, %v2204
      %2280 = vst.msk [vmem:[#allocation2 + $0x58] sm:$0xf] %vm2257, %v2206
      %2281 = vst.msk [vmem:[#allocation2 + $0x5c] sm:$0xf] %vm2257, %v2208
      %2282 = vst.msk [vmem:[#allocation2 + $0x60] sm:$0xf] %vm2257, %v2210
      %2283 = vst.msk [vmem:[#allocation2 + $0x64] sm:$0xf] %vm2257, %v2212
      %2284 = vst.msk [vmem:[#allocation2 + $0x68] sm:$0xf] %vm2257, %v2214
      %2285 = vst.msk [vmem:[#allocation2 + $0x6c] sm:$0xf] %vm2257, %v2216
      %2286 = vst.msk [vmem:[#allocation2 + $0x70] sm:$0xf] %vm2257, %v2218
      %2287 = vst.msk [vmem:[#allocation2 + $0x74] sm:$0xf] %vm2257, %v2220
      %2288 = vst.msk [vmem:[#allocation2 + $0x78] sm:$0xf] %vm2257, %v2222
      %2289 = vst.msk [vmem:[#allocation2 + $0x7c] sm:$0xf] %vm2257, %v2224
      %s2290 = sadd.s32 %s222, 2
      %s2291 = smul.u32 %s2290, 3
      %s2292 = smul.addr %s2291, 4
      %s2293 = scalar_lea.vmem %s210, %s2292
      %v2294 = vld [vmem:[%s2293] sm:$0xf]
      %v2295 = vld [vmem:[%s2293 + $0x4] sm:$0xf]
      %v2296 = vld [vmem:[%s2293 + $0xc] sm:$0xf]
      %v2297 = vld [vmem:[%s2293 + $0x10] sm:$0xf]
      %v2298 = vld [vmem:[%s2293 + $0x18] sm:$0xf]
      %v2299 = vld [vmem:[%s2293 + $0x1c] sm:$0xf]
      %v2300 = vld [vmem:[%s2293 + $0x24] sm:$0xf]
      %v2301 = vld [vmem:[%s2293 + $0x28] sm:$0xf]
      %v2302 = vld [vmem:[%s2293 + $0x30] sm:$0xf]
      %v2303 = vld [vmem:[%s2293 + $0x34] sm:$0xf]
      %v2304 = vld [vmem:[%s2293 + $0x3c] sm:$0xf]
      %v2305 = vld [vmem:[%s2293 + $0x40] sm:$0xf]
      %v2306 = vld [vmem:[%s2293 + $0x48] sm:$0xf]
      %v2307 = vld [vmem:[%s2293 + $0x4c] sm:$0xf]
      %v2308 = vld [vmem:[%s2293 + $0x54] sm:$0xf]
      %v2309 = vld [vmem:[%s2293 + $0x58] sm:$0xf]
      %v2310 = vld [vmem:[%s2293 + $0x60] sm:$0xf]
      %v2311 = vld [vmem:[%s2293 + $0x64] sm:$0xf]
      %v2312 = vld [vmem:[%s2293 + $0x6c] sm:$0xf]
      %v2313 = vld [vmem:[%s2293 + $0x70] sm:$0xf]
      %v2314 = vld [vmem:[%s2293 + $0x78] sm:$0xf]
      %v2315 = vld [vmem:[%s2293 + $0x7c] sm:$0xf]
      %v2316 = vld [vmem:[%s2293 + $0x84] sm:$0xf]
      %v2317 = vld [vmem:[%s2293 + $0x88] sm:$0xf]
      %v2318 = vld [vmem:[%s2293 + $0x90] sm:$0xf]
      %v2319 = vld [vmem:[%s2293 + $0x94] sm:$0xf]
      %v2320 = vld [vmem:[%s2293 + $0x9c] sm:$0xf]
      %v2321 = vld [vmem:[%s2293 + $0xa0] sm:$0xf]
      %v2322 = vld [vmem:[%s2293 + $0xa8] sm:$0xf]
      %v2323 = vld [vmem:[%s2293 + $0xac] sm:$0xf]
      %v2324 = vld [vmem:[%s2293 + $0xb4] sm:$0xf]
      %v2325 = vld [vmem:[%s2293 + $0xb8] sm:$0xf]
      %2358 = vrot.lane.b32.xlu0 %v2294, 24
      %v2359 = vpop.permute.xlu0 %2358
      %2360 = vrot.lane.b32.xlu0 %v2295, 24
      %v2361 = vpop.permute.xlu0 %2360
      %2362 = vrot.lane.b32.xlu0 %v2296, 24
      %v2363 = vpop.permute.xlu0 %2362
      %2364 = vrot.lane.b32.xlu0 %v2297, 24
      %v2365 = vpop.permute.xlu0 %2364
      %2366 = vrot.lane.b32.xlu0 %v2298, 24
      %v2367 = vpop.permute.xlu0 %2366
      %2368 = vrot.lane.b32.xlu0 %v2299, 24
      %v2369 = vpop.permute.xlu0 %2368
      %2370 = vrot.lane.b32.xlu0 %v2300, 24
      %v2371 = vpop.permute.xlu0 %2370
      %2372 = vrot.lane.b32.xlu0 %v2301, 24
      %v2373 = vpop.permute.xlu0 %2372
      %2374 = vrot.lane.b32.xlu0 %v2302, 24
      %v2375 = vpop.permute.xlu0 %2374
      %2376 = vrot.lane.b32.xlu0 %v2303, 24
      %v2377 = vpop.permute.xlu0 %2376
      %2378 = vrot.lane.b32.xlu0 %v2304, 24
      %v2379 = vpop.permute.xlu0 %2378
      %2380 = vrot.lane.b32.xlu0 %v2305, 24
      %v2381 = vpop.permute.xlu0 %2380
      %2382 = vrot.lane.b32.xlu0 %v2306, 24
      %v2383 = vpop.permute.xlu0 %2382
      %2384 = vrot.lane.b32.xlu0 %v2307, 24
      %v2385 = vpop.permute.xlu0 %2384
      %2386 = vrot.lane.b32.xlu0 %v2308, 24
      %v2387 = vpop.permute.xlu0 %2386
      %2388 = vrot.lane.b32.xlu0 %v2309, 24
      %v2389 = vpop.permute.xlu0 %2388
      %2390 = vrot.lane.b32.xlu0 %v2310, 24
      %v2391 = vpop.permute.xlu0 %2390
      %2392 = vrot.lane.b32.xlu0 %v2311, 24
      %v2393 = vpop.permute.xlu0 %2392
      %2394 = vrot.lane.b32.xlu0 %v2312, 24
      %v2395 = vpop.permute.xlu0 %2394
      %2396 = vrot.lane.b32.xlu0 %v2313, 24
      %v2397 = vpop.permute.xlu0 %2396
      %2398 = vrot.lane.b32.xlu0 %v2314, 24
      %v2399 = vpop.permute.xlu0 %2398
      %2400 = vrot.lane.b32.xlu0 %v2315, 24
      %v2401 = vpop.permute.xlu0 %2400
      %2402 = vrot.lane.b32.xlu0 %v2316, 24
      %v2403 = vpop.permute.xlu0 %2402
      %2404 = vrot.lane.b32.xlu0 %v2317, 24
      %v2405 = vpop.permute.xlu0 %2404
      %2406 = vrot.lane.b32.xlu0 %v2318, 24
      %v2407 = vpop.permute.xlu0 %2406
      %2408 = vrot.lane.b32.xlu0 %v2319, 24
      %v2409 = vpop.permute.xlu0 %2408
      %2410 = vrot.lane.b32.xlu0 %v2320, 24
      %v2411 = vpop.permute.xlu0 %2410
      %2412 = vrot.lane.b32.xlu0 %v2321, 24
      %v2413 = vpop.permute.xlu0 %2412
      %2414 = vrot.lane.b32.xlu0 %v2322, 24
      %v2415 = vpop.permute.xlu0 %2414
      %2416 = vrot.lane.b32.xlu0 %v2323, 24
      %v2417 = vpop.permute.xlu0 %2416
      %2418 = vrot.lane.b32.xlu0 %v2324, 24
      %v2419 = vpop.permute.xlu0 %2418
      %2420 = vrot.lane.b32.xlu0 %v2325, 24
      %v2421 = vpop.permute.xlu0 %2420
      %vm2454 = vcmask 224448
      %2455 = vst.msk [vmem:[#allocation2] sm:$0xf] %vm2454, %v2359
      %2456 = vst.msk [vmem:[#allocation2 + $0x4] sm:$0xf] %vm2454, %v2361
      %2457 = vst.msk [vmem:[#allocation2 + $0x8] sm:$0xf] %vm2454, %v2363
      %2458 = vst.msk [vmem:[#allocation2 + $0xc] sm:$0xf] %vm2454, %v2365
      %2459 = vst.msk [vmem:[#allocation2 + $0x10] sm:$0xf] %vm2454, %v2367
      %2460 = vst.msk [vmem:[#allocation2 + $0x14] sm:$0xf] %vm2454, %v2369
      %2461 = vst.msk [vmem:[#allocation2 + $0x18] sm:$0xf] %vm2454, %v2371
      %2462 = vst.msk [vmem:[#allocation2 + $0x1c] sm:$0xf] %vm2454, %v2373
      %2463 = vst.msk [vmem:[#allocation2 + $0x20] sm:$0xf] %vm2454, %v2375
      %2464 = vst.msk [vmem:[#allocation2 + $0x24] sm:$0xf] %vm2454, %v2377
      %2465 = vst.msk [vmem:[#allocation2 + $0x28] sm:$0xf] %vm2454, %v2379
      %2466 = vst.msk [vmem:[#allocation2 + $0x2c] sm:$0xf] %vm2454, %v2381
      %2467 = vst.msk [vmem:[#allocation2 + $0x30] sm:$0xf] %vm2454, %v2383
      %2468 = vst.msk [vmem:[#allocation2 + $0x34] sm:$0xf] %vm2454, %v2385
      %2469 = vst.msk [vmem:[#allocation2 + $0x38] sm:$0xf] %vm2454, %v2387
      %2470 = vst.msk [vmem:[#allocation2 + $0x3c] sm:$0xf] %vm2454, %v2389
      %2471 = vst.msk [vmem:[#allocation2 + $0x40] sm:$0xf] %vm2454, %v2391
      %2472 = vst.msk [vmem:[#allocation2 + $0x44] sm:$0xf] %vm2454, %v2393
      %2473 = vst.msk [vmem:[#allocation2 + $0x48] sm:$0xf] %vm2454, %v2395
      %2474 = vst.msk [vmem:[#allocation2 + $0x4c] sm:$0xf] %vm2454, %v2397
      %2475 = vst.msk [vmem:[#allocation2 + $0x50] sm:$0xf] %vm2454, %v2399
      %2476 = vst.msk [vmem:[#allocation2 + $0x54] sm:$0xf] %vm2454, %v2401
      %2477 = vst.msk [vmem:[#allocation2 + $0x58] sm:$0xf] %vm2454, %v2403
      %2478 = vst.msk [vmem:[#allocation2 + $0x5c] sm:$0xf] %vm2454, %v2405
      %2479 = vst.msk [vmem:[#allocation2 + $0x60] sm:$0xf] %vm2454, %v2407
      %2480 = vst.msk [vmem:[#allocation2 + $0x64] sm:$0xf] %vm2454, %v2409
      %2481 = vst.msk [vmem:[#allocation2 + $0x68] sm:$0xf] %vm2454, %v2411
      %2482 = vst.msk [vmem:[#allocation2 + $0x6c] sm:$0xf] %vm2454, %v2413
      %2483 = vst.msk [vmem:[#allocation2 + $0x70] sm:$0xf] %vm2454, %v2415
      %2484 = vst.msk [vmem:[#allocation2 + $0x74] sm:$0xf] %vm2454, %v2417
      %2485 = vst.msk [vmem:[#allocation2 + $0x78] sm:$0xf] %vm2454, %v2419
      %2486 = vst.msk [vmem:[#allocation2 + $0x7c] sm:$0xf] %vm2454, %v2421
      %v2487 = vld [vmem:[%s2293] sm:$0xf]
      %v2488 = vld [vmem:[%s2293 + $0x4] sm:$0xf]
      %v2489 = vld [vmem:[%s2293 + $0x8] sm:$0x1]
      %v2490 = vld [vmem:[%s2293 + $0xc] sm:$0xf]
      %v2491 = vld [vmem:[%s2293 + $0x10] sm:$0xf]
      %v2492 = vld [vmem:[%s2293 + $0x14] sm:$0x1]
      %v2493 = vld [vmem:[%s2293 + $0x18] sm:$0xf]
      %v2494 = vld [vmem:[%s2293 + $0x1c] sm:$0xf]
      %v2495 = vld [vmem:[%s2293 + $0x20] sm:$0x1]
      %v2496 = vld [vmem:[%s2293 + $0x24] sm:$0xf]
      %v2497 = vld [vmem:[%s2293 + $0x28] sm:$0xf]
      %v2498 = vld [vmem:[%s2293 + $0x2c] sm:$0x1]
      %v2499 = vld [vmem:[%s2293 + $0x30] sm:$0xf]
      %v2500 = vld [vmem:[%s2293 + $0x34] sm:$0xf]
      %v2501 = vld [vmem:[%s2293 + $0x38] sm:$0x1]
      %v2502 = vld [vmem:[%s2293 + $0x3c] sm:$0xf]
      %v2503 = vld [vmem:[%s2293 + $0x40] sm:$0xf]
      %v2504 = vld [vmem:[%s2293 + $0x44] sm:$0x1]
      %v2505 = vld [vmem:[%s2293 + $0x48] sm:$0xf]
      %v2506 = vld [vmem:[%s2293 + $0x4c] sm:$0xf]
      %v2507 = vld [vmem:[%s2293 + $0x50] sm:$0x1]
      %v2508 = vld [vmem:[%s2293 + $0x54] sm:$0xf]
      %v2509 = vld [vmem:[%s2293 + $0x58] sm:$0xf]
      %v2510 = vld [vmem:[%s2293 + $0x5c] sm:$0x1]
      %v2511 = vld [vmem:[%s2293 + $0x60] sm:$0xf]
      %v2512 = vld [vmem:[%s2293 + $0x64] sm:$0xf]
      %v2513 = vld [vmem:[%s2293 + $0x68] sm:$0x1]
      %v2514 = vld [vmem:[%s2293 + $0x6c] sm:$0xf]
      %v2515 = vld [vmem:[%s2293 + $0x70] sm:$0xf]
      %v2516 = vld [vmem:[%s2293 + $0x74] sm:$0x1]
      %v2517 = vld [vmem:[%s2293 + $0x78] sm:$0xf]
      %v2518 = vld [vmem:[%s2293 + $0x7c] sm:$0xf]
      %v2519 = vld [vmem:[%s2293 + $0x80] sm:$0x1]
      %v2520 = vld [vmem:[%s2293 + $0x84] sm:$0xf]
      %v2521 = vld [vmem:[%s2293 + $0x88] sm:$0xf]
      %v2522 = vld [vmem:[%s2293 + $0x8c] sm:$0x1]
      %v2523 = vld [vmem:[%s2293 + $0x90] sm:$0xf]
      %v2524 = vld [vmem:[%s2293 + $0x94] sm:$0xf]
      %v2525 = vld [vmem:[%s2293 + $0x98] sm:$0x1]
      %v2526 = vld [vmem:[%s2293 + $0x9c] sm:$0xf]
      %v2527 = vld [vmem:[%s2293 + $0xa0] sm:$0xf]
      %v2528 = vld [vmem:[%s2293 + $0xa4] sm:$0x1]
      %v2529 = vld [vmem:[%s2293 + $0xa8] sm:$0xf]
      %v2530 = vld [vmem:[%s2293 + $0xac] sm:$0xf]
      %v2531 = vld [vmem:[%s2293 + $0xb0] sm:$0x1]
      %v2532 = vld [vmem:[%s2293 + $0xb4] sm:$0xf]
      %v2533 = vld [vmem:[%s2293 + $0xb8] sm:$0xf]
      %v2534 = vld [vmem:[%s2293 + $0xbc] sm:$0x1]
      %v2536 = vshrl.u32 %v2487, 16
      %v2538 = vrot.slane %v2536, 4
      %v2539 = vshll.u32 %v2487, 16
      %v2541 = vrot.slane %v2539, 5
      %v2542 = vor.u32 %v2538, %v2541
      %v2543 = vrot.slane %v2542, 4
      %v2545 = vshll.u32 %v2488, 16
      %v2547 = vrot.slane %v2545, 5
      %v2548 = vsel %vm341, %v2543, %v2547
      %v2549 = vshrl.u32 %v2488, 16
      %v2551 = vrot.slane %v2549, 4
      %v2552 = vor.u32 %v2551, %v2547
      %v2553 = vrot.slane %v2552, 4
      %v2555 = vshll.u32 %v2489, 16
      %v2557 = vrot.slane %v2555, 5
      %v2558 = vsel %vm341, %v2553, %v2557
      %v2560 = vshrl.u32 %v2490, 16
      %v2562 = vrot.slane %v2560, 4
      %v2563 = vshll.u32 %v2490, 16
      %v2565 = vrot.slane %v2563, 5
      %v2566 = vor.u32 %v2562, %v2565
      %v2567 = vrot.slane %v2566, 4
      %v2569 = vshll.u32 %v2491, 16
      %v2571 = vrot.slane %v2569, 5
      %v2572 = vsel %vm341, %v2567, %v2571
      %v2573 = vshrl.u32 %v2491, 16
      %v2575 = vrot.slane %v2573, 4
      %v2576 = vor.u32 %v2575, %v2571
      %v2577 = vrot.slane %v2576, 4
      %v2579 = vshll.u32 %v2492, 16
      %v2581 = vrot.slane %v2579, 5
      %v2582 = vsel %vm341, %v2577, %v2581
      %v2584 = vshrl.u32 %v2493, 16
      %v2586 = vrot.slane %v2584, 4
      %v2587 = vshll.u32 %v2493, 16
      %v2589 = vrot.slane %v2587, 5
      %v2590 = vor.u32 %v2586, %v2589
      %v2591 = vrot.slane %v2590, 4
      %v2593 = vshll.u32 %v2494, 16
      %v2595 = vrot.slane %v2593, 5
      %v2596 = vsel %vm341, %v2591, %v2595
      %v2597 = vshrl.u32 %v2494, 16
      %v2599 = vrot.slane %v2597, 4
      %v2600 = vor.u32 %v2599, %v2595
      %v2601 = vrot.slane %v2600, 4
      %v2603 = vshll.u32 %v2495, 16
      %v2605 = vrot.slane %v2603, 5
      %v2606 = vsel %vm341, %v2601, %v2605
      %v2608 = vshrl.u32 %v2496, 16
      %v2610 = vrot.slane %v2608, 4
      %v2611 = vshll.u32 %v2496, 16
      %v2613 = vrot.slane %v2611, 5
      %v2614 = vor.u32 %v2610, %v2613
      %v2615 = vrot.slane %v2614, 4
      %v2617 = vshll.u32 %v2497, 16
      %v2619 = vrot.slane %v2617, 5
      %v2620 = vsel %vm341, %v2615, %v2619
      %v2621 = vshrl.u32 %v2497, 16
      %v2623 = vrot.slane %v2621, 4
      %v2624 = vor.u32 %v2623, %v2619
      %v2625 = vrot.slane %v2624, 4
      %v2627 = vshll.u32 %v2498, 16
      %v2629 = vrot.slane %v2627, 5
      %v2630 = vsel %vm341, %v2625, %v2629
      %v2632 = vshrl.u32 %v2499, 16
      %v2634 = vrot.slane %v2632, 4
      %v2635 = vshll.u32 %v2499, 16
      %v2637 = vrot.slane %v2635, 5
      %v2638 = vor.u32 %v2634, %v2637
      %v2639 = vrot.slane %v2638, 4
      %v2641 = vshll.u32 %v2500, 16
      %v2643 = vrot.slane %v2641, 5
      %v2644 = vsel %vm341, %v2639, %v2643
      %v2645 = vshrl.u32 %v2500, 16
      %v2647 = vrot.slane %v2645, 4
      %v2648 = vor.u32 %v2647, %v2643
      %v2649 = vrot.slane %v2648, 4
      %v2651 = vshll.u32 %v2501, 16
      %v2653 = vrot.slane %v2651, 5
      %v2654 = vsel %vm341, %v2649, %v2653
      %v2656 = vshrl.u32 %v2502, 16
      %v2658 = vrot.slane %v2656, 4
      %v2659 = vshll.u32 %v2502, 16
      %v2661 = vrot.slane %v2659, 5
      %v2662 = vor.u32 %v2658, %v2661
      %v2663 = vrot.slane %v2662, 4
      %v2665 = vshll.u32 %v2503, 16
      %v2667 = vrot.slane %v2665, 5
      %v2668 = vsel %vm341, %v2663, %v2667
      %v2669 = vshrl.u32 %v2503, 16
      %v2671 = vrot.slane %v2669, 4
      %v2672 = vor.u32 %v2671, %v2667
      %v2673 = vrot.slane %v2672, 4
      %v2675 = vshll.u32 %v2504, 16
      %v2677 = vrot.slane %v2675, 5
      %v2678 = vsel %vm341, %v2673, %v2677
      %v2680 = vshrl.u32 %v2505, 16
      %v2682 = vrot.slane %v2680, 4
      %v2683 = vshll.u32 %v2505, 16
      %v2685 = vrot.slane %v2683, 5
      %v2686 = vor.u32 %v2682, %v2685
      %v2687 = vrot.slane %v2686, 4
      %v2689 = vshll.u32 %v2506, 16
      %v2691 = vrot.slane %v2689, 5
      %v2692 = vsel %vm341, %v2687, %v2691
      %v2693 = vshrl.u32 %v2506, 16
      %v2695 = vrot.slane %v2693, 4
      %v2696 = vor.u32 %v2695, %v2691
      %v2697 = vrot.slane %v2696, 4
      %v2699 = vshll.u32 %v2507, 16
      %v2701 = vrot.slane %v2699, 5
      %v2702 = vsel %vm341, %v2697, %v2701
      %v2704 = vshrl.u32 %v2508, 16
      %v2706 = vrot.slane %v2704, 4
      %v2707 = vshll.u32 %v2508, 16
      %v2709 = vrot.slane %v2707, 5
      %v2710 = vor.u32 %v2706, %v2709
      %v2711 = vrot.slane %v2710, 4
      %v2713 = vshll.u32 %v2509, 16
      %v2715 = vrot.slane %v2713, 5
      %v2716 = vsel %vm341, %v2711, %v2715
      %v2717 = vshrl.u32 %v2509, 16
      %v2719 = vrot.slane %v2717, 4
      %v2720 = vor.u32 %v2719, %v2715
      %v2721 = vrot.slane %v2720, 4
      %v2723 = vshll.u32 %v2510, 16
      %v2725 = vrot.slane %v2723, 5
      %v2726 = vsel %vm341, %v2721, %v2725
      %v2728 = vshrl.u32 %v2511, 16
      %v2730 = vrot.slane %v2728, 4
      %v2731 = vshll.u32 %v2511, 16
      %v2733 = vrot.slane %v2731, 5
      %v2734 = vor.u32 %v2730, %v2733
      %v2735 = vrot.slane %v2734, 4
      %v2737 = vshll.u32 %v2512, 16
      %v2739 = vrot.slane %v2737, 5
      %v2740 = vsel %vm341, %v2735, %v2739
      %v2741 = vshrl.u32 %v2512, 16
      %v2743 = vrot.slane %v2741, 4
      %v2744 = vor.u32 %v2743, %v2739
      %v2745 = vrot.slane %v2744, 4
      %v2747 = vshll.u32 %v2513, 16
      %v2749 = vrot.slane %v2747, 5
      %v2750 = vsel %vm341, %v2745, %v2749
      %v2752 = vshrl.u32 %v2514, 16
      %v2754 = vrot.slane %v2752, 4
      %v2755 = vshll.u32 %v2514, 16
      %v2757 = vrot.slane %v2755, 5
      %v2758 = vor.u32 %v2754, %v2757
      %v2759 = vrot.slane %v2758, 4
      %v2761 = vshll.u32 %v2515, 16
      %v2763 = vrot.slane %v2761, 5
      %v2764 = vsel %vm341, %v2759, %v2763
      %v2765 = vshrl.u32 %v2515, 16
      %v2767 = vrot.slane %v2765, 4
      %v2768 = vor.u32 %v2767, %v2763
      %v2769 = vrot.slane %v2768, 4
      %v2771 = vshll.u32 %v2516, 16
      %v2773 = vrot.slane %v2771, 5
      %v2774 = vsel %vm341, %v2769, %v2773
      %v2776 = vshrl.u32 %v2517, 16
      %v2778 = vrot.slane %v2776, 4
      %v2779 = vshll.u32 %v2517, 16
      %v2781 = vrot.slane %v2779, 5
      %v2782 = vor.u32 %v2778, %v2781
      %v2783 = vrot.slane %v2782, 4
      %v2785 = vshll.u32 %v2518, 16
      %v2787 = vrot.slane %v2785, 5
      %v2788 = vsel %vm341, %v2783, %v2787
      %v2789 = vshrl.u32 %v2518, 16
      %v2791 = vrot.slane %v2789, 4
      %v2792 = vor.u32 %v2791, %v2787
      %v2793 = vrot.slane %v2792, 4
      %v2795 = vshll.u32 %v2519, 16
      %v2797 = vrot.slane %v2795, 5
      %v2798 = vsel %vm341, %v2793, %v2797
      %v2800 = vshrl.u32 %v2520, 16
      %v2802 = vrot.slane %v2800, 4
      %v2803 = vshll.u32 %v2520, 16
      %v2805 = vrot.slane %v2803, 5
      %v2806 = vor.u32 %v2802, %v2805
      %v2807 = vrot.slane %v2806, 4
      %v2809 = vshll.u32 %v2521, 16
      %v2811 = vrot.slane %v2809, 5
      %v2812 = vsel %vm341, %v2807, %v2811
      %v2813 = vshrl.u32 %v2521, 16
      %v2815 = vrot.slane %v2813, 4
      %v2816 = vor.u32 %v2815, %v2811
      %v2817 = vrot.slane %v2816, 4
      %v2819 = vshll.u32 %v2522, 16
      %v2821 = vrot.slane %v2819, 5
      %v2822 = vsel %vm341, %v2817, %v2821
      %v2824 = vshrl.u32 %v2523, 16
      %v2826 = vrot.slane %v2824, 4
      %v2827 = vshll.u32 %v2523, 16
      %v2829 = vrot.slane %v2827, 5
      %v2830 = vor.u32 %v2826, %v2829
      %v2831 = vrot.slane %v2830, 4
      %v2833 = vshll.u32 %v2524, 16
      %v2835 = vrot.slane %v2833, 5
      %v2836 = vsel %vm341, %v2831, %v2835
      %v2837 = vshrl.u32 %v2524, 16
      %v2839 = vrot.slane %v2837, 4
      %v2840 = vor.u32 %v2839, %v2835
      %v2841 = vrot.slane %v2840, 4
      %v2843 = vshll.u32 %v2525, 16
      %v2845 = vrot.slane %v2843, 5
      %v2846 = vsel %vm341, %v2841, %v2845
      %v2848 = vshrl.u32 %v2526, 16
      %v2850 = vrot.slane %v2848, 4
      %v2851 = vshll.u32 %v2526, 16
      %v2853 = vrot.slane %v2851, 5
      %v2854 = vor.u32 %v2850, %v2853
      %v2855 = vrot.slane %v2854, 4
      %v2857 = vshll.u32 %v2527, 16
      %v2859 = vrot.slane %v2857, 5
      %v2860 = vsel %vm341, %v2855, %v2859
      %v2861 = vshrl.u32 %v2527, 16
      %v2863 = vrot.slane %v2861, 4
      %v2864 = vor.u32 %v2863, %v2859
      %v2865 = vrot.slane %v2864, 4
      %v2867 = vshll.u32 %v2528, 16
      %v2869 = vrot.slane %v2867, 5
      %v2870 = vsel %vm341, %v2865, %v2869
      %v2872 = vshrl.u32 %v2529, 16
      %v2874 = vrot.slane %v2872, 4
      %v2875 = vshll.u32 %v2529, 16
      %v2877 = vrot.slane %v2875, 5
      %v2878 = vor.u32 %v2874, %v2877
      %v2879 = vrot.slane %v2878, 4
      %v2881 = vshll.u32 %v2530, 16
      %v2883 = vrot.slane %v2881, 5
      %v2884 = vsel %vm341, %v2879, %v2883
      %v2885 = vshrl.u32 %v2530, 16
      %v2887 = vrot.slane %v2885, 4
      %v2888 = vor.u32 %v2887, %v2883
      %v2889 = vrot.slane %v2888, 4
      %v2891 = vshll.u32 %v2531, 16
      %v2893 = vrot.slane %v2891, 5
      %v2894 = vsel %vm341, %v2889, %v2893
      %v2896 = vshrl.u32 %v2532, 16
      %v2898 = vrot.slane %v2896, 4
      %v2899 = vshll.u32 %v2532, 16
      %v2901 = vrot.slane %v2899, 5
      %v2902 = vor.u32 %v2898, %v2901
      %v2903 = vrot.slane %v2902, 4
      %v2905 = vshll.u32 %v2533, 16
      %v2907 = vrot.slane %v2905, 5
      %v2908 = vsel %vm341, %v2903, %v2907
      %v2909 = vshrl.u32 %v2533, 16
      %v2911 = vrot.slane %v2909, 4
      %v2912 = vor.u32 %v2911, %v2907
      %v2913 = vrot.slane %v2912, 4
      %v2915 = vshll.u32 %v2534, 16
      %v2917 = vrot.slane %v2915, 5
      %v2918 = vsel %vm341, %v2913, %v2917
      %2919 = vrot.lane.b32.xlu0 %v2548, 28
      %v2920 = vpop.permute.xlu0 %2919
      %2921 = vrot.lane.b32.xlu0 %v2558, 28
      %v2922 = vpop.permute.xlu0 %2921
      %2923 = vrot.lane.b32.xlu0 %v2572, 28
      %v2924 = vpop.permute.xlu0 %2923
      %2925 = vrot.lane.b32.xlu0 %v2582, 28
      %v2926 = vpop.permute.xlu0 %2925
      %2927 = vrot.lane.b32.xlu0 %v2596, 28
      %v2928 = vpop.permute.xlu0 %2927
      %2929 = vrot.lane.b32.xlu0 %v2606, 28
      %v2930 = vpop.permute.xlu0 %2929
      %2931 = vrot.lane.b32.xlu0 %v2620, 28
      %v2932 = vpop.permute.xlu0 %2931
      %2933 = vrot.lane.b32.xlu0 %v2630, 28
      %v2934 = vpop.permute.xlu0 %2933
      %2935 = vrot.lane.b32.xlu0 %v2644, 28
      %v2936 = vpop.permute.xlu0 %2935
      %2937 = vrot.lane.b32.xlu0 %v2654, 28
      %v2938 = vpop.permute.xlu0 %2937
      %2939 = vrot.lane.b32.xlu0 %v2668, 28
      %v2940 = vpop.permute.xlu0 %2939
      %2941 = vrot.lane.b32.xlu0 %v2678, 28
      %v2942 = vpop.permute.xlu0 %2941
      %2943 = vrot.lane.b32.xlu0 %v2692, 28
      %v2944 = vpop.permute.xlu0 %2943
      %2945 = vrot.lane.b32.xlu0 %v2702, 28
      %v2946 = vpop.permute.xlu0 %2945
      %2947 = vrot.lane.b32.xlu0 %v2716, 28
      %v2948 = vpop.permute.xlu0 %2947
      %2949 = vrot.lane.b32.xlu0 %v2726, 28
      %v2950 = vpop.permute.xlu0 %2949
      %2951 = vrot.lane.b32.xlu0 %v2740, 28
      %v2952 = vpop.permute.xlu0 %2951
      %2953 = vrot.lane.b32.xlu0 %v2750, 28
      %v2954 = vpop.permute.xlu0 %2953
      %2955 = vrot.lane.b32.xlu0 %v2764, 28
      %v2956 = vpop.permute.xlu0 %2955
      %2957 = vrot.lane.b32.xlu0 %v2774, 28
      %v2958 = vpop.permute.xlu0 %2957
      %2959 = vrot.lane.b32.xlu0 %v2788, 28
      %v2960 = vpop.permute.xlu0 %2959
      %2961 = vrot.lane.b32.xlu0 %v2798, 28
      %v2962 = vpop.permute.xlu0 %2961
      %2963 = vrot.lane.b32.xlu0 %v2812, 28
      %v2964 = vpop.permute.xlu0 %2963
      %2965 = vrot.lane.b32.xlu0 %v2822, 28
      %v2966 = vpop.permute.xlu0 %2965
      %2967 = vrot.lane.b32.xlu0 %v2836, 28
      %v2968 = vpop.permute.xlu0 %2967
      %2969 = vrot.lane.b32.xlu0 %v2846, 28
      %v2970 = vpop.permute.xlu0 %2969
      %2971 = vrot.lane.b32.xlu0 %v2860, 28
      %v2972 = vpop.permute.xlu0 %2971
      %2973 = vrot.lane.b32.xlu0 %v2870, 28
      %v2974 = vpop.permute.xlu0 %2973
      %2975 = vrot.lane.b32.xlu0 %v2884, 28
      %v2976 = vpop.permute.xlu0 %2975
      %2977 = vrot.lane.b32.xlu0 %v2894, 28
      %v2978 = vpop.permute.xlu0 %2977
      %2979 = vrot.lane.b32.xlu0 %v2908, 28
      %v2980 = vpop.permute.xlu0 %2979
      %2981 = vrot.lane.b32.xlu0 %v2918, 28
      %v2982 = vpop.permute.xlu0 %2981
      %vm3015 = vcmask 257248
      %3016 = vst.msk [vmem:[#allocation2] sm:$0xf] %vm3015, %v2920
      %3017 = vst.msk [vmem:[#allocation2 + $0x4] sm:$0xf] %vm3015, %v2922
      %3018 = vst.msk [vmem:[#allocation2 + $0x8] sm:$0xf] %vm3015, %v2924
      %3019 = vst.msk [vmem:[#allocation2 + $0xc] sm:$0xf] %vm3015, %v2926
      %3020 = vst.msk [vmem:[#allocation2 + $0x10] sm:$0xf] %vm3015, %v2928
      %3021 = vst.msk [vmem:[#allocation2 + $0x14] sm:$0xf] %vm3015, %v2930
      %3022 = vst.msk [vmem:[#allocation2 + $0x18] sm:$0xf] %vm3015, %v2932
      %3023 = vst.msk [vmem:[#allocation2 + $0x1c] sm:$0xf] %vm3015, %v2934
      %3024 = vst.msk [vmem:[#allocation2 + $0x20] sm:$0xf] %vm3015, %v2936
      %3025 = vst.msk [vmem:[#allocation2 + $0x24] sm:$0xf] %vm3015, %v2938
      %3026 = vst.msk [vmem:[#allocation2 + $0x28] sm:$0xf] %vm3015, %v2940
      %3027 = vst.msk [vmem:[#allocation2 + $0x2c] sm:$0xf] %vm3015, %v2942
      %3028 = vst.msk [vmem:[#allocation2 + $0x30] sm:$0xf] %vm3015, %v2944
      %3029 = vst.msk [vmem:[#allocation2 + $0x34] sm:$0xf] %vm3015, %v2946
      %3030 = vst.msk [vmem:[#allocation2 + $0x38] sm:$0xf] %vm3015, %v2948
      %3031 = vst.msk [vmem:[#allocation2 + $0x3c] sm:$0xf] %vm3015, %v2950
      %3032 = vst.msk [vmem:[#allocation2 + $0x40] sm:$0xf] %vm3015, %v2952
      %3033 = vst.msk [vmem:[#allocation2 + $0x44] sm:$0xf] %vm3015, %v2954
      %3034 = vst.msk [vmem:[#allocation2 + $0x48] sm:$0xf] %vm3015, %v2956
      %3035 = vst.msk [vmem:[#allocation2 + $0x4c] sm:$0xf] %vm3015, %v2958
      %3036 = vst.msk [vmem:[#allocation2 + $0x50] sm:$0xf] %vm3015, %v2960
      %3037 = vst.msk [vmem:[#allocation2 + $0x54] sm:$0xf] %vm3015, %v2962
      %3038 = vst.msk [vmem:[#allocation2 + $0x58] sm:$0xf] %vm3015, %v2964
      %3039 = vst.msk [vmem:[#allocation2 + $0x5c] sm:$0xf] %vm3015, %v2966
      %3040 = vst.msk [vmem:[#allocation2 + $0x60] sm:$0xf] %vm3015, %v2968
      %3041 = vst.msk [vmem:[#allocation2 + $0x64] sm:$0xf] %vm3015, %v2970
      %3042 = vst.msk [vmem:[#allocation2 + $0x68] sm:$0xf] %vm3015, %v2972
      %3043 = vst.msk [vmem:[#allocation2 + $0x6c] sm:$0xf] %vm3015, %v2974
      %3044 = vst.msk [vmem:[#allocation2 + $0x70] sm:$0xf] %vm3015, %v2976
      %3045 = vst.msk [vmem:[#allocation2 + $0x74] sm:$0xf] %vm3015, %v2978
      %3046 = vst.msk [vmem:[#allocation2 + $0x78] sm:$0xf] %vm3015, %v2980
      %3047 = vst.msk [vmem:[#allocation2 + $0x7c] sm:$0xf] %vm3015, %v2982
      %v3048 = vld [vmem:[%s2293] sm:$0xe]
      %v3049 = vld [vmem:[%s2293 + $0x4] sm:$0xf]
      %v3050 = vld [vmem:[%s2293 + $0x8] sm:$0x1]
      %v3051 = vld [vmem:[%s2293 + $0xc] sm:$0xe]
      %v3052 = vld [vmem:[%s2293 + $0x10] sm:$0xf]
      %v3053 = vld [vmem:[%s2293 + $0x14] sm:$0x1]
      %v3054 = vld [vmem:[%s2293 + $0x18] sm:$0xe]
      %v3055 = vld [vmem:[%s2293 + $0x1c] sm:$0xf]
      %v3056 = vld [vmem:[%s2293 + $0x20] sm:$0x1]
      %v3057 = vld [vmem:[%s2293 + $0x24] sm:$0xe]
      %v3058 = vld [vmem:[%s2293 + $0x28] sm:$0xf]
      %v3059 = vld [vmem:[%s2293 + $0x2c] sm:$0x1]
      %v3060 = vld [vmem:[%s2293 + $0x30] sm:$0xe]
      %v3061 = vld [vmem:[%s2293 + $0x34] sm:$0xf]
      %v3062 = vld [vmem:[%s2293 + $0x38] sm:$0x1]
      %v3063 = vld [vmem:[%s2293 + $0x3c] sm:$0xe]
      %v3064 = vld [vmem:[%s2293 + $0x40] sm:$0xf]
      %v3065 = vld [vmem:[%s2293 + $0x44] sm:$0x1]
      %v3066 = vld [vmem:[%s2293 + $0x48] sm:$0xe]
      %v3067 = vld [vmem:[%s2293 + $0x4c] sm:$0xf]
      %v3068 = vld [vmem:[%s2293 + $0x50] sm:$0x1]
      %v3069 = vld [vmem:[%s2293 + $0x54] sm:$0xe]
      %v3070 = vld [vmem:[%s2293 + $0x58] sm:$0xf]
      %v3071 = vld [vmem:[%s2293 + $0x5c] sm:$0x1]
      %v3072 = vld [vmem:[%s2293 + $0x60] sm:$0xe]
      %v3073 = vld [vmem:[%s2293 + $0x64] sm:$0xf]
      %v3074 = vld [vmem:[%s2293 + $0x68] sm:$0x1]
      %v3075 = vld [vmem:[%s2293 + $0x6c] sm:$0xe]
      %v3076 = vld [vmem:[%s2293 + $0x70] sm:$0xf]
      %v3077 = vld [vmem:[%s2293 + $0x74] sm:$0x1]
      %v3078 = vld [vmem:[%s2293 + $0x78] sm:$0xe]
      %v3079 = vld [vmem:[%s2293 + $0x7c] sm:$0xf]
      %v3080 = vld [vmem:[%s2293 + $0x80] sm:$0x1]
      %v3081 = vld [vmem:[%s2293 + $0x84] sm:$0xe]
      %v3082 = vld [vmem:[%s2293 + $0x88] sm:$0xf]
      %v3083 = vld [vmem:[%s2293 + $0x8c] sm:$0x1]
      %v3084 = vld [vmem:[%s2293 + $0x90] sm:$0xe]
      %v3085 = vld [vmem:[%s2293 + $0x94] sm:$0xf]
      %v3086 = vld [vmem:[%s2293 + $0x98] sm:$0x1]
      %v3087 = vld [vmem:[%s2293 + $0x9c] sm:$0xe]
      %v3088 = vld [vmem:[%s2293 + $0xa0] sm:$0xf]
      %v3089 = vld [vmem:[%s2293 + $0xa4] sm:$0x1]
      %v3090 = vld [vmem:[%s2293 + $0xa8] sm:$0xe]
      %v3091 = vld [vmem:[%s2293 + $0xac] sm:$0xf]
      %v3092 = vld [vmem:[%s2293 + $0xb0] sm:$0x1]
      %v3093 = vld [vmem:[%s2293 + $0xb4] sm:$0xe]
      %v3094 = vld [vmem:[%s2293 + $0xb8] sm:$0xf]
      %v3095 = vld [vmem:[%s2293 + $0xbc] sm:$0x1]
      %v3144 = vrot.slane %v3048, 5
      %v3145 = vrot.slane %v3144, 4
      %v3146 = vrot.slane %v3049, 5
      %v3147 = vsel %vm953, %v3145, %v3146
      %v3148 = vrot.slane %v3146, 4
      %v3149 = vrot.slane %v3050, 5
      %v3150 = vsel %vm953, %v3148, %v3149
      %v3151 = vrot.slane %v3051, 5
      %v3152 = vrot.slane %v3151, 4
      %v3153 = vrot.slane %v3052, 5
      %v3154 = vsel %vm953, %v3152, %v3153
      %v3155 = vrot.slane %v3153, 4
      %v3156 = vrot.slane %v3053, 5
      %v3157 = vsel %vm953, %v3155, %v3156
      %v3158 = vrot.slane %v3054, 5
      %v3159 = vrot.slane %v3158, 4
      %v3160 = vrot.slane %v3055, 5
      %v3161 = vsel %vm953, %v3159, %v3160
      %v3162 = vrot.slane %v3160, 4
      %v3163 = vrot.slane %v3056, 5
      %v3164 = vsel %vm953, %v3162, %v3163
      %v3165 = vrot.slane %v3057, 5
      %v3166 = vrot.slane %v3165, 4
      %v3167 = vrot.slane %v3058, 5
      %v3168 = vsel %vm953, %v3166, %v3167
      %v3169 = vrot.slane %v3167, 4
      %v3170 = vrot.slane %v3059, 5
      %v3171 = vsel %vm953, %v3169, %v3170
      %v3172 = vrot.slane %v3060, 5
      %v3173 = vrot.slane %v3172, 4
      %v3174 = vrot.slane %v3061, 5
      %v3175 = vsel %vm953, %v3173, %v3174
      %v3176 = vrot.slane %v3174, 4
      %v3177 = vrot.slane %v3062, 5
      %v3178 = vsel %vm953, %v3176, %v3177
      %v3179 = vrot.slane %v3063, 5
      %v3180 = vrot.slane %v3179, 4
      %v3181 = vrot.slane %v3064, 5
      %v3182 = vsel %vm953, %v3180, %v3181
      %v3183 = vrot.slane %v3181, 4
      %v3184 = vrot.slane %v3065, 5
      %v3185 = vsel %vm953, %v3183, %v3184
      %v3186 = vrot.slane %v3066, 5
      %v3187 = vrot.slane %v3186, 4
      %v3188 = vrot.slane %v3067, 5
      %v3189 = vsel %vm953, %v3187, %v3188
      %v3190 = vrot.slane %v3188, 4
      %v3191 = vrot.slane %v3068, 5
      %v3192 = vsel %vm953, %v3190, %v3191
      %v3193 = vrot.slane %v3069, 5
      %v3194 = vrot.slane %v3193, 4
      %v3195 = vrot.slane %v3070, 5
      %v3196 = vsel %vm953, %v3194, %v3195
      %v3197 = vrot.slane %v3195, 4
      %v3198 = vrot.slane %v3071, 5
      %v3199 = vsel %vm953, %v3197, %v3198
      %v3200 = vrot.slane %v3072, 5
      %v3201 = vrot.slane %v3200, 4
      %v3202 = vrot.slane %v3073, 5
      %v3203 = vsel %vm953, %v3201, %v3202
      %v3204 = vrot.slane %v3202, 4
      %v3205 = vrot.slane %v3074, 5
      %v3206 = vsel %vm953, %v3204, %v3205
      %v3207 = vrot.slane %v3075, 5
      %v3208 = vrot.slane %v3207, 4
      %v3209 = vrot.slane %v3076, 5
      %v3210 = vsel %vm953, %v3208, %v3209
      %v3211 = vrot.slane %v3209, 4
      %v3212 = vrot.slane %v3077, 5
      %v3213 = vsel %vm953, %v3211, %v3212
      %v3214 = vrot.slane %v3078, 5
      %v3215 = vrot.slane %v3214, 4
      %v3216 = vrot.slane %v3079, 5
      %v3217 = vsel %vm953, %v3215, %v3216
      %v3218 = vrot.slane %v3216, 4
      %v3219 = vrot.slane %v3080, 5
      %v3220 = vsel %vm953, %v3218, %v3219
      %v3221 = vrot.slane %v3081, 5
      %v3222 = vrot.slane %v3221, 4
      %v3223 = vrot.slane %v3082, 5
      %v3224 = vsel %vm953, %v3222, %v3223
      %v3225 = vrot.slane %v3223, 4
      %v3226 = vrot.slane %v3083, 5
      %v3227 = vsel %vm953, %v3225, %v3226
      %v3228 = vrot.slane %v3084, 5
      %v3229 = vrot.slane %v3228, 4
      %v3230 = vrot.slane %v3085, 5
      %v3231 = vsel %vm953, %v3229, %v3230
      %v3232 = vrot.slane %v3230, 4
      %v3233 = vrot.slane %v3086, 5
      %v3234 = vsel %vm953, %v3232, %v3233
      %v3235 = vrot.slane %v3087, 5
      %v3236 = vrot.slane %v3235, 4
      %v3237 = vrot.slane %v3088, 5
      %v3238 = vsel %vm953, %v3236, %v3237
      %v3239 = vrot.slane %v3237, 4
      %v3240 = vrot.slane %v3089, 5
      %v3241 = vsel %vm953, %v3239, %v3240
      %v3242 = vrot.slane %v3090, 5
      %v3243 = vrot.slane %v3242, 4
      %v3244 = vrot.slane %v3091, 5
      %v3245 = vsel %vm953, %v3243, %v3244
      %v3246 = vrot.slane %v3244, 4
      %v3247 = vrot.slane %v3092, 5
      %v3248 = vsel %vm953, %v3246, %v3247
      %v3249 = vrot.slane %v3093, 5
      %v3250 = vrot.slane %v3249, 4
      %v3251 = vrot.slane %v3094, 5
      %v3252 = vsel %vm953, %v3250, %v3251
      %v3253 = vrot.slane %v3251, 4
      %v3254 = vrot.slane %v3095, 5
      %v3255 = vsel %vm953, %v3253, %v3254
      %3256 = vrot.lane.b32.xlu0 %v3147, 32
      %v3257 = vpop.permute.xlu0 %3256
      %3258 = vrot.lane.b32.xlu0 %v3150, 32
      %v3259 = vpop.permute.xlu0 %3258
      %3260 = vrot.lane.b32.xlu0 %v3154, 32
      %v3261 = vpop.permute.xlu0 %3260
      %3262 = vrot.lane.b32.xlu0 %v3157, 32
      %v3263 = vpop.permute.xlu0 %3262
      %3264 = vrot.lane.b32.xlu0 %v3161, 32
      %v3265 = vpop.permute.xlu0 %3264
      %3266 = vrot.lane.b32.xlu0 %v3164, 32
      %v3267 = vpop.permute.xlu0 %3266
      %3268 = vrot.lane.b32.xlu0 %v3168, 32
      %v3269 = vpop.permute.xlu0 %3268
      %3270 = vrot.lane.b32.xlu0 %v3171, 32
      %v3271 = vpop.permute.xlu0 %3270
      %3272 = vrot.lane.b32.xlu0 %v3175, 32
      %v3273 = vpop.permute.xlu0 %3272
      %3274 = vrot.lane.b32.xlu0 %v3178, 32
      %v3275 = vpop.permute.xlu0 %3274
      %3276 = vrot.lane.b32.xlu0 %v3182, 32
      %v3277 = vpop.permute.xlu0 %3276
      %3278 = vrot.lane.b32.xlu0 %v3185, 32
      %v3279 = vpop.permute.xlu0 %3278
      %3280 = vrot.lane.b32.xlu0 %v3189, 32
      %v3281 = vpop.permute.xlu0 %3280
      %3282 = vrot.lane.b32.xlu0 %v3192, 32
      %v3283 = vpop.permute.xlu0 %3282
      %3284 = vrot.lane.b32.xlu0 %v3196, 32
      %v3285 = vpop.permute.xlu0 %3284
      %3286 = vrot.lane.b32.xlu0 %v3199, 32
      %v3287 = vpop.permute.xlu0 %3286
      %3288 = vrot.lane.b32.xlu0 %v3203, 32
      %v3289 = vpop.permute.xlu0 %3288
      %3290 = vrot.lane.b32.xlu0 %v3206, 32
      %v3291 = vpop.permute.xlu0 %3290
      %3292 = vrot.lane.b32.xlu0 %v3210, 32
      %v3293 = vpop.permute.xlu0 %3292
      %3294 = vrot.lane.b32.xlu0 %v3213, 32
      %v3295 = vpop.permute.xlu0 %3294
      %3296 = vrot.lane.b32.xlu0 %v3217, 32
      %v3297 = vpop.permute.xlu0 %3296
      %3298 = vrot.lane.b32.xlu0 %v3220, 32
      %v3299 = vpop.permute.xlu0 %3298
      %3300 = vrot.lane.b32.xlu0 %v3224, 32
      %v3301 = vpop.permute.xlu0 %3300
      %3302 = vrot.lane.b32.xlu0 %v3227, 32
      %v3303 = vpop.permute.xlu0 %3302
      %3304 = vrot.lane.b32.xlu0 %v3231, 32
      %v3305 = vpop.permute.xlu0 %3304
      %3306 = vrot.lane.b32.xlu0 %v3234, 32
      %v3307 = vpop.permute.xlu0 %3306
      %3308 = vrot.lane.b32.xlu0 %v3238, 32
      %v3309 = vpop.permute.xlu0 %3308
      %3310 = vrot.lane.b32.xlu0 %v3241, 32
      %v3311 = vpop.permute.xlu0 %3310
      %3312 = vrot.lane.b32.xlu0 %v3245, 32
      %v3313 = vpop.permute.xlu0 %3312
      %3314 = vrot.lane.b32.xlu0 %v3248, 32
      %v3315 = vpop.permute.xlu0 %3314
      %3316 = vrot.lane.b32.xlu0 %v3252, 32
      %v3317 = vpop.permute.xlu0 %3316
      %3318 = vrot.lane.b32.xlu0 %v3255, 32
      %v3319 = vpop.permute.xlu0 %3318
      %vm3352 = vcmask 290048
      %3353 = vst.msk [vmem:[#allocation2] sm:$0xf] %vm3352, %v3257
      %3354 = vst.msk [vmem:[#allocation2 + $0x4] sm:$0xf] %vm3352, %v3259
      %3355 = vst.msk [vmem:[#allocation2 + $0x8] sm:$0xf] %vm3352, %v3261
      %3356 = vst.msk [vmem:[#allocation2 + $0xc] sm:$0xf] %vm3352, %v3263
      %3357 = vst.msk [vmem:[#allocation2 + $0x10] sm:$0xf] %vm3352, %v3265
      %3358 = vst.msk [vmem:[#allocation2 + $0x14] sm:$0xf] %vm3352, %v3267
      %3359 = vst.msk [vmem:[#allocation2 + $0x18] sm:$0xf] %vm3352, %v3269
      %3360 = vst.msk [vmem:[#allocation2 + $0x1c] sm:$0xf] %vm3352, %v3271
      %3361 = vst.msk [vmem:[#allocation2 + $0x20] sm:$0xf] %vm3352, %v3273
      %3362 = vst.msk [vmem:[#allocation2 + $0x24] sm:$0xf] %vm3352, %v3275
      %3363 = vst.msk [vmem:[#allocation2 + $0x28] sm:$0xf] %vm3352, %v3277
      %3364 = vst.msk [vmem:[#allocation2 + $0x2c] sm:$0xf] %vm3352, %v3279
      %3365 = vst.msk [vmem:[#allocation2 + $0x30] sm:$0xf] %vm3352, %v3281
      %3366 = vst.msk [vmem:[#allocation2 + $0x34] sm:$0xf] %vm3352, %v3283
      %3367 = vst.msk [vmem:[#allocation2 + $0x38] sm:$0xf] %vm3352, %v3285
      %3368 = vst.msk [vmem:[#allocation2 + $0x3c] sm:$0xf] %vm3352, %v3287
      %3369 = vst.msk [vmem:[#allocation2 + $0x40] sm:$0xf] %vm3352, %v3289
      %3370 = vst.msk [vmem:[#allocation2 + $0x44] sm:$0xf] %vm3352, %v3291
      %3371 = vst.msk [vmem:[#allocation2 + $0x48] sm:$0xf] %vm3352, %v3293
      %3372 = vst.msk [vmem:[#allocation2 + $0x4c] sm:$0xf] %vm3352, %v3295
      %3373 = vst.msk [vmem:[#allocation2 + $0x50] sm:$0xf] %vm3352, %v3297
      %3374 = vst.msk [vmem:[#allocation2 + $0x54] sm:$0xf] %vm3352, %v3299
      %3375 = vst.msk [vmem:[#allocation2 + $0x58] sm:$0xf] %vm3352, %v3301
      %3376 = vst.msk [vmem:[#allocation2 + $0x5c] sm:$0xf] %vm3352, %v3303
      %3377 = vst.msk [vmem:[#allocation2 + $0x60] sm:$0xf] %vm3352, %v3305
      %3378 = vst.msk [vmem:[#allocation2 + $0x64] sm:$0xf] %vm3352, %v3307
      %3379 = vst.msk [vmem:[#allocation2 + $0x68] sm:$0xf] %vm3352, %v3309
      %3380 = vst.msk [vmem:[#allocation2 + $0x6c] sm:$0xf] %vm3352, %v3311
      %3381 = vst.msk [vmem:[#allocation2 + $0x70] sm:$0xf] %vm3352, %v3313
      %3382 = vst.msk [vmem:[#allocation2 + $0x74] sm:$0xf] %vm3352, %v3315
      %3383 = vst.msk [vmem:[#allocation2 + $0x78] sm:$0xf] %vm3352, %v3317
      %3384 = vst.msk [vmem:[#allocation2 + $0x7c] sm:$0xf] %vm3352, %v3319
      %v3385 = vld [vmem:[#allocation2] sm:$0xf]
      %v3386 = vld [vmem:[#allocation2 + $0x4] sm:$0xf]
      %v3387 = vld [vmem:[#allocation2 + $0x8] sm:$0xf]
      %v3388 = vld [vmem:[#allocation2 + $0xc] sm:$0xf]
      %v3389 = vld [vmem:[#allocation2 + $0x10] sm:$0xf]
      %v3390 = vld [vmem:[#allocation2 + $0x14] sm:$0xf]
      %v3391 = vld [vmem:[#allocation2 + $0x18] sm:$0xf]
      %v3392 = vld [vmem:[#allocation2 + $0x1c] sm:$0xf]
      %v3393 = vld [vmem:[#allocation2 + $0x20] sm:$0xf]
      %v3394 = vld [vmem:[#allocation2 + $0x24] sm:$0xf]
      %v3395 = vld [vmem:[#allocation2 + $0x28] sm:$0xf]
      %v3396 = vld [vmem:[#allocation2 + $0x2c] sm:$0xf]
      %v3397 = vld [vmem:[#allocation2 + $0x30] sm:$0xf]
      %v3398 = vld [vmem:[#allocation2 + $0x34] sm:$0xf]
      %v3399 = vld [vmem:[#allocation2 + $0x38] sm:$0xf]
      %v3400 = vld [vmem:[#allocation2 + $0x3c] sm:$0xf]
      %v3401 = vld [vmem:[#allocation2 + $0x40] sm:$0xf]
      %v3402 = vld [vmem:[#allocation2 + $0x44] sm:$0xf]
      %v3403 = vld [vmem:[#allocation2 + $0x48] sm:$0xf]
      %v3404 = vld [vmem:[#allocation2 + $0x4c] sm:$0xf]
      %v3405 = vld [vmem:[#allocation2 + $0x50] sm:$0xf]
      %v3406 = vld [vmem:[#allocation2 + $0x54] sm:$0xf]
      %v3407 = vld [vmem:[#allocation2 + $0x58] sm:$0xf]
      %v3408 = vld [vmem:[#allocation2 + $0x5c] sm:$0xf]
      %v3409 = vld [vmem:[#allocation2 + $0x60] sm:$0xf]
      %v3410 = vld [vmem:[#allocation2 + $0x64] sm:$0xf]
      %v3411 = vld [vmem:[#allocation2 + $0x68] sm:$0xf]
      %v3412 = vld [vmem:[#allocation2 + $0x6c] sm:$0xf]
      %v3413 = vld [vmem:[#allocation2 + $0x70] sm:$0xf]
      %v3414 = vld [vmem:[#allocation2 + $0x74] sm:$0xf]
      %v3415 = vld [vmem:[#allocation2 + $0x78] sm:$0xf]
      %v3416 = vld [vmem:[#allocation2 + $0x7c] sm:$0xf]
      %v3417 = vld [vmem:[%s1] sm:$0xf]
      %v3418 = vld [vmem:[%s1 + $0x4] sm:$0xf]
      %v3419 = vld [vmem:[%s1 + $0x8] sm:$0xf]
      %v3420 = vld [vmem:[%s1 + $0xc] sm:$0xf]
      %v3421 = vld [vmem:[%s1 + $0x10] sm:$0x3]
      %v3454 = vunpack.c.l.b16 %v3385
      %v3455 = vunpack.c.l.b16 %v3386
      %v3456 = vunpack.c.l.b16 %v3387
      %v3457 = vunpack.c.l.b16 %v3388
      %v3458 = vunpack.c.l.b16 %v3389
      %v3459 = vunpack.c.l.b16 %v3390
      %v3460 = vunpack.c.l.b16 %v3391
      %v3461 = vunpack.c.l.b16 %v3392
      %v3462 = vunpack.c.l.b16 %v3393
      %v3463 = vunpack.c.l.b16 %v3394
      %v3464 = vunpack.c.l.b16 %v3395
      %v3465 = vunpack.c.l.b16 %v3396
      %v3466 = vunpack.c.l.b16 %v3397
      %v3467 = vunpack.c.l.b16 %v3398
      %v3468 = vunpack.c.l.b16 %v3399
      %v3469 = vunpack.c.l.b16 %v3400
      %v3470 = vunpack.c.l.b16 %v3401
      %v3471 = vunpack.c.l.b16 %v3402
      %v3472 = vunpack.c.l.b16 %v3403
      %v3473 = vunpack.c.l.b16 %v3404
      %v3474 = vunpack.c.l.b16 %v3405
      %v3475 = vunpack.c.l.b16 %v3406
      %v3476 = vunpack.c.l.b16 %v3407
      %v3477 = vunpack.c.l.b16 %v3408
      %v3478 = vunpack.c.l.b16 %v3409
      %v3479 = vunpack.c.l.b16 %v3410
      %v3480 = vunpack.c.l.b16 %v3411
      %v3481 = vunpack.c.l.b16 %v3412
      %v3482 = vunpack.c.l.b16 %v3413
      %v3483 = vunpack.c.l.b16 %v3414
      %v3484 = vunpack.c.l.b16 %v3415
      %v3485 = vunpack.c.l.b16 %v3416
      %v3486 = vpack.c.b16 %v3455, %v3454
      %v3487 = vpack.c.b16 %v3457, %v3456
      %v3488 = vpack.c.b16 %v3459, %v3458
      %v3489 = vpack.c.b16 %v3461, %v3460
      %v3490 = vpack.c.b16 %v3463, %v3462
      %v3491 = vpack.c.b16 %v3465, %v3464
      %v3492 = vpack.c.b16 %v3467, %v3466
      %v3493 = vpack.c.b16 %v3469, %v3468
      %v3494 = vpack.c.b16 %v3471, %v3470
      %v3495 = vpack.c.b16 %v3473, %v3472
      %v3496 = vpack.c.b16 %v3475, %v3474
      %v3497 = vpack.c.b16 %v3477, %v3476
      %v3498 = vpack.c.b16 %v3479, %v3478
      %v3499 = vpack.c.b16 %v3481, %v3480
      %v3500 = vpack.c.b16 %v3483, %v3482
      %v3501 = vpack.c.b16 %v3485, %v3484
      %v3507 = vunpack.c.l.b16 %v3417
      %v3508 = vunpack.c.l.b16 %v3418
      %v3509 = vunpack.c.l.b16 %v3419
      %v3510 = vunpack.c.l.b16 %v3420
      %v3511 = vunpack.c.l.b16 %v3421
      %v3512 = vpack.c.b16 %v3508, %v3507
      %v3513 = vpack.c.b16 %v3510, %v3509
      %v3514 = vpack.c.b16 %v3511, %v3511
      %vm3517 = vcmask 293888
      %v3519 = vsel %vm3517, %v3486, 0
      %v3522 = vsel %vm3517, %v3487, 0
      %v3525 = vsel %vm3517, %v3488, 0
      %v3528 = vsel %vm3517, %v3489, 0
      %v3531 = vsel %vm3517, %v3490, 0
      %v3534 = vsel %vm3517, %v3491, 0
      %v3537 = vsel %vm3517, %v3492, 0
      %v3540 = vsel %vm3517, %v3493, 0
      %v3543 = vsel %vm3517, %v3494, 0
      %v3546 = vsel %vm3517, %v3495, 0
      %v3549 = vsel %vm3517, %v3496, 0
      %v3552 = vsel %vm3517, %v3497, 0
      %v3555 = vsel %vm3517, %v3498, 0
      %v3558 = vsel %vm3517, %v3499, 0
      %v3561 = vsel %vm3517, %v3500, 0
      %v3564 = vsel %vm3517, %v3501, 0
      %vm3566 = vcmask 1041408
      %v3568 = vsel %vm3566, %v3514, 0
      %3570 = vmatpush.bf16.msra.mxu0 0
      %3571 = vmatpush.bf16.msra.mxu0 0
      %3572 = vmatpush.bf16.msra.mxu0 0
      %3573 = vmatpush.bf16.msra.mxu0 0
      %3574 = vmatpush.bf16.msra.mxu0 0
      %3575 = vmatpush.bf16.msra.mxu0 %v3568
      %3576 = vmatpush.bf16.msra.mxu0 %v3513
      %3577 = vmatpush.bf16.msra.mxu0 %v3512
      %3578 = vmatmul.bf16.gmra.mxu0 %v3519
      %v3579 = vpop.f32.mrf.mxu0
      %v3580 = vadd.f32 0.0, %v3579
      %v3581 = vpop.f32.mrf.mxu0
      %v3582 = vadd.f32 0.0, %v3581
      %3583 = vmatmul.bf16.gmra.mxu0 %v3522
      %v3584 = vpop.f32.mrf.mxu0
      %v3585 = vadd.f32 0.0, %v3584
      %v3586 = vpop.f32.mrf.mxu0
      %v3587 = vadd.f32 0.0, %v3586
      %3588 = vmatmul.bf16.gmra.mxu0 %v3525
      %v3589 = vpop.f32.mrf.mxu0
      %v3590 = vadd.f32 0.0, %v3589
      %v3591 = vpop.f32.mrf.mxu0
      %v3592 = vadd.f32 0.0, %v3591
      %3593 = vmatmul.bf16.gmra.mxu0 %v3528
      %v3594 = vpop.f32.mrf.mxu0
      %v3595 = vadd.f32 0.0, %v3594
      %v3596 = vpop.f32.mrf.mxu0
      %v3597 = vadd.f32 0.0, %v3596
      %3598 = vmatmul.bf16.gmra.mxu0 %v3531
      %v3599 = vpop.f32.mrf.mxu0
      %v3600 = vadd.f32 0.0, %v3599
      %v3601 = vpop.f32.mrf.mxu0
      %v3602 = vadd.f32 0.0, %v3601
      %3603 = vmatmul.bf16.gmra.mxu0 %v3534
      %v3604 = vpop.f32.mrf.mxu0
      %v3605 = vadd.f32 0.0, %v3604
      %v3606 = vpop.f32.mrf.mxu0
      %v3607 = vadd.f32 0.0, %v3606
      %3608 = vmatmul.bf16.gmra.mxu0 %v3537
      %v3609 = vpop.f32.mrf.mxu0
      %v3610 = vadd.f32 0.0, %v3609
      %v3611 = vpop.f32.mrf.mxu0
      %v3612 = vadd.f32 0.0, %v3611
      %3613 = vmatmul.bf16.gmra.mxu0 %v3540
      %v3614 = vpop.f32.mrf.mxu0
      %v3615 = vadd.f32 0.0, %v3614
      %v3616 = vpop.f32.mrf.mxu0
      %v3617 = vadd.f32 0.0, %v3616
      %3618 = vmatmul.bf16.gmra.mxu0 %v3543
      %v3619 = vpop.f32.mrf.mxu0
      %v3620 = vadd.f32 0.0, %v3619
      %v3621 = vpop.f32.mrf.mxu0
      %v3622 = vadd.f32 0.0, %v3621
      %3623 = vmatmul.bf16.gmra.mxu0 %v3546
      %v3624 = vpop.f32.mrf.mxu0
      %v3625 = vadd.f32 0.0, %v3624
      %v3626 = vpop.f32.mrf.mxu0
      %v3627 = vadd.f32 0.0, %v3626
      %3628 = vmatmul.bf16.gmra.mxu0 %v3549
      %v3629 = vpop.f32.mrf.mxu0
      %v3630 = vadd.f32 0.0, %v3629
      %v3631 = vpop.f32.mrf.mxu0
      %v3632 = vadd.f32 0.0, %v3631
      %3633 = vmatmul.bf16.gmra.mxu0 %v3552
      %v3634 = vpop.f32.mrf.mxu0
      %v3635 = vadd.f32 0.0, %v3634
      %v3636 = vpop.f32.mrf.mxu0
      %v3637 = vadd.f32 0.0, %v3636
      %3638 = vmatmul.bf16.gmra.mxu0 %v3555
      %v3639 = vpop.f32.mrf.mxu0
      %v3640 = vadd.f32 0.0, %v3639
      %v3641 = vpop.f32.mrf.mxu0
      %v3642 = vadd.f32 0.0, %v3641
      %3643 = vmatmul.bf16.gmra.mxu0 %v3558
      %v3644 = vpop.f32.mrf.mxu0
      %v3645 = vadd.f32 0.0, %v3644
      %v3646 = vpop.f32.mrf.mxu0
      %v3647 = vadd.f32 0.0, %v3646
      %3648 = vmatmul.bf16.gmra.mxu0 %v3561
      %v3649 = vpop.f32.mrf.mxu0
      %v3650 = vadd.f32 0.0, %v3649
      %v3651 = vpop.f32.mrf.mxu0
      %v3652 = vadd.f32 0.0, %v3651
      %3653 = vmatmul.bf16.gmra.mxu0 %v3564
      %v3654 = vpop.f32.mrf.mxu0
      %v3655 = vadd.f32 0.0, %v3654
      %v3656 = vpop.f32.mrf.mxu0
      %v3657 = vadd.f32 0.0, %v3656
      %3658 = vdwg.mxu0
      %v3659 = vld [vmem:[%s2] sm:$0x1]
      %v3661 = vperm.slane %v3659, 0
      %v3663 = vmul.f32 %v3580, %v3661
      %v3664 = vmul.f32 %v3582, %v3661
      %v3665 = vmul.f32 %v3585, %v3661
      %v3666 = vmul.f32 %v3587, %v3661
      %v3667 = vmul.f32 %v3590, %v3661
      %v3668 = vmul.f32 %v3592, %v3661
      %v3669 = vmul.f32 %v3595, %v3661
      %v3670 = vmul.f32 %v3597, %v3661
      %v3671 = vmul.f32 %v3600, %v3661
      %v3672 = vmul.f32 %v3602, %v3661
      %v3673 = vmul.f32 %v3605, %v3661
      %v3674 = vmul.f32 %v3607, %v3661
      %v3675 = vmul.f32 %v3610, %v3661
      %v3676 = vmul.f32 %v3612, %v3661
      %v3677 = vmul.f32 %v3615, %v3661
      %v3678 = vmul.f32 %v3617, %v3661
      %v3679 = vmul.f32 %v3620, %v3661
      %v3680 = vmul.f32 %v3622, %v3661
      %v3681 = vmul.f32 %v3625, %v3661
      %v3682 = vmul.f32 %v3627, %v3661
      %v3683 = vmul.f32 %v3630, %v3661
      %v3684 = vmul.f32 %v3632, %v3661
      %v3685 = vmul.f32 %v3635, %v3661
      %v3686 = vmul.f32 %v3637, %v3661
      %v3687 = vmul.f32 %v3640, %v3661
      %v3688 = vmul.f32 %v3642, %v3661
      %v3689 = vmul.f32 %v3645, %v3661
      %v3690 = vmul.f32 %v3647, %v3661
      %v3691 = vmul.f32 %v3650, %v3661
      %v3692 = vmul.f32 %v3652, %v3661
      %v3693 = vmul.f32 %v3655, %v3661
      %v3694 = vmul.f32 %v3657, %v3661
      %v3695 = vld [vmem:[%s3] sm:$0x1]
      %v3697 = vperm.slane %v3695, 0
      %v3699 = vadd.f32 %v3663, %v3697
      %v3700 = vadd.f32 %v3664, %v3697
      %v3701 = vadd.f32 %v3665, %v3697
      %v3702 = vadd.f32 %v3666, %v3697
      %v3703 = vadd.f32 %v3667, %v3697
      %v3704 = vadd.f32 %v3668, %v3697
      %v3705 = vadd.f32 %v3669, %v3697
      %v3706 = vadd.f32 %v3670, %v3697
      %v3707 = vadd.f32 %v3671, %v3697
      %v3708 = vadd.f32 %v3672, %v3697
      %v3709 = vadd.f32 %v3673, %v3697
      %v3710 = vadd.f32 %v3674, %v3697
      %v3711 = vadd.f32 %v3675, %v3697
      %v3712 = vadd.f32 %v3676, %v3697
      %v3713 = vadd.f32 %v3677, %v3697
      %v3714 = vadd.f32 %v3678, %v3697
      %v3715 = vadd.f32 %v3679, %v3697
      %v3716 = vadd.f32 %v3680, %v3697
      %v3717 = vadd.f32 %v3681, %v3697
      %v3718 = vadd.f32 %v3682, %v3697
      %v3719 = vadd.f32 %v3683, %v3697
      %v3720 = vadd.f32 %v3684, %v3697
      %v3721 = vadd.f32 %v3685, %v3697
      %v3722 = vadd.f32 %v3686, %v3697
      %v3723 = vadd.f32 %v3687, %v3697
      %v3724 = vadd.f32 %v3688, %v3697
      %v3725 = vadd.f32 %v3689, %v3697
      %v3726 = vadd.f32 %v3690, %v3697
      %v3727 = vadd.f32 %v3691, %v3697
      %v3728 = vadd.f32 %v3692, %v3697
      %v3729 = vadd.f32 %v3693, %v3697
      %v3730 = vadd.f32 %v3694, %v3697
      %v3731 = vmul.f32 %v3699, 0.1
      %v3732 = vmul.f32 %v3700, 0.1
      %v3733 = vmul.f32 %v3701, 0.1
      %v3734 = vmul.f32 %v3702, 0.1
      %v3735 = vmul.f32 %v3703, 0.1
      %v3736 = vmul.f32 %v3704, 0.1
      %v3737 = vmul.f32 %v3705, 0.1
      %v3738 = vmul.f32 %v3706, 0.1
      %v3739 = vmul.f32 %v3707, 0.1
      %v3740 = vmul.f32 %v3708, 0.1
      %v3741 = vmul.f32 %v3709, 0.1
      %v3742 = vmul.f32 %v3710, 0.1
      %v3743 = vmul.f32 %v3711, 0.1
      %v3744 = vmul.f32 %v3712, 0.1
      %v3745 = vmul.f32 %v3713, 0.1
      %v3746 = vmul.f32 %v3714, 0.1
      %v3747 = vmul.f32 %v3715, 0.1
      %v3748 = vmul.f32 %v3716, 0.1
      %v3749 = vmul.f32 %v3717, 0.1
      %v3750 = vmul.f32 %v3718, 0.1
      %v3751 = vmul.f32 %v3719, 0.1
      %v3752 = vmul.f32 %v3720, 0.1
      %v3753 = vmul.f32 %v3721, 0.1
      %v3754 = vmul.f32 %v3722, 0.1
      %v3755 = vmul.f32 %v3723, 0.1
      %v3756 = vmul.f32 %v3724, 0.1
      %v3757 = vmul.f32 %v3725, 0.1
      %v3758 = vmul.f32 %v3726, 0.1
      %v3759 = vmul.f32 %v3727, 0.1
      %v3760 = vmul.f32 %v3728, 0.1
      %v3761 = vmul.f32 %v3729, 0.1
      %v3762 = vmul.f32 %v3730, 0.1
      %v3763 = vmax.f32 %v3699, %v3731
      %v3764 = vmax.f32 %v3700, %v3732
      %v3765 = vmax.f32 %v3701, %v3733
      %v3766 = vmax.f32 %v3702, %v3734
      %v3767 = vmax.f32 %v3703, %v3735
      %v3768 = vmax.f32 %v3704, %v3736
      %v3769 = vmax.f32 %v3705, %v3737
      %v3770 = vmax.f32 %v3706, %v3738
      %v3771 = vmax.f32 %v3707, %v3739
      %v3772 = vmax.f32 %v3708, %v3740
      %v3773 = vmax.f32 %v3709, %v3741
      %v3774 = vmax.f32 %v3710, %v3742
      %v3775 = vmax.f32 %v3711, %v3743
      %v3776 = vmax.f32 %v3712, %v3744
      %v3777 = vmax.f32 %v3713, %v3745
      %v3778 = vmax.f32 %v3714, %v3746
      %v3779 = vmax.f32 %v3715, %v3747
      %v3780 = vmax.f32 %v3716, %v3748
      %v3781 = vmax.f32 %v3717, %v3749
      %v3782 = vmax.f32 %v3718, %v3750
      %v3783 = vmax.f32 %v3719, %v3751
      %v3784 = vmax.f32 %v3720, %v3752
      %v3785 = vmax.f32 %v3721, %v3753
      %v3786 = vmax.f32 %v3722, %v3754
      %v3787 = vmax.f32 %v3723, %v3755
      %v3788 = vmax.f32 %v3724, %v3756
      %v3789 = vmax.f32 %v3725, %v3757
      %v3790 = vmax.f32 %v3726, %v3758
      %v3791 = vmax.f32 %v3727, %v3759
      %v3792 = vmax.f32 %v3728, %v3760
      %v3793 = vmax.f32 %v3729, %v3761
      %v3794 = vmax.f32 %v3730, %v3762
      %v3795 = vpack.c.bf16 %v3763, %v3763
      %v3796 = vpack.c.bf16 %v3764, %v3764
      %v3797 = vpack.c.bf16 %v3765, %v3765
      %v3798 = vpack.c.bf16 %v3766, %v3766
      %v3799 = vpack.c.bf16 %v3767, %v3767
      %v3800 = vpack.c.bf16 %v3768, %v3768
      %v3801 = vpack.c.bf16 %v3769, %v3769
      %v3802 = vpack.c.bf16 %v3770, %v3770
      %v3803 = vpack.c.bf16 %v3771, %v3771
      %v3804 = vpack.c.bf16 %v3772, %v3772
      %v3805 = vpack.c.bf16 %v3773, %v3773
      %v3806 = vpack.c.bf16 %v3774, %v3774
      %v3807 = vpack.c.bf16 %v3775, %v3775
      %v3808 = vpack.c.bf16 %v3776, %v3776
      %v3809 = vpack.c.bf16 %v3777, %v3777
      %v3810 = vpack.c.bf16 %v3778, %v3778
      %v3811 = vpack.c.bf16 %v3779, %v3779
      %v3812 = vpack.c.bf16 %v3780, %v3780
      %v3813 = vpack.c.bf16 %v3781, %v3781
      %v3814 = vpack.c.bf16 %v3782, %v3782
      %v3815 = vpack.c.bf16 %v3783, %v3783
      %v3816 = vpack.c.bf16 %v3784, %v3784
      %v3817 = vpack.c.bf16 %v3785, %v3785
      %v3818 = vpack.c.bf16 %v3786, %v3786
      %v3819 = vpack.c.bf16 %v3787, %v3787
      %v3820 = vpack.c.bf16 %v3788, %v3788
      %v3821 = vpack.c.bf16 %v3789, %v3789
      %v3822 = vpack.c.bf16 %v3790, %v3790
      %v3823 = vpack.c.bf16 %v3791, %v3791
      %v3824 = vpack.c.bf16 %v3792, %v3792
      %v3825 = vpack.c.bf16 %v3793, %v3793
      %v3826 = vpack.c.bf16 %v3794, %v3794
      %vm3827 = vcmask 60416
      %3828 = vst.msk [vmem:[%s219] sm:$0xf] %vm3827, %v3795
      %3829 = vst.msk [vmem:[%s219 + $0x4] sm:$0xf] %vm3827, %v3796
      %3830 = vst.msk [vmem:[%s219 + $0x8] sm:$0xf] %vm3827, %v3797
      %3831 = vst.msk [vmem:[%s219 + $0xc] sm:$0xf] %vm3827, %v3798
      %3832 = vst.msk [vmem:[%s219 + $0x10] sm:$0xf] %vm3827, %v3799
      %3833 = vst.msk [vmem:[%s219 + $0x14] sm:$0xf] %vm3827, %v3800
      %3834 = vst.msk [vmem:[%s219 + $0x18] sm:$0xf] %vm3827, %v3801
      %3835 = vst.msk [vmem:[%s219 + $0x1c] sm:$0xf] %vm3827, %v3802
      %3836 = vst.msk [vmem:[%s219 + $0x20] sm:$0xf] %vm3827, %v3803
      %3837 = vst.msk [vmem:[%s219 + $0x24] sm:$0xf] %vm3827, %v3804
      %3838 = vst.msk [vmem:[%s219 + $0x28] sm:$0xf] %vm3827, %v3805
      %3839 = vst.msk [vmem:[%s219 + $0x2c] sm:$0xf] %vm3827, %v3806
      %3840 = vst.msk [vmem:[%s219 + $0x30] sm:$0xf] %vm3827, %v3807
      %3841 = vst.msk [vmem:[%s219 + $0x34] sm:$0xf] %vm3827, %v3808
      %3842 = vst.msk [vmem:[%s219 + $0x38] sm:$0xf] %vm3827, %v3809
      %3843 = vst.msk [vmem:[%s219 + $0x3c] sm:$0xf] %vm3827, %v3810
      %3844 = vst.msk [vmem:[%s219 + $0x40] sm:$0xf] %vm3827, %v3811
      %3845 = vst.msk [vmem:[%s219 + $0x44] sm:$0xf] %vm3827, %v3812
      %3846 = vst.msk [vmem:[%s219 + $0x48] sm:$0xf] %vm3827, %v3813
      %3847 = vst.msk [vmem:[%s219 + $0x4c] sm:$0xf] %vm3827, %v3814
      %3848 = vst.msk [vmem:[%s219 + $0x50] sm:$0xf] %vm3827, %v3815
      %3849 = vst.msk [vmem:[%s219 + $0x54] sm:$0xf] %vm3827, %v3816
      %3850 = vst.msk [vmem:[%s219 + $0x58] sm:$0xf] %vm3827, %v3817
      %3851 = vst.msk [vmem:[%s219 + $0x5c] sm:$0xf] %vm3827, %v3818
      %3852 = vst.msk [vmem:[%s219 + $0x60] sm:$0xf] %vm3827, %v3819
      %3853 = vst.msk [vmem:[%s219 + $0x64] sm:$0xf] %vm3827, %v3820
      %3854 = vst.msk [vmem:[%s219 + $0x68] sm:$0xf] %vm3827, %v3821
      %3855 = vst.msk [vmem:[%s219 + $0x6c] sm:$0xf] %vm3827, %v3822
      %3856 = vst.msk [vmem:[%s219 + $0x70] sm:$0xf] %vm3827, %v3823
      %3857 = vst.msk [vmem:[%s219 + $0x74] sm:$0xf] %vm3827, %v3824
      %3858 = vst.msk [vmem:[%s219 + $0x78] sm:$0xf] %vm3827, %v3825
      %3859 = vst.msk [vmem:[%s219 + $0x7c] sm:$0xf] %vm3827, %v3826
      %s3860 = smul.u32 32, %s20
      %p3861 = scmp.lt.s32.totalorder %s19, 1
      %s3862 = scalar_select %p3861, %s19, 1
      %p3863 = scmp.lt.s32.totalorder %s3860, 31
      %s3864 = scalar_select %p3863, %s3860, 31
      %s3865 = smul.addr %s3862, 32
      %s3866 = sadd.s32 %s3864, %s3865
      %s3867 = smul.addr %s3866, 4
      %s3868 = scalar_lea.vmem %s4, %s3867
      // Predicated region
      $region37: #{tpu_custom_call.1} parent=35 // pred_check
        %p3869 = pneg %p136
      $region38: #{tpu_custom_call.1} parent=35 // pred_check_branch
        %3871 = sbr.rel (%p3869) target = $region40
      $region39: #{tpu_custom_call.1} parent=35 // pred_region
        %s3872 = smul.u32 32, %s20
      $region40: #{tpu_custom_call.1} parent=35 // pred_fallthru
        _
    $region36: #{tpu_custom_call.1} parent=5 // pred_fallthru
      _
    %p3873 = scmp.le.s32.totalorder 2, %s10
    // Predicated region
    $region41: #{tpu_custom_call.1} parent=5 // pred_check
      %p3874 = pneg %p3873
    $region42: #{tpu_custom_call.1} parent=5 // pred_check_branch
      %3876 = sbr.rel (%p3874) target = $region44
    $region43: #{tpu_custom_call.1} parent=5 // pred_region
      %s3877 = ssub.s32 %s10, 2
      // Predicated region
      $region45: #{tpu_custom_call.1} parent=43 // pred_check
        %p3878 = pneg %p142
      $region46: #{tpu_custom_call.1} parent=43 // pred_check_branch
        %3880 = sbr.rel (%p3878) target = $region48
      $region47: #{tpu_custom_call.1} parent=43 // pred_region
        %s3881 = smul.u32 32, %s22
        %p3882 = scmp.lt.s32.totalorder %s21, 1
        %s3883 = scalar_select %p3882, %s21, 1
        %p3884 = scmp.lt.s32.totalorder %s3881, 31
        %s3885 = scalar_select %p3884, %s3881, 31
        %s3886 = smul.addr %s3883, 32
        %s3887 = sadd.s32 %s3885, %s3886
        %s3888 = smul.addr %s3887, 4
        %s3889 = scalar_lea.vmem %s4, %s3888
      $region48: #{tpu_custom_call.1} parent=43 // pred_fallthru
        _
    $region44: #{tpu_custom_call.1} parent=5 // pred_fallthru
      _
  $region6: #{tpu_custom_call.1} parent=0 // loop_footer
    %s14 = sadd.s32 1, %s10
  $region7: #{tpu_custom_call.1} parent=0 // loop_footer_branch
    %9 = sbr.rel target = $region3
  $region8: #{tpu_custom_call.1} parent=0 // loop_exit
    _

</llo_original>
